<compile_context>
chip_gen: v6e
topology: v6e:2x2x1
jax: 0.10.0
libtpu: 0.0.40
codegen_flags: <defaults>
</compile_context>

<pallas_src>
import jax
import jax.numpy as jnp
from jax.experimental import pallas as pl
from jax.experimental.pallas import tpu as pltpu

_LANE = 128
_MAX_TM = 512          # >=512-class tiles amortize the ~0.35us per-grid-step cost
_MAX_TN = 512          # 256-multiples feed the full 2x256x256 MXU on v6e/v7x
_MAX_TK = 512
_VMEM_LIMIT = 48 * 1024 * 1024   # <= ~48 MiB so tiles tuned here also fit v7x (64 MiB)


def _round_up(x, m):
    return -(-x // m) * m


def _pad_axis(x, size, axis):
    """Zero-pad `axis` of x up to `size` (no-op if already that big)."""
    pad = size - x.shape[axis]
    if pad <= 0:
        return x
    widths = [(0, 0)] * x.ndim
    widths[axis] = (0, pad)
    return jnp.pad(x, widths)


def _pick_tile(padded, cap):
    """Largest tile <= cap dividing `padded` (a 128-multiple), preferring 256-mults."""
    for t in (512, 256, 128):
        if t <= cap and padded % t == 0:
            return t
    return padded


def _prep_m(m):
    """Row-tile choice: single full block when it fits, else 512-row tiles."""
    if m <= _MAX_TM:
        return m, m                      # full dim -> no 8-divisibility requirement
    return _MAX_TM, _round_up(m, _MAX_TM)


# ----------------- fused tiled matmul kernel (the conv engine) ---------------- #

def _mm_kernel(has_pre, has_post, post_relu):
    """Tiled matmul with optional fused BN+ReLU prologue / epilogue."""

    def kernel(*refs):
        a_ref, b_ref = refs[0], refs[1]
        idx = 2
        pre_s = pre_b = post_s = post_b = None
        if has_pre:
            pre_s, pre_b = refs[idx], refs[idx + 1]
            idx += 2
        if has_post:
            post_s, post_b = refs[idx], refs[idx + 1]
            idx += 2
        o_ref, acc_ref = refs[idx], refs[idx + 1]

        k = pl.program_id(2)

        @pl.when(k == 0)
        def _():
            acc_ref[...] = jnp.zeros_like(acc_ref)

        a = a_ref[...]
        if has_pre:   # fused BN+ReLU on the input tile (per input channel)
            a = jnp.maximum(
                a.astype(jnp.float32) * pre_s[...] + pre_b[...], 0.0)
            a = a.astype(jnp.bfloat16)
        acc_ref[...] += jnp.dot(a, b_ref[...],
                                preferred_element_type=jnp.float32)

        @pl.when(k == pl.num_programs(2) - 1)
        def _():
            y = acc_ref[...]
            if has_post:  # fused BN(+ReLU) on the output tile (per out channel)
                y = y * post_s[...] + post_b[...]
                if post_relu:
                    y = jnp.maximum(y, 0.0)
            o_ref[...] = y.astype(o_ref.dtype)

    return kernel


def fused_matmul(a, b, *, k=None, pre=None, post=None, post_relu=True,
                 out_dtype=jnp.bfloat16):
    """A[:, :k] @ B on the MXU in bf16 with an f32 VMEM accumulator.

    * `a` may have MORE columns than `k` (lane-padded feature buffers): only the
      first round_up(k,128) columns are visited by the K grid, so no wrapper
      slice/copy is needed to read a channel prefix.
    * `pre`/`post` = (scale, shift) row vectors: BN+ReLU prologue on A columns /
      BN(+ReLU) epilogue on output columns.  B rows and the pre shift are both
      zero-padded, so padded K columns contribute exactly zero (not relying on a
      single fragile invariant).
    * Output stays lane-padded (N rounded to 128) and is emitted in `out_dtype`
      (bf16 between layers) to halve activation HBM traffic.
    """
    m = a.shape[0]
    if k is None:
        k = a.shape[1]
    n = b.shape[1]

    kp = _round_up(k, _LANE)
    np_ = _round_up(n, _LANE)
    tk = _pick_tile(kp, _MAX_TK)
    tn = _pick_tile(np_, _MAX_TN)     # large TN -> j usually 1 -> prologue not recomputed
    tm, mp = _prep_m(m)

    a_p = a
    if a_p.shape[1] < kp:
        a_p = _pad_axis(a_p, kp, 1)
    if mp > m:
        # TODO(synk): only hit when M > 512 and not a 512-multiple; conv row
        # counts in this network never trigger it.
        a_p = _pad_axis(a_p, mp, 0)
    a_p = a_p.astype(jnp.bfloat16)
    b_p = _pad_axis(_pad_axis(b, kp, 0), np_, 1).astype(jnp.bfloat16)

    grid = (mp // tm, np_ // tn, kp // tk)
    in_specs = [pl.BlockSpec((tm, tk), lambda i, j, kk: (i, kk)),
                pl.BlockSpec((tk, tn), lambda i, j, kk: (kk, j))]
    args = [a_p, b_p]
    if pre is not None:
        in_specs += [pl.BlockSpec((1, tk), lambda i, j, kk: (0, kk))] * 2
        args += [_pad_axis(pre[0].astype(jnp.float32), kp, 1),
                 _pad_axis(pre[1].astype(jnp.float32), kp, 1)]
    if post is not None:
        in_specs += [pl.BlockSpec((1, tn), lambda i, j, kk: (0, j))] * 2
        args += [_pad_axis(post[0].astype(jnp.float32), np_, 1),
                 _pad_axis(post[1].astype(jnp.float32), np_, 1)]

    out_bytes = 4 if out_dtype == jnp.float32 else 2
    bytes_accessed = (mp * kp * 2 * (np_ // tn)      # A re-read per output-col tile
                      + kp * np_ * 2 * (mp // tm)    # B re-read per output-row tile
                      + mp * np_ * out_bytes
                      + 4 * kp * 4 + 4 * np_ * 4)    # pre/post vectors (upper bound)

    out = pl.pallas_call(
        _mm_kernel(pre is not None, post is not None, post_relu),
        out_shape=jax.ShapeDtypeStruct((mp, np_), out_dtype),
        grid=grid,
        in_specs=in_specs,
        out_specs=pl.BlockSpec((tm, tn), lambda i, j, kk: (i, j)),
        scratch_shapes=[pltpu.VMEM((tm, tn), jnp.float32)],
        compiler_params=pltpu.CompilerParams(
            dimension_semantics=("parallel", "parallel", "arbitrary"),
            vmem_limit_bytes=_VMEM_LIMIT),
        cost_estimate=pl.CostEstimate(
            flops=2 * mp * np_ * kp,
            transcendentals=0,
            bytes_accessed=bytes_accessed),
    )(*args)
    return out[:m] if mp > m else out


# ------------------------------ 1x1 convolutions ------------------------------ #

def conv1x1_fused(x, w, *, k=None, pre_bn=None, post_bn=None,
                  out_dtype=jnp.bfloat16):
    """Pointwise conv as a direct matmul (no im2col), with fused BN/ReLU."""
    n, h, wd, cp = x.shape
    a = x.reshape(n * h * wd, cp)
    pre = (pre_bn["scale"], pre_bn["shift"]) if pre_bn is not None else None
    post = (post_bn["scale"], post_bn["shift"]) if post_bn is not None else None
    out = fused_matmul(a, w, k=k, pre=pre, post=post, post_relu=True,
                       out_dtype=out_dtype)
    return out.reshape(n, h, wd, -1)          # lane-padded Cout


# ------------------------------ stem 7x7 conv --------------------------------- #

def conv_stem(x, w, post_bn):
    """7x7 stride-2 pad-3 conv + fused norm0/relu0 epilogue.

    TODO(synk): one-off stem conv still uses wrapper-side im2col (49 taps on a
    3-channel input); in-kernel halo-DMA would remove the duplicated patches.
    """
    n, h, wd, cin = x.shape
    kh, kw, _, cout = w.shape
    stride, pad = 2, 3
    xp = jnp.pad(x, ((0, 0), (pad, pad), (pad, pad), (0, 0)))
    oh = (h + 2 * pad - kh) // stride + 1
    ow = (wd + 2 * pad - kw) // stride + 1
    cols = [xp[:, i:i + stride * oh:stride, j:j + stride * ow:stride, :]
            for i in range(kh) for j in range(kw)]
    patches = jnp.concatenate(cols, axis=-1).reshape(n * oh * ow, kh * kw * cin)
    out = fused_matmul(patches, w.reshape(kh * kw * cin, cout),
                       post=(post_bn["scale"], post_bn["shift"]),
                       post_relu=True)
    return out.reshape(n, oh, ow, -1)


# --------------------------- 3x3 tap-shift convolution ------------------------ #

def _make_conv3x3_kernel(wp, mrows):
    def kernel(x_ref, w_ref, o_ref):
        # x_ref: (1, PROWS, C) one zero-padded image, spatially flattened.
        # w_ref: (9, C, TCo) tap-major weights.  o_ref: (1, mrows, TCo).
        acc = jnp.zeros(o_ref.shape[1:], jnp.float32)
        for t in range(9):
            di, dj = divmod(t, 3)
            s = di * wp + dj                       # static contiguous row shift
            a = x_ref[0, s:s + mrows, :]
            acc = acc + jnp.dot(a, w_ref[t], preferred_element_type=jnp.float32)
        o_ref[0] = acc.astype(o_ref.dtype)
    return kernel


def conv3x3(x, w):
    """3x3 stride-1 pad-1 conv as 9 shifted MXU matmuls over the padded map.

    The padded image is read once (flattened via a free reshape); every tap is a
    contiguous row-offset slice inside the kernel -- no KxK im2col duplication.
    """
    n, h, wd, cp = x.shape
    _, _, cin, cout = w.shape
    wp = wd + 2
    # 1 row/col of zeros around, +2 extra guard rows so every tap slice of
    # length h*wp stays in bounds of the flattened buffer.
    xp = jnp.pad(x, ((0, 0), (1, 2), (1, 1), (0, 0)))
    prows = (h + 3) * wp
    xflat = xp.reshape(n, prows, cp)               # contiguous (free) reshape
    mrows = h * wp

    cop = _round_up(cout, _LANE)
    tco = _pick_tile(cop, 256)
    wt = jnp.zeros((9, cp, cop), jnp.bfloat16)
    wt = wt.at[:, :cin, :cout].set(w.reshape(9, cin, cout).astype(jnp.bfloat16))

    out = pl.pallas_call(
        _make_conv3x3_kernel(wp, mrows),
        out_shape=jax.ShapeDtypeStruct((n, mrows, cop), jnp.bfloat16),
        grid=(n, cop // tco),
        in_specs=[pl.BlockSpec((1, prows, cp), lambda b, j: (b, 0, 0)),
                  pl.BlockSpec((9, cp, tco), lambda b, j: (0, 0, j))],
        out_specs=pl.BlockSpec((1, mrows, tco), lambda b, j: (b, 0, j)),
        compiler_params=pltpu.CompilerParams(
            dimension_semantics=("parallel", "parallel"),
            vmem_limit_bytes=_VMEM_LIMIT),
        cost_estimate=pl.CostEstimate(
            flops=2 * 9 * n * mrows * cop * cp,
            transcendentals=0,
            bytes_accessed=(n * prows * cp * 2 * (cop // tco)
                            + 9 * cp * cop * 2 * n + n * mrows * cop * 2)),
    )(xflat, wt)
    # valid outputs sit at flattened rows oh*wp + ow, ow in [0, wd)
    return out.reshape(n, h, wp, cop)[:, :, :wd, :cout]


# --------------------------------- pooling ------------------------------------ #

def _maxpool_kernel(x_ref, o_ref):
    # x_ref: (OH+1, 2, OW+1, 2C) even/odd phase split of one (-inf padded) image.
    # o_ref: (1, OH, OW, C).  Stride-2 decimation happens here, not in XLA.
    ohp, _, owp, c2 = x_ref.shape
    oh, ow, c = ohp - 1, owp - 1, c2 // 2
    r0 = x_ref[0:oh, 0, :, :]          # rows 2r
    r1 = x_ref[0:oh, 1, :, :]          # rows 2r+1
    r2 = x_ref[1:ohp, 0, :, :]         # rows 2r+2
    m = jnp.maximum(jnp.maximum(r0, r1), r2)       # (OH, OW+1, 2C)
    out = jnp.maximum(jnp.maximum(m[:, :ow, :c],   # cols 2c
                                  m[:, :ow, c:]),  # cols 2c+1
                      m[:, 1:, :c])                # cols 2c+2
    o_ref[0] = out.astype(o_ref.dtype)


def maxpool_3x3_s2(x):
    """MaxPool2d(kernel=3, stride=2, padding=1) on NHWC, per-image grid."""
    n, h, wd, c = x.shape
    oh = (h - 1) // 2 + 1
    ow = (wd - 1) // 2 + 1
    hpe, wpe = 2 * oh + 2, 2 * ow + 2
    xp = jnp.pad(x, ((0, 0), (1, hpe - 1 - h), (1, wpe - 1 - wd), (0, 0)),
                 constant_values=-jnp.inf)
    # Even/odd phase split: contiguous (free) reshape, zero data duplication.
    xr = xp.reshape(n * (oh + 1), 2, ow + 1, 2 * c)
    return pl.pallas_call(
        _maxpool_kernel,
        out_shape=jax.ShapeDtypeStruct((n, oh, ow, c), x.dtype),
        grid=(n,),
        in_specs=[pl.BlockSpec((oh + 1, 2, ow + 1, 2 * c),
                               lambda b: (b, 0, 0, 0))],
        out_specs=pl.BlockSpec((1, oh, ow, c), lambda b: (b, 0, 0, 0)),
        compiler_params=pltpu.CompilerParams(
            dimension_semantics=("parallel",)),
    )(xr)


def _avgpool_kernel(x_ref, o_ref):
    # x_ref: (OH, 2, OW, 2C) even/odd phase split of one image; o_ref: (1, OH, OW, C).
    c = o_ref.shape[3]
    s = (x_ref[:, 0, :, :].astype(jnp.float32)
         + x_ref[:, 1, :, :].astype(jnp.float32))
    o_ref[0] = ((s[:, :, :c] + s[:, :, c:]) * 0.25).astype(o_ref.dtype)


def avgpool_2x2_s2(x):
    """AvgPool2d(2, 2) on NHWC, per-image grid, no window duplication/transpose."""
    n, h, wd, c = x.shape
    # TODO(synk): torch AvgPool2d(2,2) floors odd H/W; DenseNet stages here
    # always present even spatial dims.
    oh, ow = h // 2, wd // 2
    xr = x.reshape(n * oh, 2, ow, 2 * c)           # contiguous (free) reshape
    return pl.pallas_call(
        _avgpool_kernel,
        out_shape=jax.ShapeDtypeStruct((n, oh, ow, c), x.dtype),
        grid=(n,),
        in_specs=[pl.BlockSpec((oh, 2, ow, 2 * c), lambda b: (b, 0, 0, 0))],
        out_specs=pl.BlockSpec((1, oh, ow, c), lambda b: (b, 0, 0, 0)),
        compiler_params=pltpu.CompilerParams(
            dimension_semantics=("parallel",)),
    )(xr)


# ------------------------------ classifier head -------------------------------- #

def _head_kernel(x_ref, s_ref, b_ref, w_ref, bias_ref, o_ref):
    # fused: norm5 + F.relu -> global average pool -> Linear(+bias)
    x = x_ref[...].astype(jnp.float32)
    x = jnp.maximum(x * s_ref[...] + b_ref[...], 0.0)
    pooled = jnp.mean(x, axis=1)                           # (TB, C)
    o_ref[...] = (jnp.dot(pooled, w_ref[...],
                          preferred_element_type=jnp.float32) + bias_ref[...])


def classifier_head(x, bn, fc_w, fc_b):
    n, h, wd, c = x.shape
    num_classes = fc_w.shape[1]
    cp = _round_up(num_classes, _LANE)
    hw = h * wd
    w_p = jnp.zeros((c, cp), jnp.float32).at[:fc_w.shape[0], :num_classes].set(fc_w)
    b_p = _pad_axis(fc_b, cp, 1)
    scale = _pad_axis(bn["scale"], c, 1).reshape(1, 1, c)
    shift = _pad_axis(bn["shift"], c, 1).reshape(1, 1, c)

    tb = n if n <= 8 else 8
    npad = _round_up(n, tb)
    xr = _pad_axis(x.reshape(n, hw, c), npad, 0)
    out = pl.pallas_call(
        _head_kernel,
        out_shape=jax.ShapeDtypeStruct((npad, cp), jnp.float32),
        grid=(npad // tb,),
        in_specs=[pl.BlockSpec((tb, hw, c), lambda i: (i, 0, 0)),
                  pl.BlockSpec((1, 1, c), lambda i: (0, 0, 0)),
                  pl.BlockSpec((1, 1, c), lambda i: (0, 0, 0)),
                  pl.BlockSpec((c, cp), lambda i: (0, 0)),
                  pl.BlockSpec((1, cp), lambda i: (0, 0))],
        out_specs=pl.BlockSpec((tb, cp), lambda i: (i, 0)),
        compiler_params=pltpu.CompilerParams(
            dimension_semantics=("parallel",)),
    )(xr, scale, shift, w_p, b_p)
    return out[:n, :num_classes]


# -------------------------------- dense block ---------------------------------- #

def dense_block(feat_in, c_in, layers):
    """One DenseNet block on a preallocated lane-padded channel buffer.

    Each layer reads only the first round_up(c_valid,128) channels of the buffer
    (via the matmul K-grid extent -- no wrapper slice) and writes its `growth`
    new channels in place, eliminating the O(L^2) per-layer concatenation.
    """
    growths = [layer["conv2"].shape[3] for layer in layers]
    c_total = c_in + sum(growths)
    c_pad = _round_up(c_total, _LANE)
    feat = _pad_axis(feat_in, c_pad, 3)            # usually a no-op (already padded)

    c_valid = c_in
    for layer, g in zip(layers, growths):
        # one fused kernel: bn1+relu prologue -> 1x1 conv -> bn2+relu epilogue
        y = conv1x1_fused(feat, layer["conv1"], k=c_valid,
                          pre_bn=layer["bn1"], post_bn=layer["bn2"])
        # 3x3 tap-shift conv producing the raw growth channels (no activation).
        y = conv3x3(y, layer["conv2"])                          # (n,h,w,growth)
        feat = feat.at[:, :, :, c_valid:c_valid + g].set(y.astype(feat.dtype))
        c_valid += g
    return feat, c_total


# --------------------------- parameter construction ---------------------------- #

def _bn_params(c, eps=1e-5):
    # PyTorch BatchNorm2d defaults: gamma=1, beta=0, running_mean=0, running_var=1
    gamma = jnp.ones((c,), jnp.float32)
    beta = jnp.zeros((c,), jnp.float32)
    mean = jnp.zeros((c,), jnp.float32)
    var = jnp.ones((c,), jnp.float32)
    scale = gamma / jnp.sqrt(var + eps)
    shift = beta - mean * scale
    return {"scale": scale.reshape(1, c), "shift": shift.reshape(1, c)}


def _conv_w(key, kh, kw, cin, cout):
    fan_in = kh * kw * cin
    return jax.random.normal(key, (kh, kw, cin, cout),
                             jnp.float32) * (2.0 / fan_in) ** 0.5


def init_densenet_params(key, *, num_init_features=8, growth_rate=4,
                         block_config=(2, 2), bn_size=2, num_classes=10):
    keys = iter(jax.random.split(key, 64))
    params = {
        "conv0": _conv_w(next(keys), 7, 7, 3, num_init_features),
        "bn0": _bn_params(num_init_features),
        "blocks": [],
    }
    c = num_init_features
    for bi, num_layers in enumerate(block_config):
        layers = []
        for _ in range(num_layers):
            inter = bn_size * growth_rate
            layers.append({
                "bn1": _bn_params(c),
                "conv1": _conv_w(next(keys), 1, 1, c, inter).reshape(c, inter),
                "bn2": _bn_params(inter),
                "conv2": _conv_w(next(keys), 3, 3, inter, growth_rate),
            })
            c += growth_rate
        block = {"layers": layers, "trans": None}
        if bi != len(block_config) - 1:
            c_out = c // 2
            block["trans"] = {
                "bn": _bn_params(c),
                "conv": _conv_w(next(keys), 1, 1, c, c_out).reshape(c, c_out),
            }
            c = c_out
        params["blocks"].append(block)
    params["bn5"] = _bn_params(c)
    params["fc_w"] = jax.random.normal(next(keys), (c, num_classes),
                                       jnp.float32) * (1.0 / c) ** 0.5
    params["fc_b"] = jnp.zeros((1, num_classes), jnp.float32)
    return params


# ----------------------------------- forward ------------------------------------ #

def densenet_forward(params, x_nchw):
    # NCHW (PyTorch convention) -> NHWC so channels sit on the lane dimension.
    x = jnp.transpose(x_nchw.astype(jnp.float32), (0, 2, 3, 1))

    # features: conv0 with fused norm0+relu0 epilogue, then pool0.
    x = conv_stem(x, params["conv0"], params["bn0"])      # bf16, lane-padded C
    x = maxpool_3x3_s2(x)
    c = params["conv0"].shape[-1]                         # logical channel count

    # dense blocks + transitions (activations stay lane-padded bf16 throughout)
    for block in params["blocks"]:
        x, c = dense_block(x, c, block["layers"])
        if block["trans"] is not None:
            # fused: bn+relu prologue -> 1x1 transition conv; then 2x2 avg pool.
            x = conv1x1_fused(x, block["trans"]["conv"], k=c,
                              pre_bn=block["trans"]["bn"])
            c = block["trans"]["conv"].shape[1]
            x = avgpool_2x2_s2(x)

    # norm5 + F.relu + global avg pool + flatten + Linear, fused in one kernel.
    return classifier_head(x, params["bn5"], params["fc_w"], params["fc_b"])


# ------------------------------------- main -------------------------------------- #

if __name__ == "__main__":
    key = jax.random.PRNGKey(0)
    pkey, xkey = jax.random.split(key)
    params = init_densenet_params(pkey, num_classes=10)

    # Small input consistent with the module's NCHW RGB-image forward.
    x = jax.random.normal(xkey, (2, 3, 16, 16), jnp.float32)

    fwd = jax.jit(densenet_forward)
    logits = fwd(params, x)
    jax.block_until_ready(logits)

    assert logits.shape == (2, 10), logits.shape
    assert logits.dtype == jnp.float32
    assert bool(jnp.all(jnp.isfinite(logits)))
    print("KERNEL_OK")
</pallas_src>

<mosaic_0001>
module attributes {stable_mosaic.version = 11 : i64} {
  func.func @kernel(%arg0: i32, %arg1: i32, %arg2: i32, %arg3: memref<128x256xbf16, #tpu.memory_space<vmem>>, %arg4: memref<256x128xbf16, #tpu.memory_space<vmem>>, %arg5: memref<1x128xf32, #tpu.memory_space<vmem>>, %arg6: memref<1x128xf32, #tpu.memory_space<vmem>>, %arg7: memref<128x128xbf16, #tpu.memory_space<vmem>>, %arg8: memref<128x128xf32, #tpu.memory_space<vmem>>) attributes {dimension_semantics = [#tpu.dimension_semantics<parallel>, #tpu.dimension_semantics<parallel>, #tpu.dimension_semantics<arbitrary>], iteration_bounds = array<i64: 1, 1, 1>, scalar_prefetch = 0 : i64, scratch_operands = 1 : i64, tpu.core_type = #tpu.core_type<tc>, window_params = [{transform_indices = @transform_0, window_bounds = array<i64: 128, 256>}, {transform_indices = @transform_1, window_bounds = array<i64: 256, 128>}, {transform_indices = @transform_2, window_bounds = array<i64: 1, 128>}, {transform_indices = @transform_3, window_bounds = array<i64: 1, 128>}, {transform_indices = @transform_4, window_bounds = array<i64: 128, 128>}]} {
    %c0_i32 = arith.constant 0 : i32
    %0 = arith.cmpi eq, %arg2, %c0_i32 : i32
    %1 = arith.extui %0 : i1 to i32
    %c0_i32_0 = arith.constant 0 : i32
    %2 = arith.cmpi ne, %1, %c0_i32_0 : i32
    scf.if %2 {
      %cst_10 = arith.constant 0.000000e+00 : f32
      %12 = vector.broadcast %cst_10 : f32 to vector<128x128xf32>
      %c0_11 = arith.constant 0 : index
      %c0_12 = arith.constant 0 : index
      %13 = vector.load %arg8[%c0_11, %c0_12] : memref<128x128xf32, #tpu.memory_space<vmem>>, vector<128x128xf32>
      tpu.vector_store %arg8[%c0_11, %c0_12], %12 {strides = array<i32>} : memref<128x128xf32, #tpu.memory_space<vmem>>, vector<128x128xf32>,
    } else {
    }
    %c0 = arith.constant 0 : index
    %c0_1 = arith.constant 0 : index
    %3 = vector.load %arg3[%c0, %c0_1] : memref<128x256xbf16, #tpu.memory_space<vmem>>, vector<128x256xbf16>
    %c0_2 = arith.constant 0 : index
    %c0_3 = arith.constant 0 : index
    %4 = vector.load %arg8[%c0_2, %c0_3] : memref<128x128xf32, #tpu.memory_space<vmem>>, vector<128x128xf32>
    %c0_4 = arith.constant 0 : index
    %c0_5 = arith.constant 0 : index
    %5 = vector.load %arg4[%c0_4, %c0_5] : memref<256x128xbf16, #tpu.memory_space<vmem>>, vector<256x128xbf16>
    %cst = arith.constant dense<0.000000e+00> : vector<128x128xf32>
    %6 = tpu.matmul %3, %5, %cst {dimension_numbers = #tpu.dot_dimension_numbers<[1], [0], [0], [1], [0, 0, 1, 1], [], []>} : vector<128x256xbf16>, vector<256x128xbf16>, vector<128x128xf32> -> vector<128x128xf32>
    %7 = arith.addf %4, %6 : vector<128x128xf32>
    %c0_6 = arith.constant 0 : index
    %c0_7 = arith.constant 0 : index
    %8 = vector.load %arg8[%c0_6, %c0_7] : memref<128x128xf32, #tpu.memory_space<vmem>>, vector<128x128xf32>
    tpu.vector_store %arg8[%c0_6, %c0_7], %7 {strides = array<i32>} : memref<128x128xf32, #tpu.memory_space<vmem>>, vector<128x128xf32>,
    %c0_i32_8 = arith.constant 0 : i32
    %9 = arith.cmpi eq, %arg2, %c0_i32_8 : i32
    %10 = arith.extui %9 : i1 to i32
    %c0_i32_9 = arith.constant 0 : i32
    %11 = arith.cmpi ne, %10, %c0_i32_9 : i32
    scf.if %11 {
      %c0_10 = arith.constant 0 : index
      %c0_11 = arith.constant 0 : index
      %12 = vector.load %arg8[%c0_10, %c0_11] : memref<128x128xf32, #tpu.memory_space<vmem>>, vector<128x128xf32>
      %c0_12 = arith.constant 0 : index
      %c0_13 = arith.constant 0 : index
      %13 = vector.load %arg5[%c0_12, %c0_13] : memref<1x128xf32, #tpu.memory_space<vmem>>, vector<1x128xf32>
      %14 = vector.broadcast %13 : vector<1x128xf32> to vector<128x128xf32>
      %15 = arith.mulf %12, %14 : vector<128x128xf32>
      %c0_14 = arith.constant 0 : index
      %c0_15 = arith.constant 0 : index
      %16 = vector.load %arg6[%c0_14, %c0_15] : memref<1x128xf32, #tpu.memory_space<vmem>>, vector<1x128xf32>
      %17 = vector.broadcast %16 : vector<1x128xf32> to vector<128x128xf32>
      %18 = arith.addf %15, %17 : vector<128x128xf32>
      %cst_16 = arith.constant 0.000000e+00 : f32
      %19 = vector.broadcast %cst_16 : f32 to vector<128x128xf32>
      %20 = arith.maximumf %18, %19 : vector<128x128xf32>
      %21 = arith.truncf %20 : vector<128x128xf32> to vector<128x128xbf16>
      %c0_17 = arith.constant 0 : index
      %c0_18 = arith.constant 0 : index
      %22 = vector.load %arg7[%c0_17, %c0_18] : memref<128x128xbf16, #tpu.memory_space<vmem>>, vector<128x128xbf16>
      tpu.vector_store %arg7[%c0_17, %c0_18], %21 {strides = array<i32>} : memref<128x128xbf16, #tpu.memory_space<vmem>>, vector<128x128xbf16>,
    } else {
    }
    return
  }
  func.func @transform_0(%arg0: i32, %arg1: i32, %arg2: i32) -> (i32, i32) {
    %c0_i32 = arith.constant 0 : i32
    return %arg0, %arg2 : i32, i32
  }
  func.func @transform_1(%arg0: i32, %arg1: i32, %arg2: i32) -> (i32, i32) {
    %c0_i32 = arith.constant 0 : i32
    return %arg2, %arg1 : i32, i32
  }
  func.func @transform_2(%arg0: i32, %arg1: i32, %arg2: i32) -> (i32, i32) {
    %c0_i32 = arith.constant 0 : i32
    %c0_i32_0 = arith.constant 0 : i32
    return %c0_i32, %arg1 : i32, i32
  }
  func.func @transform_3(%arg0: i32, %arg1: i32, %arg2: i32) -> (i32, i32) {
    %c0_i32 = arith.constant 0 : i32
    %c0_i32_0 = arith.constant 0 : i32
    return %c0_i32, %arg1 : i32, i32
  }
  func.func @transform_4(%arg0: i32, %arg1: i32, %arg2: i32) -> (i32, i32) {
    %c0_i32 = arith.constant 0 : i32
    return %arg0, %arg1 : i32, i32
  }
}

module attributes {stable_mosaic.version = 11 : i64} {
  func.func @_maxpool_kernel(%arg0: i32, %arg1: memref<5x2x5x256xbf16, #tpu.memory_space<vmem>>, %arg2: memref<1x4x4x128xbf16, #tpu.memory_space<vmem>>) attributes {dimension_semantics = [#tpu.dimension_semantics<parallel>], iteration_bounds = array<i64: 2>, scalar_prefetch = 0 : i64, scratch_operands = 0 : i64, tpu.core_type = #tpu.core_type<tc>, window_params = [{transform_indices = @transform_0, window_bounds = array<i64: 5, 2, 5, 256>}, {transform_indices = @transform_1, window_bounds = array<i64: 1, 4, 4, 128>}]} {
    %c0 = arith.constant 0 : index
    %c0_0 = arith.constant 0 : index
    %c0_1 = arith.constant 0 : index
    %c0_2 = arith.constant 0 : index
    %0 = vector.load %arg1[%c0, %c0_0, %c0_1, %c0_2] : memref<5x2x5x256xbf16, #tpu.memory_space<vmem>>, vector<4x1x5x256xbf16>
    %1 = vector.shape_cast %0 : vector<4x1x5x256xbf16> to vector<4x5x256xbf16>
    %c0_3 = arith.constant 0 : index
    %c1 = arith.constant 1 : index
    %c0_4 = arith.constant 0 : index
    %c0_5 = arith.constant 0 : index
    %2 = vector.load %arg1[%c0_3, %c1, %c0_4, %c0_5] : memref<5x2x5x256xbf16, #tpu.memory_space<vmem>>, vector<4x1x5x256xbf16>
    %3 = vector.shape_cast %2 : vector<4x1x5x256xbf16> to vector<4x5x256xbf16>
    %c1_6 = arith.constant 1 : index
    %c0_7 = arith.constant 0 : index
    %c0_8 = arith.constant 0 : index
    %c0_9 = arith.constant 0 : index
    %4 = vector.load %arg1[%c1_6, %c0_7, %c0_8, %c0_9] : memref<5x2x5x256xbf16, #tpu.memory_space<vmem>>, vector<4x1x5x256xbf16>
    %5 = vector.shape_cast %4 : vector<4x1x5x256xbf16> to vector<4x5x256xbf16>
    %6 = arith.maximumf %1, %3 : vector<4x5x256xbf16>
    %7 = arith.maximumf %6, %5 : vector<4x5x256xbf16>
    %8 = vector.extract_strided_slice %7 {offsets = [0, 0, 0], sizes = [4, 4, 128], strides = [1, 1, 1]} : vector<4x5x256xbf16> to vector<4x4x128xbf16>
    %9 = vector.extract_strided_slice %7 {offsets = [0, 0, 128], sizes = [4, 4, 128], strides = [1, 1, 1]} : vector<4x5x256xbf16> to vector<4x4x128xbf16>
    %10 = arith.maximumf %8, %9 : vector<4x4x128xbf16>
    %11 = vector.extract_strided_slice %7 {offsets = [0, 1, 0], sizes = [4, 4, 128], strides = [1, 1, 1]} : vector<4x5x256xbf16> to vector<4x4x128xbf16>
    %12 = arith.maximumf %10, %11 : vector<4x4x128xbf16>
    %c0_10 = arith.constant 0 : index
    %c0_11 = arith.constant 0 : index
    %c0_12 = arith.constant 0 : index
    %c0_13 = arith.constant 0 : index
    %13 = vector.load %arg2[%c0_10, %c0_11, %c0_12, %c0_13] : memref<1x4x4x128xbf16, #tpu.memory_space<vmem>>, vector<1x4x4x128xbf16>
    %14 = vector.shape_cast %13 : vector<1x4x4x128xbf16> to vector<4x4x128xbf16>
    %15 = vector.shape_cast %12 : vector<4x4x128xbf16> to vector<1x4x4x128xbf16>
    tpu.vector_store %arg2[%c0_10, %c0_11, %c0_12, %c0_13], %15 {strides = array<i32>} : memref<1x4x4x128xbf16, #tpu.memory_space<vmem>>, vector<1x4x4x128xbf16>,
    return
  }
  func.func @transform_0(%arg0: i32) -> (i32, i32, i32, i32) {
    %c0_i32 = arith.constant 0 : i32
    %c0_i32_0 = arith.constant 0 : i32
    %c0_i32_1 = arith.constant 0 : i32
    %c0_i32_2 = arith.constant 0 : i32
    return %arg0, %c0_i32, %c0_i32_0, %c0_i32_1 : i32, i32, i32, i32
  }
  func.func @transform_1(%arg0: i32) -> (i32, i32, i32, i32) {
    %c0_i32 = arith.constant 0 : i32
    %c0_i32_0 = arith.constant 0 : i32
    %c0_i32_1 = arith.constant 0 : i32
    %c0_i32_2 = arith.constant 0 : i32
    return %arg0, %c0_i32, %c0_i32_0, %c0_i32_1 : i32, i32, i32, i32
  }
}

module attributes {stable_mosaic.version = 11 : i64} {
  func.func @kernel(%arg0: i32, %arg1: i32, %arg2: i32, %arg3: memref<32x128xbf16, #tpu.memory_space<vmem>>, %arg4: memref<128x128xbf16, #tpu.memory_space<vmem>>, %arg5: memref<1x128xf32, #tpu.memory_space<vmem>>, %arg6: memref<1x128xf32, #tpu.memory_space<vmem>>, %arg7: memref<1x128xf32, #tpu.memory_space<vmem>>, %arg8: memref<1x128xf32, #tpu.memory_space<vmem>>, %arg9: memref<32x128xbf16, #tpu.memory_space<vmem>>, %arg10: memref<32x128xf32, #tpu.memory_space<vmem>>) attributes {dimension_semantics = [#tpu.dimension_semantics<parallel>, #tpu.dimension_semantics<parallel>, #tpu.dimension_semantics<arbitrary>], iteration_bounds = array<i64: 1, 1, 1>, scalar_prefetch = 0 : i64, scratch_operands = 1 : i64, tpu.core_type = #tpu.core_type<tc>, window_params = [{transform_indices = @transform_0, window_bounds = array<i64: 32, 128>}, {transform_indices = @transform_1, window_bounds = array<i64: 128, 128>}, {transform_indices = @transform_2, window_bounds = array<i64: 1, 128>}, {transform_indices = @transform_3, window_bounds = array<i64: 1, 128>}, {transform_indices = @transform_4, window_bounds = array<i64: 1, 128>}, {transform_indices = @transform_5, window_bounds = array<i64: 1, 128>}, {transform_indices = @transform_6, window_bounds = array<i64: 32, 128>}]} {
    %c0_i32 = arith.constant 0 : i32
    %0 = arith.cmpi eq, %arg2, %c0_i32 : i32
    %1 = arith.extui %0 : i1 to i32
    %c0_i32_0 = arith.constant 0 : i32
    %2 = arith.cmpi ne, %1, %c0_i32_0 : i32
    scf.if %2 {
      %cst_15 = arith.constant 0.000000e+00 : f32
      %22 = vector.broadcast %cst_15 : f32 to vector<32x128xf32>
      %c0_16 = arith.constant 0 : index
      %c0_17 = arith.constant 0 : index
      %23 = vector.load %arg10[%c0_16, %c0_17] : memref<32x128xf32, #tpu.memory_space<vmem>>, vector<32x128xf32>
      tpu.vector_store %arg10[%c0_16, %c0_17], %22 {strides = array<i32>} : memref<32x128xf32, #tpu.memory_space<vmem>>, vector<32x128xf32>,
    } else {
    }
    %c0 = arith.constant 0 : index
    %c0_1 = arith.constant 0 : index
    %3 = vector.load %arg3[%c0, %c0_1] : memref<32x128xbf16, #tpu.memory_space<vmem>>, vector<32x128xbf16>
    %4 = arith.extf %3 : vector<32x128xbf16> to vector<32x128xf32>
    %c0_2 = arith.constant 0 : index
    %c0_3 = arith.constant 0 : index
    %5 = vector.load %arg5[%c0_2, %c0_3] : memref<1x128xf32, #tpu.memory_space<vmem>>, vector<1x128xf32>
    %6 = vector.broadcast %5 : vector<1x128xf32> to vector<32x128xf32>
    %7 = arith.mulf %4, %6 : vector<32x128xf32>
    %c0_4 = arith.constant 0 : index
    %c0_5 = arith.constant 0 : index
    %8 = vector.load %arg6[%c0_4, %c0_5] : memref<1x128xf32, #tpu.memory_space<vmem>>, vector<1x128xf32>
    %9 = vector.broadcast %8 : vector<1x128xf32> to vector<32x128xf32>
    %10 = arith.addf %7, %9 : vector<32x128xf32>
    %cst = arith.constant 0.000000e+00 : f32
    %11 = vector.broadcast %cst : f32 to vector<32x128xf32>
    %12 = arith.maximumf %10, %11 : vector<32x128xf32>
    %13 = arith.truncf %12 : vector<32x128xf32> to vector<32x128xbf16>
    %c0_6 = arith.constant 0 : index
    %c0_7 = arith.constant 0 : index
    %14 = vector.load %arg10[%c0_6, %c0_7] : memref<32x128xf32, #tpu.memory_space<vmem>>, vector<32x128xf32>
    %c0_8 = arith.constant 0 : index
    %c0_9 = arith.constant 0 : index
    %15 = vector.load %arg4[%c0_8, %c0_9] : memref<128x128xbf16, #tpu.memory_space<vmem>>, vector<128x128xbf16>
    %cst_10 = arith.constant dense<0.000000e+00> : vector<32x128xf32>
    %16 = tpu.matmul %13, %15, %cst_10 {dimension_numbers = #tpu.dot_dimension_numbers<[1], [0], [0], [1], [0, 0, 1, 1], [], []>} : vector<32x128xbf16>, vector<128x128xbf16>, vector<32x128xf32> -> vector<32x128xf32>
    %17 = arith.addf %14, %16 : vector<32x128xf32>
    %c0_11 = arith.constant 0 : index
    %c0_12 = arith.constant 0 : index
    %18 = vector.load %arg10[%c0_11, %c0_12] : memref<32x128xf32, #tpu.memory_space<vmem>>, vector<32x128xf32>
    tpu.vector_store %arg10[%c0_11, %c0_12], %17 {strides = array<i32>} : memref<32x128xf32, #tpu.memory_space<vmem>>, vector<32x128xf32>,
    %c0_i32_13 = arith.constant 0 : i32
    %19 = arith.cmpi eq, %arg2, %c0_i32_13 : i32
    %20 = arith.extui %19 : i1 to i32
    %c0_i32_14 = arith.constant 0 : i32
    %21 = arith.cmpi ne, %20, %c0_i32_14 : i32
    scf.if %21 {
      %c0_15 = arith.constant 0 : index
      %c0_16 = arith.constant 0 : index
      %22 = vector.load %arg10[%c0_15, %c0_16] : memref<32x128xf32, #tpu.memory_space<vmem>>, vector<32x128xf32>
      %c0_17 = arith.constant 0 : index
      %c0_18 = arith.constant 0 : index
      %23 = vector.load %arg7[%c0_17, %c0_18] : memref<1x128xf32, #tpu.memory_space<vmem>>, vector<1x128xf32>
      %24 = vector.broadcast %23 : vector<1x128xf32> to vector<32x128xf32>
      %25 = arith.mulf %22, %24 : vector<32x128xf32>
      %c0_19 = arith.constant 0 : index
      %c0_20 = arith.constant 0 : index
      %26 = vector.load %arg8[%c0_19, %c0_20] : memref<1x128xf32, #tpu.memory_space<vmem>>, vector<1x128xf32>
      %27 = vector.broadcast %26 : vector<1x128xf32> to vector<32x128xf32>
      %28 = arith.addf %25, %27 : vector<32x128xf32>
      %cst_21 = arith.constant 0.000000e+00 : f32
      %29 = vector.broadcast %cst_21 : f32 to vector<32x128xf32>
      %30 = arith.maximumf %28, %29 : vector<32x128xf32>
      %31 = arith.truncf %30 : vector<32x128xf32> to vector<32x128xbf16>
      %c0_22 = arith.constant 0 : index
      %c0_23 = arith.constant 0 : index
      %32 = vector.load %arg9[%c0_22, %c0_23] : memref<32x128xbf16, #tpu.memory_space<vmem>>, vector<32x128xbf16>
      tpu.vector_store %arg9[%c0_22, %c0_23], %31 {strides = array<i32>} : memref<32x128xbf16, #tpu.memory_space<vmem>>, vector<32x128xbf16>,
    } else {
    }
    return
  }
  func.func @transform_0(%arg0: i32, %arg1: i32, %arg2: i32) -> (i32, i32) {
    %c0_i32 = arith.constant 0 : i32
    return %arg0, %arg2 : i32, i32
  }
  func.func @transform_1(%arg0: i32, %arg1: i32, %arg2: i32) -> (i32, i32) {
    %c0_i32 = arith.constant 0 : i32
    return %arg2, %arg1 : i32, i32
  }
  func.func @transform_2(%arg0: i32, %arg1: i32, %arg2: i32) -> (i32, i32) {
    %c0_i32 = arith.constant 0 : i32
    %c0_i32_0 = arith.constant 0 : i32
    return %c0_i32, %arg2 : i32, i32
  }
  func.func @transform_3(%arg0: i32, %arg1: i32, %arg2: i32) -> (i32, i32) {
    %c0_i32 = arith.constant 0 : i32
    %c0_i32_0 = arith.constant 0 : i32
    return %c0_i32, %arg2 : i32, i32
  }
  func.func @transform_4(%arg0: i32, %arg1: i32, %arg2: i32) -> (i32, i32) {
    %c0_i32 = arith.constant 0 : i32
    %c0_i32_0 = arith.constant 0 : i32
    return %c0_i32, %arg1 : i32, i32
  }
  func.func @transform_5(%arg0: i32, %arg1: i32, %arg2: i32) -> (i32, i32) {
    %c0_i32 = arith.constant 0 : i32
    %c0_i32_0 = arith.constant 0 : i32
    return %c0_i32, %arg1 : i32, i32
  }
  func.func @transform_6(%arg0: i32, %arg1: i32, %arg2: i32) -> (i32, i32) {
    %c0_i32 = arith.constant 0 : i32
    return %arg0, %arg1 : i32, i32
  }
}

module attributes {stable_mosaic.version = 11 : i64} {
  func.func @kernel(%arg0: i32, %arg1: i32, %arg2: memref<1x42x128xbf16, #tpu.memory_space<vmem>>, %arg3: memref<9x128x128xbf16, #tpu.memory_space<vmem>>, %arg4: memref<1x24x128xbf16, #tpu.memory_space<vmem>>) attributes {dimension_semantics = [#tpu.dimension_semantics<parallel>, #tpu.dimension_semantics<parallel>], iteration_bounds = array<i64: 2, 1>, scalar_prefetch = 0 : i64, scratch_operands = 0 : i64, tpu.core_type = #tpu.core_type<tc>, window_params = [{transform_indices = @transform_0, window_bounds = array<i64: 1, 42, 128>}, {transform_indices = @transform_1, window_bounds = array<i64: 9, 128, 128>}, {transform_indices = @transform_2, window_bounds = array<i64: 1, 24, 128>}]} {
    %cst = arith.constant 0.000000e+00 : f32
    %0 = vector.broadcast %cst : f32 to vector<24x128xf32>
    %c0 = arith.constant 0 : index
    %c0_0 = arith.constant 0 : index
    %c0_1 = arith.constant 0 : index
    %1 = vector.load %arg2[%c0, %c0_0, %c0_1] : memref<1x42x128xbf16, #tpu.memory_space<vmem>>, vector<1x24x128xbf16>
    %2 = vector.shape_cast %1 : vector<1x24x128xbf16> to vector<24x128xbf16>
    %c0_2 = arith.constant 0 : index
    %c0_3 = arith.constant 0 : index
    %c0_4 = arith.constant 0 : index
    %3 = vector.load %arg3[%c0_2, %c0_3, %c0_4] : memref<9x128x128xbf16, #tpu.memory_space<vmem>>, vector<1x128x128xbf16>
    %4 = vector.shape_cast %3 : vector<1x128x128xbf16> to vector<128x128xbf16>
    %cst_5 = arith.constant dense<0.000000e+00> : vector<24x128xf32>
    %5 = tpu.matmul %2, %4, %cst_5 {dimension_numbers = #tpu.dot_dimension_numbers<[1], [0], [0], [1], [0, 0, 1, 1], [], []>} : vector<24x128xbf16>, vector<128x128xbf16>, vector<24x128xf32> -> vector<24x128xf32>
    %6 = arith.addf %0, %5 : vector<24x128xf32>
    %c0_6 = arith.constant 0 : index
    %c1 = arith.constant 1 : index
    %c0_7 = arith.constant 0 : index
    %7 = vector.load %arg2[%c0_6, %c1, %c0_7] : memref<1x42x128xbf16, #tpu.memory_space<vmem>>, vector<1x24x128xbf16>
    %8 = vector.shape_cast %7 : vector<1x24x128xbf16> to vector<24x128xbf16>
    %c1_8 = arith.constant 1 : index
    %c0_9 = arith.constant 0 : index
    %c0_10 = arith.constant 0 : index
    %9 = vector.load %arg3[%c1_8, %c0_9, %c0_10] : memref<9x128x128xbf16, #tpu.memory_space<vmem>>, vector<1x128x128xbf16>
    %10 = vector.shape_cast %9 : vector<1x128x128xbf16> to vector<128x128xbf16>
    %cst_11 = arith.constant dense<0.000000e+00> : vector<24x128xf32>
    %11 = tpu.matmul %8, %10, %cst_11 {dimension_numbers = #tpu.dot_dimension_numbers<[1], [0], [0], [1], [0, 0, 1, 1], [], []>} : vector<24x128xbf16>, vector<128x128xbf16>, vector<24x128xf32> -> vector<24x128xf32>
    %12 = arith.addf %6, %11 : vector<24x128xf32>
    %c0_12 = arith.constant 0 : index
    %c2 = arith.constant 2 : index
    %c0_13 = arith.constant 0 : index
    %13 = vector.load %arg2[%c0_12, %c2, %c0_13] : memref<1x42x128xbf16, #tpu.memory_space<vmem>>, vector<1x24x128xbf16>
    %14 = vector.shape_cast %13 : vector<1x24x128xbf16> to vector<24x128xbf16>
    %c2_14 = arith.constant 2 : index
    %c0_15 = arith.constant 0 : index
    %c0_16 = arith.constant 0 : index
    %15 = vector.load %arg3[%c2_14, %c0_15, %c0_16] : memref<9x128x128xbf16, #tpu.memory_space<vmem>>, vector<1x128x128xbf16>
    %16 = vector.shape_cast %15 : vector<1x128x128xbf16> to vector<128x128xbf16>
    %cst_17 = arith.constant dense<0.000000e+00> : vector<24x128xf32>
    %17 = tpu.matmul %14, %16, %cst_17 {dimension_numbers = #tpu.dot_dimension_numbers<[1], [0], [0], [1], [0, 0, 1, 1], [], []>} : vector<24x128xbf16>, vector<128x128xbf16>, vector<24x128xf32> -> vector<24x128xf32>
    %18 = arith.addf %12, %17 : vector<24x128xf32>
    %c0_18 = arith.constant 0 : index
    %c6 = arith.constant 6 : index
    %c0_19 = arith.constant 0 : index
    %19 = vector.load %arg2[%c0_18, %c6, %c0_19] : memref<1x42x128xbf16, #tpu.memory_space<vmem>>, vector<1x24x128xbf16>
    %20 = vector.shape_cast %19 : vector<1x24x128xbf16> to vector<24x128xbf16>
    %c3 = arith.constant 3 : index
    %c0_20 = arith.constant 0 : index
    %c0_21 = arith.constant 0 : index
    %21 = vector.load %arg3[%c3, %c0_20, %c0_21] : memref<9x128x128xbf16, #tpu.memory_space<vmem>>, vector<1x128x128xbf16>
    %22 = vector.shape_cast %21 : vector<1x128x128xbf16> to vector<128x128xbf16>
    %cst_22 = arith.constant dense<0.000000e+00> : vector<24x128xf32>
    %23 = tpu.matmul %20, %22, %cst_22 {dimension_numbers = #tpu.dot_dimension_numbers<[1], [0], [0], [1], [0, 0, 1, 1], [], []>} : vector<24x128xbf16>, vector<128x128xbf16>, vector<24x128xf32> -> vector<24x128xf32>
    %24 = arith.addf %18, %23 : vector<24x128xf32>
    %c0_23 = arith.constant 0 : index
    %c7 = arith.constant 7 : index
    %c0_24 = arith.constant 0 : index
    %25 = vector.load %arg2[%c0_23, %c7, %c0_24] : memref<1x42x128xbf16, #tpu.memory_space<vmem>>, vector<1x24x128xbf16>
    %26 = vector.shape_cast %25 : vector<1x24x128xbf16> to vector<24x128xbf16>
    %c4 = arith.constant 4 : index
    %c0_25 = arith.constant 0 : index
    %c0_26 = arith.constant 0 : index
    %27 = vector.load %arg3[%c4, %c0_25, %c0_26] : memref<9x128x128xbf16, #tpu.memory_space<vmem>>, vector<1x128x128xbf16>
    %28 = vector.shape_cast %27 : vector<1x128x128xbf16> to vector<128x128xbf16>
    %cst_27 = arith.constant dense<0.000000e+00> : vector<24x128xf32>
    %29 = tpu.matmul %26, %28, %cst_27 {dimension_numbers = #tpu.dot_dimension_numbers<[1], [0], [0], [1], [0, 0, 1, 1], [], []>} : vector<24x128xbf16>, vector<128x128xbf16>, vector<24x128xf32> -> vector<24x128xf32>
    %30 = arith.addf %24, %29 : vector<24x128xf32>
    %c0_28 = arith.constant 0 : index
    %c8 = arith.constant 8 : index
    %c0_29 = arith.constant 0 : index
    %31 = vector.load %arg2[%c0_28, %c8, %c0_29] : memref<1x42x128xbf16, #tpu.memory_space<vmem>>, vector<1x24x128xbf16>
    %32 = vector.shape_cast %31 : vector<1x24x128xbf16> to vector<24x128xbf16>
    %c5 = arith.constant 5 : index
    %c0_30 = arith.constant 0 : index
    %c0_31 = arith.constant 0 : index
    %33 = vector.load %arg3[%c5, %c0_30, %c0_31] : memref<9x128x128xbf16, #tpu.memory_space<vmem>>, vector<1x128x128xbf16>
    %34 = vector.shape_cast %33 : vector<1x128x128xbf16> to vector<128x128xbf16>
    %cst_32 = arith.constant dense<0.000000e+00> : vector<24x128xf32>
    %35 = tpu.matmul %32, %34, %cst_32 {dimension_numbers = #tpu.dot_dimension_numbers<[1], [0], [0], [1], [0, 0, 1, 1], [], []>} : vector<24x128xbf16>, vector<128x128xbf16>, vector<24x128xf32> -> vector<24x128xf32>
    %36 = arith.addf %30, %35 : vector<24x128xf32>
    %c0_33 = arith.constant 0 : index
    %c12 = arith.constant 12 : index
    %c0_34 = arith.constant 0 : index
    %37 = vector.load %arg2[%c0_33, %c12, %c0_34] : memref<1x42x128xbf16, #tpu.memory_space<vmem>>, vector<1x24x128xbf16>
    %38 = vector.shape_cast %37 : vector<1x24x128xbf16> to vector<24x128xbf16>
    %c6_35 = arith.constant 6 : index
    %c0_36 = arith.constant 0 : index
    %c0_37 = arith.constant 0 : index
    %39 = vector.load %arg3[%c6_35, %c0_36, %c0_37] : memref<9x128x128xbf16, #tpu.memory_space<vmem>>, vector<1x128x128xbf16>
    %40 = vector.shape_cast %39 : vector<1x128x128xbf16> to vector<128x128xbf16>
    %cst_38 = arith.constant dense<0.000000e+00> : vector<24x128xf32>
    %41 = tpu.matmul %38, %40, %cst_38 {dimension_numbers = #tpu.dot_dimension_numbers<[1], [0], [0], [1], [0, 0, 1, 1], [], []>} : vector<24x128xbf16>, vector<128x128xbf16>, vector<24x128xf32> -> vector<24x128xf32>
    %42 = arith.addf %36, %41 : vector<24x128xf32>
    %c0_39 = arith.constant 0 : index
    %c13 = arith.constant 13 : index
    %c0_40 = arith.constant 0 : index
    %43 = vector.load %arg2[%c0_39, %c13, %c0_40] : memref<1x42x128xbf16, #tpu.memory_space<vmem>>, vector<1x24x128xbf16>
    %44 = vector.shape_cast %43 : vector<1x24x128xbf16> to vector<24x128xbf16>
    %c7_41 = arith.constant 7 : index
    %c0_42 = arith.constant 0 : index
    %c0_43 = arith.constant 0 : index
    %45 = vector.load %arg3[%c7_41, %c0_42, %c0_43] : memref<9x128x128xbf16, #tpu.memory_space<vmem>>, vector<1x128x128xbf16>
    %46 = vector.shape_cast %45 : vector<1x128x128xbf16> to vector<128x128xbf16>
    %cst_44 = arith.constant dense<0.000000e+00> : vector<24x128xf32>
    %47 = tpu.matmul %44, %46, %cst_44 {dimension_numbers = #tpu.dot_dimension_numbers<[1], [0], [0], [1], [0, 0, 1, 1], [], []>} : vector<24x128xbf16>, vector<128x128xbf16>, vector<24x128xf32> -> vector<24x128xf32>
    %48 = arith.addf %42, %47 : vector<24x128xf32>
    %c0_45 = arith.constant 0 : index
    %c14 = arith.constant 14 : index
    %c0_46 = arith.constant 0 : index
    %49 = vector.load %arg2[%c0_45, %c14, %c0_46] : memref<1x42x128xbf16, #tpu.memory_space<vmem>>, vector<1x24x128xbf16>
    %50 = vector.shape_cast %49 : vector<1x24x128xbf16> to vector<24x128xbf16>
    %c8_47 = arith.constant 8 : index
    %c0_48 = arith.constant 0 : index
    %c0_49 = arith.constant 0 : index
    %51 = vector.load %arg3[%c8_47, %c0_48, %c0_49] : memref<9x128x128xbf16, #tpu.memory_space<vmem>>, vector<1x128x128xbf16>
    %52 = vector.shape_cast %51 : vector<1x128x128xbf16> to vector<128x128xbf16>
    %cst_50 = arith.constant dense<0.000000e+00> : vector<24x128xf32>
    %53 = tpu.matmul %50, %52, %cst_50 {dimension_numbers = #tpu.dot_dimension_numbers<[1], [0], [0], [1], [0, 0, 1, 1], [], []>} : vector<24x128xbf16>, vector<128x128xbf16>, vector<24x128xf32> -> vector<24x128xf32>
    %54 = arith.addf %48, %53 : vector<24x128xf32>
    %55 = arith.truncf %54 : vector<24x128xf32> to vector<24x128xbf16>
    %c0_51 = arith.constant 0 : index
    %c0_52 = arith.constant 0 : index
    %c0_53 = arith.constant 0 : index
    %56 = vector.load %arg4[%c0_51, %c0_52, %c0_53] : memref<1x24x128xbf16, #tpu.memory_space<vmem>>, vector<1x24x128xbf16>
    %57 = vector.shape_cast %56 : vector<1x24x128xbf16> to vector<24x128xbf16>
    %58 = vector.shape_cast %55 : vector<24x128xbf16> to vector<1x24x128xbf16>
    tpu.vector_store %arg4[%c0_51, %c0_52, %c0_53], %58 {strides = array<i32>} : memref<1x24x128xbf16, #tpu.memory_space<vmem>>, vector<1x24x128xbf16>,
    return
  }
  func.func @transform_0(%arg0: i32, %arg1: i32) -> (i32, i32, i32) {
    %c0_i32 = arith.constant 0 : i32
    %c0_i32_0 = arith.constant 0 : i32
    %c0_i32_1 = arith.constant 0 : i32
    return %arg0, %c0_i32, %c0_i32_0 : i32, i32, i32
  }
  func.func @transform_1(%arg0: i32, %arg1: i32) -> (i32, i32, i32) {
    %c0_i32 = arith.constant 0 : i32
    %c0_i32_0 = arith.constant 0 : i32
    %c0_i32_1 = arith.constant 0 : i32
    return %c0_i32, %c0_i32_0, %arg1 : i32, i32, i32
  }
  func.func @transform_2(%arg0: i32, %arg1: i32) -> (i32, i32, i32) {
    %c0_i32 = arith.constant 0 : i32
    %c0_i32_0 = arith.constant 0 : i32
    return %arg0, %c0_i32, %arg1 : i32, i32, i32
  }
}

module attributes {stable_mosaic.version = 11 : i64} {
  func.func @kernel(%arg0: i32, %arg1: i32, %arg2: i32, %arg3: memref<32x128xbf16, #tpu.memory_space<vmem>>, %arg4: memref<128x128xbf16, #tpu.memory_space<vmem>>, %arg5: memref<1x128xf32, #tpu.memory_space<vmem>>, %arg6: memref<1x128xf32, #tpu.memory_space<vmem>>, %arg7: memref<32x128xbf16, #tpu.memory_space<vmem>>, %arg8: memref<32x128xf32, #tpu.memory_space<vmem>>) attributes {dimension_semantics = [#tpu.dimension_semantics<parallel>, #tpu.dimension_semantics<parallel>, #tpu.dimension_semantics<arbitrary>], iteration_bounds = array<i64: 1, 1, 1>, scalar_prefetch = 0 : i64, scratch_operands = 1 : i64, tpu.core_type = #tpu.core_type<tc>, window_params = [{transform_indices = @transform_0, window_bounds = array<i64: 32, 128>}, {transform_indices = @transform_1, window_bounds = array<i64: 128, 128>}, {transform_indices = @transform_2, window_bounds = array<i64: 1, 128>}, {transform_indices = @transform_3, window_bounds = array<i64: 1, 128>}, {transform_indices = @transform_4, window_bounds = array<i64: 32, 128>}]} {
    %c0_i32 = arith.constant 0 : i32
    %0 = arith.cmpi eq, %arg2, %c0_i32 : i32
    %1 = arith.extui %0 : i1 to i32
    %c0_i32_0 = arith.constant 0 : i32
    %2 = arith.cmpi ne, %1, %c0_i32_0 : i32
    scf.if %2 {
      %cst_15 = arith.constant 0.000000e+00 : f32
      %22 = vector.broadcast %cst_15 : f32 to vector<32x128xf32>
      %c0_16 = arith.constant 0 : index
      %c0_17 = arith.constant 0 : index
      %23 = vector.load %arg8[%c0_16, %c0_17] : memref<32x128xf32, #tpu.memory_space<vmem>>, vector<32x128xf32>
      tpu.vector_store %arg8[%c0_16, %c0_17], %22 {strides = array<i32>} : memref<32x128xf32, #tpu.memory_space<vmem>>, vector<32x128xf32>,
    } else {
    }
    %c0 = arith.constant 0 : index
    %c0_1 = arith.constant 0 : index
    %3 = vector.load %arg3[%c0, %c0_1] : memref<32x128xbf16, #tpu.memory_space<vmem>>, vector<32x128xbf16>
    %4 = arith.extf %3 : vector<32x128xbf16> to vector<32x128xf32>
    %c0_2 = arith.constant 0 : index
    %c0_3 = arith.constant 0 : index
    %5 = vector.load %arg5[%c0_2, %c0_3] : memref<1x128xf32, #tpu.memory_space<vmem>>, vector<1x128xf32>
    %6 = vector.broadcast %5 : vector<1x128xf32> to vector<32x128xf32>
    %7 = arith.mulf %4, %6 : vector<32x128xf32>
    %c0_4 = arith.constant 0 : index
    %c0_5 = arith.constant 0 : index
    %8 = vector.load %arg6[%c0_4, %c0_5] : memref<1x128xf32, #tpu.memory_space<vmem>>, vector<1x128xf32>
    %9 = vector.broadcast %8 : vector<1x128xf32> to vector<32x128xf32>
    %10 = arith.addf %7, %9 : vector<32x128xf32>
    %cst = arith.constant 0.000000e+00 : f32
    %11 = vector.broadcast %cst : f32 to vector<32x128xf32>
    %12 = arith.maximumf %10, %11 : vector<32x128xf32>
    %13 = arith.truncf %12 : vector<32x128xf32> to vector<32x128xbf16>
    %c0_6 = arith.constant 0 : index
    %c0_7 = arith.constant 0 : index
    %14 = vector.load %arg8[%c0_6, %c0_7] : memref<32x128xf32, #tpu.memory_space<vmem>>, vector<32x128xf32>
    %c0_8 = arith.constant 0 : index
    %c0_9 = arith.constant 0 : index
    %15 = vector.load %arg4[%c0_8, %c0_9] : memref<128x128xbf16, #tpu.memory_space<vmem>>, vector<128x128xbf16>
    %cst_10 = arith.constant dense<0.000000e+00> : vector<32x128xf32>
    %16 = tpu.matmul %13, %15, %cst_10 {dimension_numbers = #tpu.dot_dimension_numbers<[1], [0], [0], [1], [0, 0, 1, 1], [], []>} : vector<32x128xbf16>, vector<128x128xbf16>, vector<32x128xf32> -> vector<32x128xf32>
    %17 = arith.addf %14, %16 : vector<32x128xf32>
    %c0_11 = arith.constant 0 : index
    %c0_12 = arith.constant 0 : index
    %18 = vector.load %arg8[%c0_11, %c0_12] : memref<32x128xf32, #tpu.memory_space<vmem>>, vector<32x128xf32>
    tpu.vector_store %arg8[%c0_11, %c0_12], %17 {strides = array<i32>} : memref<32x128xf32, #tpu.memory_space<vmem>>, vector<32x128xf32>,
    %c0_i32_13 = arith.constant 0 : i32
    %19 = arith.cmpi eq, %arg2, %c0_i32_13 : i32
    %20 = arith.extui %19 : i1 to i32
    %c0_i32_14 = arith.constant 0 : i32
    %21 = arith.cmpi ne, %20, %c0_i32_14 : i32
    scf.if %21 {
      %c0_15 = arith.constant 0 : index
      %c0_16 = arith.constant 0 : index
      %22 = vector.load %arg8[%c0_15, %c0_16] : memref<32x128xf32, #tpu.memory_space<vmem>>, vector<32x128xf32>
      %23 = arith.truncf %22 : vector<32x128xf32> to vector<32x128xbf16>
      %c0_17 = arith.constant 0 : index
      %c0_18 = arith.constant 0 : index
      %24 = vector.load %arg7[%c0_17, %c0_18] : memref<32x128xbf16, #tpu.memory_space<vmem>>, vector<32x128xbf16>
      tpu.vector_store %arg7[%c0_17, %c0_18], %23 {strides = array<i32>} : memref<32x128xbf16, #tpu.memory_space<vmem>>, vector<32x128xbf16>,
    } else {
    }
    return
  }
  func.func @transform_0(%arg0: i32, %arg1: i32, %arg2: i32) -> (i32, i32) {
    %c0_i32 = arith.constant 0 : i32
    return %arg0, %arg2 : i32, i32
  }
  func.func @transform_1(%arg0: i32, %arg1: i32, %arg2: i32) -> (i32, i32) {
    %c0_i32 = arith.constant 0 : i32
    return %arg2, %arg1 : i32, i32
  }
  func.func @transform_2(%arg0: i32, %arg1: i32, %arg2: i32) -> (i32, i32) {
    %c0_i32 = arith.constant 0 : i32
    %c0_i32_0 = arith.constant 0 : i32
    return %c0_i32, %arg2 : i32, i32
  }
  func.func @transform_3(%arg0: i32, %arg1: i32, %arg2: i32) -> (i32, i32) {
    %c0_i32 = arith.constant 0 : i32
    %c0_i32_0 = arith.constant 0 : i32
    return %c0_i32, %arg2 : i32, i32
  }
  func.func @transform_4(%arg0: i32, %arg1: i32, %arg2: i32) -> (i32, i32) {
    %c0_i32 = arith.constant 0 : i32
    return %arg0, %arg1 : i32, i32
  }
}

module attributes {stable_mosaic.version = 11 : i64} {
  func.func @_avgpool_kernel(%arg0: i32, %arg1: memref<2x2x2x256xbf16, #tpu.memory_space<vmem>>, %arg2: memref<1x2x2x128xbf16, #tpu.memory_space<vmem>>) attributes {dimension_semantics = [#tpu.dimension_semantics<parallel>], iteration_bounds = array<i64: 2>, scalar_prefetch = 0 : i64, scratch_operands = 0 : i64, tpu.core_type = #tpu.core_type<tc>, window_params = [{transform_indices = @transform_0, window_bounds = array<i64: 2, 2, 2, 256>}, {transform_indices = @transform_1, window_bounds = array<i64: 1, 2, 2, 128>}]} {
    %c0 = arith.constant 0 : index
    %c0_0 = arith.constant 0 : index
    %c0_1 = arith.constant 0 : index
    %c0_2 = arith.constant 0 : index
    %0 = vector.load %arg1[%c0, %c0_0, %c0_1, %c0_2] : memref<2x2x2x256xbf16, #tpu.memory_space<vmem>>, vector<2x1x2x256xbf16>
    %1 = vector.shape_cast %0 : vector<2x1x2x256xbf16> to vector<2x2x256xbf16>
    %2 = arith.extf %1 : vector<2x2x256xbf16> to vector<2x2x256xf32>
    %c0_3 = arith.constant 0 : index
    %c1 = arith.constant 1 : index
    %c0_4 = arith.constant 0 : index
    %c0_5 = arith.constant 0 : index
    %3 = vector.load %arg1[%c0_3, %c1, %c0_4, %c0_5] : memref<2x2x2x256xbf16, #tpu.memory_space<vmem>>, vector<2x1x2x256xbf16>
    %4 = vector.shape_cast %3 : vector<2x1x2x256xbf16> to vector<2x2x256xbf16>
    %5 = arith.extf %4 : vector<2x2x256xbf16> to vector<2x2x256xf32>
    %6 = arith.addf %2, %5 : vector<2x2x256xf32>
    %7 = vector.extract_strided_slice %6 {offsets = [0, 0, 0], sizes = [2, 2, 128], strides = [1, 1, 1]} : vector<2x2x256xf32> to vector<2x2x128xf32>
    %8 = vector.extract_strided_slice %6 {offsets = [0, 0, 128], sizes = [2, 2, 128], strides = [1, 1, 1]} : vector<2x2x256xf32> to vector<2x2x128xf32>
    %9 = arith.addf %7, %8 : vector<2x2x128xf32>
    %cst = arith.constant 2.500000e-01 : f32
    %10 = vector.broadcast %cst : f32 to vector<2x2x128xf32>
    %11 = arith.mulf %9, %10 : vector<2x2x128xf32>
    %12 = arith.truncf %11 : vector<2x2x128xf32> to vector<2x2x128xbf16>
    %c0_6 = arith.constant 0 : index
    %c0_7 = arith.constant 0 : index
    %c0_8 = arith.constant 0 : index
    %c0_9 = arith.constant 0 : index
    %13 = vector.load %arg2[%c0_6, %c0_7, %c0_8, %c0_9] : memref<1x2x2x128xbf16, #tpu.memory_space<vmem>>, vector<1x2x2x128xbf16>
    %14 = vector.shape_cast %13 : vector<1x2x2x128xbf16> to vector<2x2x128xbf16>
    %15 = vector.shape_cast %12 : vector<2x2x128xbf16> to vector<1x2x2x128xbf16>
    tpu.vector_store %arg2[%c0_6, %c0_7, %c0_8, %c0_9], %15 {strides = array<i32>} : memref<1x2x2x128xbf16, #tpu.memory_space<vmem>>, vector<1x2x2x128xbf16>,
    return
  }
  func.func @transform_0(%arg0: i32) -> (i32, i32, i32, i32) {
    %c0_i32 = arith.constant 0 : i32
    %c0_i32_0 = arith.constant 0 : i32
    %c0_i32_1 = arith.constant 0 : i32
    %c0_i32_2 = arith.constant 0 : i32
    return %arg0, %c0_i32, %c0_i32_0, %c0_i32_1 : i32, i32, i32, i32
  }
  func.func @transform_1(%arg0: i32) -> (i32, i32, i32, i32) {
    %c0_i32 = arith.constant 0 : i32
    %c0_i32_0 = arith.constant 0 : i32
    %c0_i32_1 = arith.constant 0 : i32
    %c0_i32_2 = arith.constant 0 : i32
    return %arg0, %c0_i32, %c0_i32_0, %c0_i32_1 : i32, i32, i32, i32
  }
}

module attributes {stable_mosaic.version = 11 : i64} {
  func.func @kernel(%arg0: i32, %arg1: i32, %arg2: i32, %arg3: memref<8x128xbf16, #tpu.memory_space<vmem>>, %arg4: memref<128x128xbf16, #tpu.memory_space<vmem>>, %arg5: memref<1x128xf32, #tpu.memory_space<vmem>>, %arg6: memref<1x128xf32, #tpu.memory_space<vmem>>, %arg7: memref<1x128xf32, #tpu.memory_space<vmem>>, %arg8: memref<1x128xf32, #tpu.memory_space<vmem>>, %arg9: memref<8x128xbf16, #tpu.memory_space<vmem>>, %arg10: memref<8x128xf32, #tpu.memory_space<vmem>>) attributes {dimension_semantics = [#tpu.dimension_semantics<parallel>, #tpu.dimension_semantics<parallel>, #tpu.dimension_semantics<arbitrary>], iteration_bounds = array<i64: 1, 1, 1>, scalar_prefetch = 0 : i64, scratch_operands = 1 : i64, tpu.core_type = #tpu.core_type<tc>, window_params = [{transform_indices = @transform_0, window_bounds = array<i64: 8, 128>}, {transform_indices = @transform_1, window_bounds = array<i64: 128, 128>}, {transform_indices = @transform_2, window_bounds = array<i64: 1, 128>}, {transform_indices = @transform_3, window_bounds = array<i64: 1, 128>}, {transform_indices = @transform_4, window_bounds = array<i64: 1, 128>}, {transform_indices = @transform_5, window_bounds = array<i64: 1, 128>}, {transform_indices = @transform_6, window_bounds = array<i64: 8, 128>}]} {
    %c0_i32 = arith.constant 0 : i32
    %0 = arith.cmpi eq, %arg2, %c0_i32 : i32
    %1 = arith.extui %0 : i1 to i32
    %c0_i32_0 = arith.constant 0 : i32
    %2 = arith.cmpi ne, %1, %c0_i32_0 : i32
    scf.if %2 {
      %cst_15 = arith.constant 0.000000e+00 : f32
      %22 = vector.broadcast %cst_15 : f32 to vector<8x128xf32>
      %c0_16 = arith.constant 0 : index
      %c0_17 = arith.constant 0 : index
      %23 = vector.load %arg10[%c0_16, %c0_17] : memref<8x128xf32, #tpu.memory_space<vmem>>, vector<8x128xf32>
      tpu.vector_store %arg10[%c0_16, %c0_17], %22 {strides = array<i32>} : memref<8x128xf32, #tpu.memory_space<vmem>>, vector<8x128xf32>,
    } else {
    }
    %c0 = arith.constant 0 : index
    %c0_1 = arith.constant 0 : index
    %3 = vector.load %arg3[%c0, %c0_1] : memref<8x128xbf16, #tpu.memory_space<vmem>>, vector<8x128xbf16>
    %4 = arith.extf %3 : vector<8x128xbf16> to vector<8x128xf32>
    %c0_2 = arith.constant 0 : index
    %c0_3 = arith.constant 0 : index
    %5 = vector.load %arg5[%c0_2, %c0_3] : memref<1x128xf32, #tpu.memory_space<vmem>>, vector<1x128xf32>
    %6 = vector.broadcast %5 : vector<1x128xf32> to vector<8x128xf32>
    %7 = arith.mulf %4, %6 : vector<8x128xf32>
    %c0_4 = arith.constant 0 : index
    %c0_5 = arith.constant 0 : index
    %8 = vector.load %arg6[%c0_4, %c0_5] : memref<1x128xf32, #tpu.memory_space<vmem>>, vector<1x128xf32>
    %9 = vector.broadcast %8 : vector<1x128xf32> to vector<8x128xf32>
    %10 = arith.addf %7, %9 : vector<8x128xf32>
    %cst = arith.constant 0.000000e+00 : f32
    %11 = vector.broadcast %cst : f32 to vector<8x128xf32>
    %12 = arith.maximumf %10, %11 : vector<8x128xf32>
    %13 = arith.truncf %12 : vector<8x128xf32> to vector<8x128xbf16>
    %c0_6 = arith.constant 0 : index
    %c0_7 = arith.constant 0 : index
    %14 = vector.load %arg10[%c0_6, %c0_7] : memref<8x128xf32, #tpu.memory_space<vmem>>, vector<8x128xf32>
    %c0_8 = arith.constant 0 : index
    %c0_9 = arith.constant 0 : index
    %15 = vector.load %arg4[%c0_8, %c0_9] : memref<128x128xbf16, #tpu.memory_space<vmem>>, vector<128x128xbf16>
    %cst_10 = arith.constant dense<0.000000e+00> : vector<8x128xf32>
    %16 = tpu.matmul %13, %15, %cst_10 {dimension_numbers = #tpu.dot_dimension_numbers<[1], [0], [0], [1], [0, 0, 1, 1], [], []>} : vector<8x128xbf16>, vector<128x128xbf16>, vector<8x128xf32> -> vector<8x128xf32>
    %17 = arith.addf %14, %16 : vector<8x128xf32>
    %c0_11 = arith.constant 0 : index
    %c0_12 = arith.constant 0 : index
    %18 = vector.load %arg10[%c0_11, %c0_12] : memref<8x128xf32, #tpu.memory_space<vmem>>, vector<8x128xf32>
    tpu.vector_store %arg10[%c0_11, %c0_12], %17 {strides = array<i32>} : memref<8x128xf32, #tpu.memory_space<vmem>>, vector<8x128xf32>,
    %c0_i32_13 = arith.constant 0 : i32
    %19 = arith.cmpi eq, %arg2, %c0_i32_13 : i32
    %20 = arith.extui %19 : i1 to i32
    %c0_i32_14 = arith.constant 0 : i32
    %21 = arith.cmpi ne, %20, %c0_i32_14 : i32
    scf.if %21 {
      %c0_15 = arith.constant 0 : index
      %c0_16 = arith.constant 0 : index
      %22 = vector.load %arg10[%c0_15, %c0_16] : memref<8x128xf32, #tpu.memory_space<vmem>>, vector<8x128xf32>
      %c0_17 = arith.constant 0 : index
      %c0_18 = arith.constant 0 : index
      %23 = vector.load %arg7[%c0_17, %c0_18] : memref<1x128xf32, #tpu.memory_space<vmem>>, vector<1x128xf32>
      %24 = vector.broadcast %23 : vector<1x128xf32> to vector<8x128xf32>
      %25 = arith.mulf %22, %24 : vector<8x128xf32>
      %c0_19 = arith.constant 0 : index
      %c0_20 = arith.constant 0 : index
      %26 = vector.load %arg8[%c0_19, %c0_20] : memref<1x128xf32, #tpu.memory_space<vmem>>, vector<1x128xf32>
      %27 = vector.broadcast %26 : vector<1x128xf32> to vector<8x128xf32>
      %28 = arith.addf %25, %27 : vector<8x128xf32>
      %cst_21 = arith.constant 0.000000e+00 : f32
      %29 = vector.broadcast %cst_21 : f32 to vector<8x128xf32>
      %30 = arith.maximumf %28, %29 : vector<8x128xf32>
      %31 = arith.truncf %30 : vector<8x128xf32> to vector<8x128xbf16>
      %c0_22 = arith.constant 0 : index
      %c0_23 = arith.constant 0 : index
      %32 = vector.load %arg9[%c0_22, %c0_23] : memref<8x128xbf16, #tpu.memory_space<vmem>>, vector<8x128xbf16>
      tpu.vector_store %arg9[%c0_22, %c0_23], %31 {strides = array<i32>} : memref<8x128xbf16, #tpu.memory_space<vmem>>, vector<8x128xbf16>,
    } else {
    }
    return
  }
  func.func @transform_0(%arg0: i32, %arg1: i32, %arg2: i32) -> (i32, i32) {
    %c0_i32 = arith.constant 0 : i32
    return %arg0, %arg2 : i32, i32
  }
  func.func @transform_1(%arg0: i32, %arg1: i32, %arg2: i32) -> (i32, i32) {
    %c0_i32 = arith.constant 0 : i32
    return %arg2, %arg1 : i32, i32
  }
  func.func @transform_2(%arg0: i32, %arg1: i32, %arg2: i32) -> (i32, i32) {
    %c0_i32 = arith.constant 0 : i32
    %c0_i32_0 = arith.constant 0 : i32
    return %c0_i32, %arg2 : i32, i32
  }
  func.func @transform_3(%arg0: i32, %arg1: i32, %arg2: i32) -> (i32, i32) {
    %c0_i32 = arith.constant 0 : i32
    %c0_i32_0 = arith.constant 0 : i32
    return %c0_i32, %arg2 : i32, i32
  }
  func.func @transform_4(%arg0: i32, %arg1: i32, %arg2: i32) -> (i32, i32) {
    %c0_i32 = arith.constant 0 : i32
    %c0_i32_0 = arith.constant 0 : i32
    return %c0_i32, %arg1 : i32, i32
  }
  func.func @transform_5(%arg0: i32, %arg1: i32, %arg2: i32) -> (i32, i32) {
    %c0_i32 = arith.constant 0 : i32
    %c0_i32_0 = arith.constant 0 : i32
    return %c0_i32, %arg1 : i32, i32
  }
  func.func @transform_6(%arg0: i32, %arg1: i32, %arg2: i32) -> (i32, i32) {
    %c0_i32 = arith.constant 0 : i32
    return %arg0, %arg1 : i32, i32
  }
}

module attributes {stable_mosaic.version = 11 : i64} {
  func.func @kernel(%arg0: i32, %arg1: i32, %arg2: memref<1x20x128xbf16, #tpu.memory_space<vmem>>, %arg3: memref<9x128x128xbf16, #tpu.memory_space<vmem>>, %arg4: memref<1x8x128xbf16, #tpu.memory_space<vmem>>) attributes {dimension_semantics = [#tpu.dimension_semantics<parallel>, #tpu.dimension_semantics<parallel>], iteration_bounds = array<i64: 2, 1>, scalar_prefetch = 0 : i64, scratch_operands = 0 : i64, tpu.core_type = #tpu.core_type<tc>, window_params = [{transform_indices = @transform_0, window_bounds = array<i64: 1, 20, 128>}, {transform_indices = @transform_1, window_bounds = array<i64: 9, 128, 128>}, {transform_indices = @transform_2, window_bounds = array<i64: 1, 8, 128>}]} {
    %cst = arith.constant 0.000000e+00 : f32
    %0 = vector.broadcast %cst : f32 to vector<8x128xf32>
    %c0 = arith.constant 0 : index
    %c0_0 = arith.constant 0 : index
    %c0_1 = arith.constant 0 : index
    %1 = vector.load %arg2[%c0, %c0_0, %c0_1] : memref<1x20x128xbf16, #tpu.memory_space<vmem>>, vector<1x8x128xbf16>
    %2 = vector.shape_cast %1 : vector<1x8x128xbf16> to vector<8x128xbf16>
    %c0_2 = arith.constant 0 : index
    %c0_3 = arith.constant 0 : index
    %c0_4 = arith.constant 0 : index
    %3 = vector.load %arg3[%c0_2, %c0_3, %c0_4] : memref<9x128x128xbf16, #tpu.memory_space<vmem>>, vector<1x128x128xbf16>
    %4 = vector.shape_cast %3 : vector<1x128x128xbf16> to vector<128x128xbf16>
    %cst_5 = arith.constant dense<0.000000e+00> : vector<8x128xf32>
    %5 = tpu.matmul %2, %4, %cst_5 {dimension_numbers = #tpu.dot_dimension_numbers<[1], [0], [0], [1], [0, 0, 1, 1], [], []>} : vector<8x128xbf16>, vector<128x128xbf16>, vector<8x128xf32> -> vector<8x128xf32>
    %6 = arith.addf %0, %5 : vector<8x128xf32>
    %c0_6 = arith.constant 0 : index
    %c1 = arith.constant 1 : index
    %c0_7 = arith.constant 0 : index
    %7 = vector.load %arg2[%c0_6, %c1, %c0_7] : memref<1x20x128xbf16, #tpu.memory_space<vmem>>, vector<1x8x128xbf16>
    %8 = vector.shape_cast %7 : vector<1x8x128xbf16> to vector<8x128xbf16>
    %c1_8 = arith.constant 1 : index
    %c0_9 = arith.constant 0 : index
    %c0_10 = arith.constant 0 : index
    %9 = vector.load %arg3[%c1_8, %c0_9, %c0_10] : memref<9x128x128xbf16, #tpu.memory_space<vmem>>, vector<1x128x128xbf16>
    %10 = vector.shape_cast %9 : vector<1x128x128xbf16> to vector<128x128xbf16>
    %cst_11 = arith.constant dense<0.000000e+00> : vector<8x128xf32>
    %11 = tpu.matmul %8, %10, %cst_11 {dimension_numbers = #tpu.dot_dimension_numbers<[1], [0], [0], [1], [0, 0, 1, 1], [], []>} : vector<8x128xbf16>, vector<128x128xbf16>, vector<8x128xf32> -> vector<8x128xf32>
    %12 = arith.addf %6, %11 : vector<8x128xf32>
    %c0_12 = arith.constant 0 : index
    %c2 = arith.constant 2 : index
    %c0_13 = arith.constant 0 : index
    %13 = vector.load %arg2[%c0_12, %c2, %c0_13] : memref<1x20x128xbf16, #tpu.memory_space<vmem>>, vector<1x8x128xbf16>
    %14 = vector.shape_cast %13 : vector<1x8x128xbf16> to vector<8x128xbf16>
    %c2_14 = arith.constant 2 : index
    %c0_15 = arith.constant 0 : index
    %c0_16 = arith.constant 0 : index
    %15 = vector.load %arg3[%c2_14, %c0_15, %c0_16] : memref<9x128x128xbf16, #tpu.memory_space<vmem>>, vector<1x128x128xbf16>
    %16 = vector.shape_cast %15 : vector<1x128x128xbf16> to vector<128x128xbf16>
    %cst_17 = arith.constant dense<0.000000e+00> : vector<8x128xf32>
    %17 = tpu.matmul %14, %16, %cst_17 {dimension_numbers = #tpu.dot_dimension_numbers<[1], [0], [0], [1], [0, 0, 1, 1], [], []>} : vector<8x128xbf16>, vector<128x128xbf16>, vector<8x128xf32> -> vector<8x128xf32>
    %18 = arith.addf %12, %17 : vector<8x128xf32>
    %c0_18 = arith.constant 0 : index
    %c4 = arith.constant 4 : index
    %c0_19 = arith.constant 0 : index
    %19 = vector.load %arg2[%c0_18, %c4, %c0_19] : memref<1x20x128xbf16, #tpu.memory_space<vmem>>, vector<1x8x128xbf16>
    %20 = vector.shape_cast %19 : vector<1x8x128xbf16> to vector<8x128xbf16>
    %c3 = arith.constant 3 : index
    %c0_20 = arith.constant 0 : index
    %c0_21 = arith.constant 0 : index
    %21 = vector.load %arg3[%c3, %c0_20, %c0_21] : memref<9x128x128xbf16, #tpu.memory_space<vmem>>, vector<1x128x128xbf16>
    %22 = vector.shape_cast %21 : vector<1x128x128xbf16> to vector<128x128xbf16>
    %cst_22 = arith.constant dense<0.000000e+00> : vector<8x128xf32>
    %23 = tpu.matmul %20, %22, %cst_22 {dimension_numbers = #tpu.dot_dimension_numbers<[1], [0], [0], [1], [0, 0, 1, 1], [], []>} : vector<8x128xbf16>, vector<128x128xbf16>, vector<8x128xf32> -> vector<8x128xf32>
    %24 = arith.addf %18, %23 : vector<8x128xf32>
    %c0_23 = arith.constant 0 : index
    %c5 = arith.constant 5 : index
    %c0_24 = arith.constant 0 : index
    %25 = vector.load %arg2[%c0_23, %c5, %c0_24] : memref<1x20x128xbf16, #tpu.memory_space<vmem>>, vector<1x8x128xbf16>
    %26 = vector.shape_cast %25 : vector<1x8x128xbf16> to vector<8x128xbf16>
    %c4_25 = arith.constant 4 : index
    %c0_26 = arith.constant 0 : index
    %c0_27 = arith.constant 0 : index
    %27 = vector.load %arg3[%c4_25, %c0_26, %c0_27] : memref<9x128x128xbf16, #tpu.memory_space<vmem>>, vector<1x128x128xbf16>
    %28 = vector.shape_cast %27 : vector<1x128x128xbf16> to vector<128x128xbf16>
    %cst_28 = arith.constant dense<0.000000e+00> : vector<8x128xf32>
    %29 = tpu.matmul %26, %28, %cst_28 {dimension_numbers = #tpu.dot_dimension_numbers<[1], [0], [0], [1], [0, 0, 1, 1], [], []>} : vector<8x128xbf16>, vector<128x128xbf16>, vector<8x128xf32> -> vector<8x128xf32>
    %30 = arith.addf %24, %29 : vector<8x128xf32>
    %c0_29 = arith.constant 0 : index
    %c6 = arith.constant 6 : index
    %c0_30 = arith.constant 0 : index
    %31 = vector.load %arg2[%c0_29, %c6, %c0_30] : memref<1x20x128xbf16, #tpu.memory_space<vmem>>, vector<1x8x128xbf16>
    %32 = vector.shape_cast %31 : vector<1x8x128xbf16> to vector<8x128xbf16>
    %c5_31 = arith.constant 5 : index
    %c0_32 = arith.constant 0 : index
    %c0_33 = arith.constant 0 : index
    %33 = vector.load %arg3[%c5_31, %c0_32, %c0_33] : memref<9x128x128xbf16, #tpu.memory_space<vmem>>, vector<1x128x128xbf16>
    %34 = vector.shape_cast %33 : vector<1x128x128xbf16> to vector<128x128xbf16>
    %cst_34 = arith.constant dense<0.000000e+00> : vector<8x128xf32>
    %35 = tpu.matmul %32, %34, %cst_34 {dimension_numbers = #tpu.dot_dimension_numbers<[1], [0], [0], [1], [0, 0, 1, 1], [], []>} : vector<8x128xbf16>, vector<128x128xbf16>, vector<8x128xf32> -> vector<8x128xf32>
    %36 = arith.addf %30, %35 : vector<8x128xf32>
    %c0_35 = arith.constant 0 : index
    %c8 = arith.constant 8 : index
    %c0_36 = arith.constant 0 : index
    %37 = vector.load %arg2[%c0_35, %c8, %c0_36] : memref<1x20x128xbf16, #tpu.memory_space<vmem>>, vector<1x8x128xbf16>
    %38 = vector.shape_cast %37 : vector<1x8x128xbf16> to vector<8x128xbf16>
    %c6_37 = arith.constant 6 : index
    %c0_38 = arith.constant 0 : index
    %c0_39 = arith.constant 0 : index
    %39 = vector.load %arg3[%c6_37, %c0_38, %c0_39] : memref<9x128x128xbf16, #tpu.memory_space<vmem>>, vector<1x128x128xbf16>
    %40 = vector.shape_cast %39 : vector<1x128x128xbf16> to vector<128x128xbf16>
    %cst_40 = arith.constant dense<0.000000e+00> : vector<8x128xf32>
    %41 = tpu.matmul %38, %40, %cst_40 {dimension_numbers = #tpu.dot_dimension_numbers<[1], [0], [0], [1], [0, 0, 1, 1], [], []>} : vector<8x128xbf16>, vector<128x128xbf16>, vector<8x128xf32> -> vector<8x128xf32>
    %42 = arith.addf %36, %41 : vector<8x128xf32>
    %c0_41 = arith.constant 0 : index
    %c9 = arith.constant 9 : index
    %c0_42 = arith.constant 0 : index
    %43 = vector.load %arg2[%c0_41, %c9, %c0_42] : memref<1x20x128xbf16, #tpu.memory_space<vmem>>, vector<1x8x128xbf16>
    %44 = vector.shape_cast %43 : vector<1x8x128xbf16> to vector<8x128xbf16>
    %c7 = arith.constant 7 : index
    %c0_43 = arith.constant 0 : index
    %c0_44 = arith.constant 0 : index
    %45 = vector.load %arg3[%c7, %c0_43, %c0_44] : memref<9x128x128xbf16, #tpu.memory_space<vmem>>, vector<1x128x128xbf16>
    %46 = vector.shape_cast %45 : vector<1x128x128xbf16> to vector<128x128xbf16>
    %cst_45 = arith.constant dense<0.000000e+00> : vector<8x128xf32>
    %47 = tpu.matmul %44, %46, %cst_45 {dimension_numbers = #tpu.dot_dimension_numbers<[1], [0], [0], [1], [0, 0, 1, 1], [], []>} : vector<8x128xbf16>, vector<128x128xbf16>, vector<8x128xf32> -> vector<8x128xf32>
    %48 = arith.addf %42, %47 : vector<8x128xf32>
    %c0_46 = arith.constant 0 : index
    %c10 = arith.constant 10 : index
    %c0_47 = arith.constant 0 : index
    %49 = vector.load %arg2[%c0_46, %c10, %c0_47] : memref<1x20x128xbf16, #tpu.memory_space<vmem>>, vector<1x8x128xbf16>
    %50 = vector.shape_cast %49 : vector<1x8x128xbf16> to vector<8x128xbf16>
    %c8_48 = arith.constant 8 : index
    %c0_49 = arith.constant 0 : index
    %c0_50 = arith.constant 0 : index
    %51 = vector.load %arg3[%c8_48, %c0_49, %c0_50] : memref<9x128x128xbf16, #tpu.memory_space<vmem>>, vector<1x128x128xbf16>
    %52 = vector.shape_cast %51 : vector<1x128x128xbf16> to vector<128x128xbf16>
    %cst_51 = arith.constant dense<0.000000e+00> : vector<8x128xf32>
    %53 = tpu.matmul %50, %52, %cst_51 {dimension_numbers = #tpu.dot_dimension_numbers<[1], [0], [0], [1], [0, 0, 1, 1], [], []>} : vector<8x128xbf16>, vector<128x128xbf16>, vector<8x128xf32> -> vector<8x128xf32>
    %54 = arith.addf %48, %53 : vector<8x128xf32>
    %55 = arith.truncf %54 : vector<8x128xf32> to vector<8x128xbf16>
    %c0_52 = arith.constant 0 : index
    %c0_53 = arith.constant 0 : index
    %c0_54 = arith.constant 0 : index
    %56 = vector.load %arg4[%c0_52, %c0_53, %c0_54] : memref<1x8x128xbf16, #tpu.memory_space<vmem>>, vector<1x8x128xbf16>
    %57 = vector.shape_cast %56 : vector<1x8x128xbf16> to vector<8x128xbf16>
    %58 = vector.shape_cast %55 : vector<8x128xbf16> to vector<1x8x128xbf16>
    tpu.vector_store %arg4[%c0_52, %c0_53, %c0_54], %58 {strides = array<i32>} : memref<1x8x128xbf16, #tpu.memory_space<vmem>>, vector<1x8x128xbf16>,
    return
  }
  func.func @transform_0(%arg0: i32, %arg1: i32) -> (i32, i32, i32) {
    %c0_i32 = arith.constant 0 : i32
    %c0_i32_0 = arith.constant 0 : i32
    %c0_i32_1 = arith.constant 0 : i32
    return %arg0, %c0_i32, %c0_i32_0 : i32, i32, i32
  }
  func.func @transform_1(%arg0: i32, %arg1: i32) -> (i32, i32, i32) {
    %c0_i32 = arith.constant 0 : i32
    %c0_i32_0 = arith.constant 0 : i32
    %c0_i32_1 = arith.constant 0 : i32
    return %c0_i32, %c0_i32_0, %arg1 : i32, i32, i32
  }
  func.func @transform_2(%arg0: i32, %arg1: i32) -> (i32, i32, i32) {
    %c0_i32 = arith.constant 0 : i32
    %c0_i32_0 = arith.constant 0 : i32
    return %arg0, %c0_i32, %arg1 : i32, i32, i32
  }
}

module attributes {stable_mosaic.version = 11 : i64} {
  func.func @_head_kernel(%arg0: i32, %arg1: memref<2x4x128xbf16, #tpu.memory_space<vmem>>, %arg2: memref<1x1x128xf32, #tpu.memory_space<vmem>>, %arg3: memref<1x1x128xf32, #tpu.memory_space<vmem>>, %arg4: memref<128x128xf32, #tpu.memory_space<vmem>>, %arg5: memref<1x128xf32, #tpu.memory_space<vmem>>, %arg6: memref<2x128xf32, #tpu.memory_space<vmem>>) attributes {dimension_semantics = [#tpu.dimension_semantics<parallel>], iteration_bounds = array<i64: 1>, scalar_prefetch = 0 : i64, scratch_operands = 0 : i64, tpu.core_type = #tpu.core_type<tc>, window_params = [{transform_indices = @transform_0, window_bounds = array<i64: 2, 4, 128>}, {pipeline_mode = #tpu.pipeline_mode<synchronous>, transform_indices = @transform_1, window_bounds = array<i64: 1, 1, 128>}, {pipeline_mode = #tpu.pipeline_mode<synchronous>, transform_indices = @transform_2, window_bounds = array<i64: 1, 1, 128>}, {pipeline_mode = #tpu.pipeline_mode<synchronous>, transform_indices = @transform_3, window_bounds = array<i64: 128, 128>}, {pipeline_mode = #tpu.pipeline_mode<synchronous>, transform_indices = @transform_4, window_bounds = array<i64: 1, 128>}, {transform_indices = @transform_5, window_bounds = array<i64: 2, 128>}]} {
    %c0 = arith.constant 0 : index
    %c0_0 = arith.constant 0 : index
    %c0_1 = arith.constant 0 : index
    %0 = vector.load %arg1[%c0, %c0_0, %c0_1] : memref<2x4x128xbf16, #tpu.memory_space<vmem>>, vector<2x4x128xbf16>
    %1 = arith.extf %0 : vector<2x4x128xbf16> to vector<2x4x128xf32>
    %c0_2 = arith.constant 0 : index
    %c0_3 = arith.constant 0 : index
    %c0_4 = arith.constant 0 : index
    %2 = vector.load %arg2[%c0_2, %c0_3, %c0_4] : memref<1x1x128xf32, #tpu.memory_space<vmem>>, vector<1x1x128xf32>
    %3 = vector.broadcast %2 : vector<1x1x128xf32> to vector<2x4x128xf32>
    %4 = arith.mulf %1, %3 : vector<2x4x128xf32>
    %c0_5 = arith.constant 0 : index
    %c0_6 = arith.constant 0 : index
    %c0_7 = arith.constant 0 : index
    %5 = vector.load %arg3[%c0_5, %c0_6, %c0_7] : memref<1x1x128xf32, #tpu.memory_space<vmem>>, vector<1x1x128xf32>
    %6 = vector.broadcast %5 : vector<1x1x128xf32> to vector<2x4x128xf32>
    %7 = arith.addf %4, %6 : vector<2x4x128xf32>
    %cst = arith.constant 0.000000e+00 : f32
    %8 = vector.broadcast %cst : f32 to vector<2x4x128xf32>
    %9 = arith.maximumf %7, %8 : vector<2x4x128xf32>
    %cst_8 = arith.constant dense<0.000000e+00> : vector<2x128xf32>
    %10 = vector.multi_reduction <add>, %9, %cst_8 [1] : vector<2x4x128xf32> to vector<2x128xf32>
    %cst_9 = arith.constant 4.000000e+00 : f32
    %11 = vector.broadcast %cst_9 : f32 to vector<2x128xf32>
    %12 = arith.divf %10, %11 : vector<2x128xf32>
    %c0_10 = arith.constant 0 : index
    %c0_11 = arith.constant 0 : index
    %13 = vector.load %arg4[%c0_10, %c0_11] : memref<128x128xf32, #tpu.memory_space<vmem>>, vector<128x128xf32>
    %cst_12 = arith.constant dense<0.000000e+00> : vector<2x128xf32>
    %14 = tpu.matmul %12, %13, %cst_12 {dimension_numbers = #tpu.dot_dimension_numbers<[1], [0], [0], [1], [0, 0, 1, 1], [], []>} : vector<2x128xf32>, vector<128x128xf32>, vector<2x128xf32> -> vector<2x128xf32>
    %c0_13 = arith.constant 0 : index
    %c0_14 = arith.constant 0 : index
    %15 = vector.load %arg5[%c0_13, %c0_14] : memref<1x128xf32, #tpu.memory_space<vmem>>, vector<1x128xf32>
    %16 = vector.broadcast %15 : vector<1x128xf32> to vector<2x128xf32>
    %17 = arith.addf %14, %16 : vector<2x128xf32>
    %c0_15 = arith.constant 0 : index
    %c0_16 = arith.constant 0 : index
    %18 = vector.load %arg6[%c0_15, %c0_16] : memref<2x128xf32, #tpu.memory_space<vmem>>, vector<2x128xf32>
    tpu.vector_store %arg6[%c0_15, %c0_16], %17 {strides = array<i32>} : memref<2x128xf32, #tpu.memory_space<vmem>>, vector<2x128xf32>,
    return
  }
  func.func @transform_0(%arg0: i32) -> (i32, i32, i32) {
    %c0_i32 = arith.constant 0 : i32
    %c0_i32_0 = arith.constant 0 : i32
    %c0_i32_1 = arith.constant 0 : i32
    return %arg0, %c0_i32, %c0_i32_0 : i32, i32, i32
  }
  func.func @transform_1(%arg0: i32) -> (i32, i32, i32) {
    %c0_i32 = arith.constant 0 : i32
    %c0_i32_0 = arith.constant 0 : i32
    %c0_i32_1 = arith.constant 0 : i32
    %c0_i32_2 = arith.constant 0 : i32
    return %c0_i32, %c0_i32_0, %c0_i32_1 : i32, i32, i32
  }
  func.func @transform_2(%arg0: i32) -> (i32, i32, i32) {
    %c0_i32 = arith.constant 0 : i32
    %c0_i32_0 = arith.constant 0 : i32
    %c0_i32_1 = arith.constant 0 : i32
    %c0_i32_2 = arith.constant 0 : i32
    return %c0_i32, %c0_i32_0, %c0_i32_1 : i32, i32, i32
  }
  func.func @transform_3(%arg0: i32) -> (i32, i32) {
    %c0_i32 = arith.constant 0 : i32
    %c0_i32_0 = arith.constant 0 : i32
    %c0_i32_1 = arith.constant 0 : i32
    return %c0_i32, %c0_i32_0 : i32, i32
  }
  func.func @transform_4(%arg0: i32) -> (i32, i32) {
    %c0_i32 = arith.constant 0 : i32
    %c0_i32_0 = arith.constant 0 : i32
    %c0_i32_1 = arith.constant 0 : i32
    return %c0_i32, %c0_i32_0 : i32, i32
  }
  func.func @transform_5(%arg0: i32) -> (i32, i32) {
    %c0_i32 = arith.constant 0 : i32
    %c0_i32_0 = arith.constant 0 : i32
    return %arg0, %c0_i32 : i32, i32
  }
}

</mosaic_0001>

<llo_original>
// kernel: densenet_forward.14
$region0: #{densenet_forward.14}
  #allocation0 [shape = 'u32[]', space=smem, size = 0x4, offset = 0x4, fixed_abs, tag = 'smem constant byte address 0x4 - core index']
  #allocation1 [shape = 'u32[144,128]{1,0:T(1,128)}', space=vmem, size = 0x12000, scoped, tag = 'internal scratch']
  %s0 = inlined_call_operand.vmem [shape: bf16[10,2,5,256], index: 0, kind: input, shape index: {}]
  %s1 = inlined_call_operand.vmem [shape: bf16[2,4,4,128], index: 1, kind: output, shape index: {}]
  %s2 = sld [smem:[#allocation0]]
  $region37: #{densenet_forward.14} parent=0
    _
  %s4 = ssub.s32 1, %s2
  %s5 = scalar_select 0, %s4, %s2
  loop: start=0, step=1, limit=4
  $region2: #{densenet_forward.14} parent=0 // loop_pre_header
    _
  $region3: #{densenet_forward.14} parent=0 // loop_header
    %s7 = sphi 0, %s11
    %p8 = scmp.ge.s32.totalorder %s7, 4
    %s17 = sphi 0, %s19
    %s20 = sphi 0, %s17
    %s21 = sphi 0, %s20
    %s37 = sphi 0, %s21
    %s43 = sphi 0, %s45
    %s46 = sphi 0, %s43
    %s47 = sphi 0, %s46
    %s63 = sphi 0, %s47
  $region4: #{densenet_forward.14} parent=0 // loop_header_branch
    %10 = sbr.rel (%p8) target = $region8
  $region5: #{densenet_forward.14} parent=0 // loop_body
    %s12 = ssub.s32 %s7, 1
    %s13 = ssub.s32 %s7, 2
    %s14 = sadd.s32 %s7, 1
    %s15 = ssub.s32 %s7, %s14
    %p16 = scmp.eq.s32.totalorder %s15, 0
    %s18 = sadd.s32 %s17, 1
    %s19 = scalar_select %p16, %s17, %s18
    %p22 = pneg %p16
    %p23 = scmp.eq.s32.totalorder %s7, 1
    %p24 = por %p22, %p23
    %p25 = scmp.ne.s32.totalorder %s17, %s20
    %p26 = scmp.eq.s32.totalorder %s7, 0
    %p27 = por %p25, %p26
    %p28 = scmp.ne.s32.totalorder %s17, %s20
    %p29 = scmp.eq.s32.totalorder %s12, 1
    %p30 = por %p28, %p29
    %p31 = scmp.ne.s32.totalorder %s20, %s21
    %p32 = scmp.eq.s32.totalorder %s12, 0
    %p33 = por %p31, %p32
    %p34 = scmp.ne.s32.totalorder %s20, %s21
    %p35 = scmp.eq.s32.totalorder %s13, 1
    %p36 = por %p34, %p35
    %p38 = scmp.ne.s32.totalorder %s21, %s37
    %p39 = scmp.eq.s32.totalorder %s13, 0
    %p40 = por %p38, %p39
    %s41 = ssub.s32 %s7, %s14
    %p42 = scmp.eq.s32.totalorder %s41, 0
    %s44 = sadd.s32 %s43, 1
    %s45 = scalar_select %p42, %s43, %s44
    %p48 = pneg %p42
    %p49 = scmp.eq.s32.totalorder %s7, 1
    %p50 = por %p48, %p49
    %p51 = scmp.ne.s32.totalorder %s43, %s46
    %p52 = scmp.eq.s32.totalorder %s7, 0
    %p53 = por %p51, %p52
    %p54 = scmp.ne.s32.totalorder %s43, %s46
    %p55 = scmp.eq.s32.totalorder %s12, 1
    %p56 = por %p54, %p55
    %p57 = scmp.ne.s32.totalorder %s46, %s47
    %p58 = scmp.eq.s32.totalorder %s12, 0
    %p59 = por %p57, %p58
    %p60 = scmp.ne.s32.totalorder %s46, %s47
    %p61 = scmp.eq.s32.totalorder %s13, 1
    %p62 = por %p60, %p61
    %p64 = scmp.ne.s32.totalorder %s47, %s63
    %p65 = scmp.eq.s32.totalorder %s13, 0
    %p66 = por %p64, %p65
    %p67 = scmp.le.s32.totalorder 1, %s7
    %p68 = scmp.lt.s32.totalorder %s7, 3
    %p69 = pnand %p67, %p68
    %p70 = pneg %p69
    // Predicated region
    $region9: #{densenet_forward.14} parent=5 // pred_check
      _
    $region10: #{densenet_forward.14} parent=5 // pred_check_branch
      %72 = sbr.rel (%p69) target = $region12
    $region11: #{densenet_forward.14} parent=5 // pred_region
      %s73 = ssub.s32 %s7, 1
    $region12: #{densenet_forward.14} parent=5 // pred_fallthru
      _
    %p74 = scmp.lt.s32.totalorder %s7, 2
    // Predicated region
    $region13: #{densenet_forward.14} parent=5 // pred_check
      %p75 = pneg %p74
    $region14: #{densenet_forward.14} parent=5 // pred_check_branch
      %77 = sbr.rel (%p75) target = $region16
    $region15: #{densenet_forward.14} parent=5 // pred_region
      // Predicated region
      $region17: #{densenet_forward.14} parent=15 // pred_check
        %p78 = pneg %p27
      $region18: #{densenet_forward.14} parent=15 // pred_check_branch
        %80 = sbr.rel (%p78) target = $region20
      $region19: #{densenet_forward.14} parent=15 // pred_region
        %s81 = smul.u32 5, %s7
        %p82 = scmp.lt.s32.totalorder %s81, 9
        %s83 = scalar_select %p82, %s81, 9
        %s84 = smul.addr %s83, 4
        %s85 = smul.addr %s84, 4
        %s86 = scalar_lea.vmem %s0, %s85
        %s87 = smul.u32 5, %s7
      $region20: #{densenet_forward.14} parent=15 // pred_fallthru
        _
    $region16: #{densenet_forward.14} parent=5 // pred_fallthru
      _
    %p88 = scmp.le.s32.totalorder 1, %s7
    %p89 = scmp.lt.s32.totalorder %s7, 3
    %p90 = pnand %p88, %p89
    %p91 = pneg %p90
    // Predicated region
    $region21: #{densenet_forward.14} parent=5 // pred_check
      _
    $region22: #{densenet_forward.14} parent=5 // pred_check_branch
      %93 = sbr.rel (%p90) target = $region24
    $region23: #{densenet_forward.14} parent=5 // pred_region
      %s94 = ssub.s32 %s7, 1
      %s95 = smul.u32 5, %s12
      %p96 = scmp.lt.s32.totalorder %s95, 9
      %s97 = scalar_select %p96, %s95, 9
      %s98 = smul.addr %s97, 4
      %s99 = smul.addr %s98, 4
      %s100 = scalar_lea.vmem %s0, %s99
      %p101 = pneg %p33
      %p102 = pneg %p30
      %p103 = pneg %p59
      %p104 = pneg %p56
      %p105 = scmp.lt.s32.totalorder %s12, 1
      %s106 = scalar_select %p105, %s12, 1
      %s107 = smul.addr %s106, 4
      %s108 = smul.addr %s107, 2
      %s109 = scalar_lea.vmem %s1, %s108
      %s110 = smul.u32 5, %s12
      %p111 = scmp.lt.s32.totalorder %s110, 9
      %s112 = scalar_select %p111, %s110, 9
      %s113 = smul.addr %s112, 4
      %s114 = smul.addr %s113, 4
      %s115 = scalar_lea.vmem %s0, %s114
      %s116 = smul.u32 5, %s12
      %p117 = scmp.lt.s32.totalorder %s12, 1
      %s118 = scalar_select %p117, %s12, 1
      %s119 = smul.addr %s118, 4
      %s120 = smul.addr %s119, 2
      %s121 = scalar_lea.vmem %s1, %s120
      %v122 = vld [vmem:[%s115] sm:$0x77]
      %v123 = vld [vmem:[%s115 + $0x10] sm:$0x77]
      %v124 = vld [vmem:[%s115 + $0x20] sm:$0x77]
      %v125 = vld [vmem:[%s115 + $0x30] sm:$0x77]
      %s126 = scalar_lea.vmem %s115, 8
      %v127 = vld [vmem:[%s126] sm:$0x77]
      %v128 = vld [vmem:[%s126 + $0x10] sm:$0x77]
      %v129 = vld [vmem:[%s126 + $0x20] sm:$0x77]
      %v130 = vld [vmem:[%s126 + $0x30] sm:$0x77]
      %s131 = scalar_lea.vmem %s115, 16
      %v132 = vld [vmem:[%s131] sm:$0x77]
      %v133 = vld [vmem:[%s131 + $0x10] sm:$0x77]
      %v134 = vld [vmem:[%s131 + $0x20] sm:$0x77]
      %v135 = vld [vmem:[%s131 + $0x30] sm:$0x77]
      %v136 = vmax.bf16 %v122, %v127
      %v137 = vmax.bf16 %v123, %v128
      %v138 = vmax.bf16 %v124, %v129
      %v139 = vmax.bf16 %v125, %v130
      %v140 = vmax.bf16 %v136, %v132
      %v141 = vmax.bf16 %v137, %v133
      %v142 = vmax.bf16 %v138, %v134
      %v143 = vmax.bf16 %v139, %v135
      %v148 = vrot.slane %v140, 4
      %v149 = vrot.slane %v141, 4
      %v150 = vrot.slane %v142, 4
      %v151 = vrot.slane %v143, 4
      %v156 = vmax.bf16 %v140, %v148
      %v157 = vmax.bf16 %v141, %v149
      %v158 = vmax.bf16 %v142, %v150
      %v159 = vmax.bf16 %v143, %v151
      %v161 = vshrl.u32 %v140, 16
      %v163 = vrot.slane %v161, 4
      %v164 = vshll.u32 %v140, 16
      %v166 = vrot.slane %v164, 5
      %v167 = vor.u32 %v163, %v166
      %v168 = vrot.slane %v167, 4
      %v170 = vshrl.u32 %v141, 16
      %v172 = vrot.slane %v170, 4
      %v173 = vshll.u32 %v141, 16
      %v175 = vrot.slane %v173, 5
      %v176 = vor.u32 %v172, %v175
      %v177 = vrot.slane %v176, 4
      %v179 = vshrl.u32 %v142, 16
      %v181 = vrot.slane %v179, 4
      %v182 = vshll.u32 %v142, 16
      %v184 = vrot.slane %v182, 5
      %v185 = vor.u32 %v181, %v184
      %v186 = vrot.slane %v185, 4
      %v188 = vshrl.u32 %v143, 16
      %v190 = vrot.slane %v188, 4
      %v191 = vshll.u32 %v143, 16
      %v193 = vrot.slane %v191, 5
      %v194 = vor.u32 %v190, %v193
      %v195 = vrot.slane %v194, 4
      %v200 = vmax.bf16 %v156, %v168
      %v201 = vmax.bf16 %v157, %v177
      %v202 = vmax.bf16 %v158, %v186
      %v203 = vmax.bf16 %v159, %v195
      %204 = vst [vmem:[%s121] sm:$0x3] %v200
      %205 = vst [vmem:[%s121 + $0x2] sm:$0x3] %v201
      %206 = vst [vmem:[%s121 + $0x4] sm:$0x3] %v202
      %207 = vst [vmem:[%s121 + $0x6] sm:$0x3] %v203
      %p208 = scmp.lt.s32.totalorder %s12, 1
      %s209 = scalar_select %p208, %s12, 1
      %s210 = smul.addr %s209, 4
      %s211 = smul.addr %s210, 2
      %s212 = scalar_lea.vmem %s1, %s211
      // Predicated region
      $region25: #{densenet_forward.14} parent=23 // pred_check
        %p213 = pneg %p56
      $region26: #{densenet_forward.14} parent=23 // pred_check_branch
        %215 = sbr.rel (%p213) target = $region28
      $region27: #{densenet_forward.14} parent=23 // pred_region
        _
      $region28: #{densenet_forward.14} parent=23 // pred_fallthru
        _
    $region24: #{densenet_forward.14} parent=5 // pred_fallthru
      _
    %p216 = scmp.le.s32.totalorder 2, %s7
    // Predicated region
    $region29: #{densenet_forward.14} parent=5 // pred_check
      %p217 = pneg %p216
    $region30: #{densenet_forward.14} parent=5 // pred_check_branch
      %219 = sbr.rel (%p217) target = $region32
    $region31: #{densenet_forward.14} parent=5 // pred_region
      %s220 = ssub.s32 %s7, 2
      // Predicated region
      $region33: #{densenet_forward.14} parent=31 // pred_check
        %p221 = pneg %p62
      $region34: #{densenet_forward.14} parent=31 // pred_check_branch
        %223 = sbr.rel (%p221) target = $region36
      $region35: #{densenet_forward.14} parent=31 // pred_region
        %p224 = scmp.lt.s32.totalorder %s13, 1
        %s225 = scalar_select %p224, %s13, 1
        %s226 = smul.addr %s225, 4
        %s227 = smul.addr %s226, 2
        %s228 = scalar_lea.vmem %s1, %s227
      $region36: #{densenet_forward.14} parent=31 // pred_fallthru
        _
    $region32: #{densenet_forward.14} parent=5 // pred_fallthru
      _
  $region6: #{densenet_forward.14} parent=0 // loop_footer
    %s11 = sadd.s32 1, %s7
  $region7: #{densenet_forward.14} parent=0 // loop_footer_branch
    %6 = sbr.rel target = $region3
  $region8: #{densenet_forward.14} parent=0 // loop_exit
    _

// kernel: densenet_forward.15
$region0: #{densenet_forward.15}
  #allocation0 [shape = 'u32[]', space=smem, size = 0x4, offset = 0x4, fixed_abs, tag = 'smem constant byte address 0x4 - core index']
  #allocation1 [shape = 'u32[144,128]{1,0:T(1,128)}', space=vmem, size = 0x12000, scoped, tag = 'internal scratch']
  #allocation2 [shape = 'f32[32,128]{1,0:T(8,128)}', space=vmem, size = 0x4000, scoped, tag = 'scratch operand']
  %s0 = inlined_call_operand.vmem [shape: bf16[32,128], index: 0, kind: input, shape index: {}]
  %s1 = inlined_call_operand.vmem [shape: bf16[128,128], index: 1, kind: input, shape index: {}]
  %s2 = inlined_call_operand.vmem [shape: f32[1,128], index: 2, kind: input, shape index: {}]
  %s3 = inlined_call_operand.vmem [shape: f32[1,128], index: 3, kind: input, shape index: {}]
  %s4 = inlined_call_operand.vmem [shape: f32[1,128], index: 4, kind: input, shape index: {}]
  %s5 = inlined_call_operand.vmem [shape: f32[1,128], index: 5, kind: input, shape index: {}]
  %s6 = inlined_call_operand.vmem [shape: bf16[32,128], index: 6, kind: output, shape index: {}]
  %s7 = sld [smem:[#allocation0]]
  $region42: #{densenet_forward.15} parent=0
    _
  %s9 = ssub.s32 1, %s7
  %s10 = scalar_select 0, %s9, %s7
  // Predicated region
  $region2: #{densenet_forward.15} parent=0 // pred_check
    _
  $region3: #{densenet_forward.15} parent=0 // pred_check_branch
    %12 = sbr.rel (0) target = $region5
  $region4: #{densenet_forward.15} parent=0 // pred_region
    _
  $region5: #{densenet_forward.15} parent=0 // pred_fallthru
    _
  // Predicated region
  $region6: #{densenet_forward.15} parent=0 // pred_check
    _
  $region7: #{densenet_forward.15} parent=0 // pred_check_branch
    %14 = sbr.rel (0) target = $region9
  $region8: #{densenet_forward.15} parent=0 // pred_region
    _
  $region9: #{densenet_forward.15} parent=0 // pred_fallthru
    _
  // Predicated region
  $region10: #{densenet_forward.15} parent=0 // pred_check
    _
  $region11: #{densenet_forward.15} parent=0 // pred_check_branch
    %16 = sbr.rel (0) target = $region13
  $region12: #{densenet_forward.15} parent=0 // pred_region
    _
  $region13: #{densenet_forward.15} parent=0 // pred_fallthru
    _
  // Predicated region
  $region14: #{densenet_forward.15} parent=0 // pred_check
    _
  $region15: #{densenet_forward.15} parent=0 // pred_check_branch
    %18 = sbr.rel (0) target = $region17
  $region16: #{densenet_forward.15} parent=0 // pred_region
    _
  $region17: #{densenet_forward.15} parent=0 // pred_fallthru
    _
  // Predicated region
  $region18: #{densenet_forward.15} parent=0 // pred_check
    _
  $region19: #{densenet_forward.15} parent=0 // pred_check_branch
    %20 = sbr.rel (0) target = $region21
  $region20: #{densenet_forward.15} parent=0 // pred_region
    _
  $region21: #{densenet_forward.15} parent=0 // pred_fallthru
    _
  // Predicated region
  $region22: #{densenet_forward.15} parent=0 // pred_check
    _
  $region23: #{densenet_forward.15} parent=0 // pred_check_branch
    %22 = sbr.rel (0) target = $region25
  $region24: #{densenet_forward.15} parent=0 // pred_region
    _
  $region25: #{densenet_forward.15} parent=0 // pred_fallthru
    _
  %p24 = scmp.eq.s32.totalorder 0, 0
  // Predicated region
  $region26: #{densenet_forward.15} parent=0 // pred_check
    %p25 = pneg %p24
  $region27: #{densenet_forward.15} parent=0 // pred_check_branch
    %27 = sbr.rel (%p25) target = $region29
  $region28: #{densenet_forward.15} parent=0 // pred_region
    %28 = vst [vmem:[#allocation2] sm:$0xff] 0.0
    %29 = vst [vmem:[#allocation2 + $0x8] sm:$0xff] 0.0
    %30 = vst [vmem:[#allocation2 + $0x10] sm:$0xff] 0.0
    %31 = vst [vmem:[#allocation2 + $0x18] sm:$0xff] 0.0
  $region29: #{densenet_forward.15} parent=0 // pred_fallthru
    _
  %v32 = vld [vmem:[%s0] sm:$0xf]
  %v33 = vld [vmem:[%s0 + $0x4] sm:$0xf]
  %v34 = vld [vmem:[%s0 + $0x8] sm:$0xf]
  %v35 = vld [vmem:[%s0 + $0xc] sm:$0xf]
  %v36 = vunpack.c.l.bf16 %v32
  %v37 = vunpack.c.l.bf16 %v33
  %v38 = vunpack.c.l.bf16 %v34
  %v39 = vunpack.c.l.bf16 %v35
  %v40 = vld [vmem:[%s2] sm:$0x1]
  %v42 = vlaneseq
  %v43 = vshrl.u32 %v42, 7
  %v44 = vsub.s32 0, %v43
  %v45 = vrot.slane %v40, %v44
  %v47 = vmul.f32 %v36, %v45
  %v48 = vmul.f32 %v37, %v45
  %v49 = vmul.f32 %v38, %v45
  %v50 = vmul.f32 %v39, %v45
  %v51 = vld [vmem:[%s3] sm:$0x1]
  %v53 = vlaneseq
  %v54 = vshrl.u32 %v53, 7
  %v55 = vsub.s32 0, %v54
  %v56 = vrot.slane %v51, %v55
  %v58 = vadd.f32 %v47, %v56
  %v59 = vadd.f32 %v48, %v56
  %v60 = vadd.f32 %v49, %v56
  %v61 = vadd.f32 %v50, %v56
  %v62 = vmax.f32 %v58, 0.0
  %v63 = vmax.f32 %v59, 0.0
  %v64 = vmax.f32 %v60, 0.0
  %v65 = vmax.f32 %v61, 0.0
  %v66 = vpack.c.bf16 %v63, %v62
  %v67 = vpack.c.bf16 %v65, %v64
  %v68 = vld [vmem:[#allocation2] sm:$0xff]
  %v69 = vld [vmem:[#allocation2 + $0x8] sm:$0xff]
  %v70 = vld [vmem:[#allocation2 + $0x10] sm:$0xff]
  %v71 = vld [vmem:[#allocation2 + $0x18] sm:$0xff]
  %v72 = vld [vmem:[%s1] sm:$0xf]
  %v73 = vld [vmem:[%s1 + $0x4] sm:$0xf]
  %v74 = vld [vmem:[%s1 + $0x8] sm:$0xf]
  %v75 = vld [vmem:[%s1 + $0xc] sm:$0xf]
  %v76 = vld [vmem:[%s1 + $0x10] sm:$0xf]
  %v77 = vld [vmem:[%s1 + $0x14] sm:$0xf]
  %v78 = vld [vmem:[%s1 + $0x18] sm:$0xf]
  %v79 = vld [vmem:[%s1 + $0x1c] sm:$0xf]
  %v80 = vld [vmem:[%s1 + $0x20] sm:$0xf]
  %v81 = vld [vmem:[%s1 + $0x24] sm:$0xf]
  %v82 = vld [vmem:[%s1 + $0x28] sm:$0xf]
  %v83 = vld [vmem:[%s1 + $0x2c] sm:$0xf]
  %v84 = vld [vmem:[%s1 + $0x30] sm:$0xf]
  %v85 = vld [vmem:[%s1 + $0x34] sm:$0xf]
  %v86 = vld [vmem:[%s1 + $0x38] sm:$0xf]
  %v87 = vld [vmem:[%s1 + $0x3c] sm:$0xf]
  %v104 = vunpack.c.l.b16 %v72
  %v105 = vunpack.c.l.b16 %v73
  %v106 = vunpack.c.l.b16 %v74
  %v107 = vunpack.c.l.b16 %v75
  %v108 = vunpack.c.l.b16 %v76
  %v109 = vunpack.c.l.b16 %v77
  %v110 = vunpack.c.l.b16 %v78
  %v111 = vunpack.c.l.b16 %v79
  %v112 = vunpack.c.l.b16 %v80
  %v113 = vunpack.c.l.b16 %v81
  %v114 = vunpack.c.l.b16 %v82
  %v115 = vunpack.c.l.b16 %v83
  %v116 = vunpack.c.l.b16 %v84
  %v117 = vunpack.c.l.b16 %v85
  %v118 = vunpack.c.l.b16 %v86
  %v119 = vunpack.c.l.b16 %v87
  %v120 = vpack.c.b16 %v105, %v104
  %v121 = vpack.c.b16 %v107, %v106
  %v122 = vpack.c.b16 %v109, %v108
  %v123 = vpack.c.b16 %v111, %v110
  %v124 = vpack.c.b16 %v113, %v112
  %v125 = vpack.c.b16 %v115, %v114
  %v126 = vpack.c.b16 %v117, %v116
  %v127 = vpack.c.b16 %v119, %v118
  %136 = vmatprep.subr.bf16.mxu0 0
  %137 = vmatpush1.bf16.msra.mxu0 %v127
  %138 = vmatprep.subr.bf16.mxu0 0
  %139 = vmatpush1.bf16.msra.mxu0 %v126
  %140 = vmatprep.subr.bf16.mxu0 0
  %141 = vmatpush1.bf16.msra.mxu0 %v125
  %142 = vmatprep.subr.bf16.mxu0 0
  %143 = vmatpush1.bf16.msra.mxu0 %v124
  %144 = vmatprep.subr.bf16.mxu0 0
  %145 = vmatpush1.bf16.msra.mxu0 %v123
  %146 = vmatprep.subr.bf16.mxu0 0
  %147 = vmatpush1.bf16.msra.mxu0 %v122
  %148 = vmatprep.subr.bf16.mxu0 0
  %149 = vmatpush1.bf16.msra.mxu0 %v121
  %150 = vmatprep.subr.bf16.mxu0 0
  %151 = vmatpush1.bf16.msra.mxu0 %v120
  %152 = vmatprep.subr.bf16.mxu0 0
  %153 = vmatpush2.bf16.msra.mxu0 0
  %154 = vmatprep.subr.bf16.mxu0 0
  %155 = vmatpush2.bf16.msra.mxu0 0
  %156 = vmatprep.subr.bf16.mxu0 0
  %157 = vmatpush2.bf16.msra.mxu0 0
  %158 = vmatprep.subr.bf16.mxu0 0
  %159 = vmatpush2.bf16.msra.mxu0 0
  %160 = vmatprep.subr.bf16.mxu0 0
  %161 = vmatpush2.bf16.msra.mxu0 0
  %162 = vmatprep.subr.bf16.mxu0 0
  %163 = vmatpush2.bf16.msra.mxu0 0
  %164 = vmatprep.subr.bf16.mxu0 0
  %165 = vmatpush2.bf16.msra.mxu0 0
  %166 = vmatprep.subr.bf16.mxu0 0
  %167 = vmatpush2.bf16.msra.mxu0 0
  %168 = vmatprep.mubr.bf16.mxu0 0
  %169 = vmatmul.mubr.bf16.gmra.mxu0 %v66
  %v170 = vpop.f32.mrf.mxu0
  %v171 = vadd.f32 0.0, %v170
  %v172 = vpop.f32.mrf.mxu0
  %v173 = vpop.f32.mrf.mxu0
  %v174 = vadd.f32 0.0, %v173
  %v175 = vpop.f32.mrf.mxu0
  %176 = vmatprep.mubr.bf16.mxu0 0
  %177 = vmatmul.mubr.bf16.gmra.mxu0 %v67
  %v178 = vpop.f32.mrf.mxu0
  %v179 = vadd.f32 0.0, %v178
  %v180 = vpop.f32.mrf.mxu0
  %v181 = vpop.f32.mrf.mxu0
  %v182 = vadd.f32 0.0, %v181
  %v183 = vpop.f32.mrf.mxu0
  %184 = vdwg.mxu0
  %v185 = vadd.f32 %v68, %v171
  %v186 = vadd.f32 %v69, %v174
  %v187 = vadd.f32 %v70, %v179
  %v188 = vadd.f32 %v71, %v182
  %189 = vst [vmem:[#allocation2] sm:$0xff] %v185
  %190 = vst [vmem:[#allocation2 + $0x8] sm:$0xff] %v186
  %191 = vst [vmem:[#allocation2 + $0x10] sm:$0xff] %v187
  %192 = vst [vmem:[#allocation2 + $0x18] sm:$0xff] %v188
  // Predicated region
  $region30: #{densenet_forward.15} parent=0 // pred_check
    %p193 = pneg %p24
  $region31: #{densenet_forward.15} parent=0 // pred_check_branch
    %195 = sbr.rel (%p193) target = $region33
  $region32: #{densenet_forward.15} parent=0 // pred_region
    %v196 = vld [vmem:[#allocation2] sm:$0xff]
    %v197 = vld [vmem:[#allocation2 + $0x8] sm:$0xff]
    %v198 = vld [vmem:[#allocation2 + $0x10] sm:$0xff]
    %v199 = vld [vmem:[#allocation2 + $0x18] sm:$0xff]
    %v200 = vld [vmem:[%s4] sm:$0x1]
    %v202 = vlaneseq
    %v203 = vshrl.u32 %v202, 7
    %v204 = vsub.s32 0, %v203
    %v205 = vrot.slane %v200, %v204
    %v207 = vmul.f32 %v196, %v205
    %v208 = vmul.f32 %v197, %v205
    %v209 = vmul.f32 %v198, %v205
    %v210 = vmul.f32 %v199, %v205
    %v211 = vld [vmem:[%s5] sm:$0x1]
    %v213 = vlaneseq
    %v214 = vshrl.u32 %v213, 7
    %v215 = vsub.s32 0, %v214
    %v216 = vrot.slane %v211, %v215
    %v218 = vadd.f32 %v207, %v216
    %v219 = vadd.f32 %v208, %v216
    %v220 = vadd.f32 %v209, %v216
    %v221 = vadd.f32 %v210, %v216
    %v222 = vmax.f32 %v218, 0.0
    %v223 = vmax.f32 %v219, 0.0
    %v224 = vmax.f32 %v220, 0.0
    %v225 = vmax.f32 %v221, 0.0
    %v226 = vpack.c.bf16 %v223, %v222
    %v227 = vpack.c.bf16 %v225, %v224
    %v230 = vunpack.c.l.b16 %v226
    %v231 = vunpack.c.h.b16 %v226
    %v232 = vunpack.c.l.b16 %v227
    %v233 = vunpack.c.h.b16 %v227
    %v234 = vpack.c.b16 %v230, %v230
    %v235 = vpack.c.b16 %v231, %v231
    %v236 = vpack.c.b16 %v232, %v232
    %v237 = vpack.c.b16 %v233, %v233
    %242 = vst [vmem:[%s6] sm:$0xf] %v234
    %243 = vst [vmem:[%s6 + $0x4] sm:$0xf] %v235
    %244 = vst [vmem:[%s6 + $0x8] sm:$0xf] %v236
    %245 = vst [vmem:[%s6 + $0xc] sm:$0xf] %v237
  $region33: #{densenet_forward.15} parent=0 // pred_fallthru
    _
  // Predicated region
  $region34: #{densenet_forward.15} parent=0 // pred_check
    _
  $region35: #{densenet_forward.15} parent=0 // pred_check_branch
    %247 = sbr.rel (0) target = $region37
  $region36: #{densenet_forward.15} parent=0 // pred_region
    _
  $region37: #{densenet_forward.15} parent=0 // pred_fallthru
    _
  // Predicated region
  $region38: #{densenet_forward.15} parent=0 // pred_check
    _
  $region39: #{densenet_forward.15} parent=0 // pred_check_branch
    %249 = sbr.rel (0) target = $region41
  $region40: #{densenet_forward.15} parent=0 // pred_region
    _
  $region41: #{densenet_forward.15} parent=0 // pred_fallthru
    _

// kernel: densenet_forward.13
$region0: #{densenet_forward.13}
  #allocation0 [shape = 'u32[]', space=smem, size = 0x4, offset = 0x4, fixed_abs, tag = 'smem constant byte address 0x4 - core index']
  #allocation1 [shape = 'u32[144,128]{1,0:T(1,128)}', space=vmem, size = 0x12000, scoped, tag = 'internal scratch']
  #allocation2 [shape = 'f32[128,128]{1,0:T(8,128)}', space=vmem, size = 0x10000, scoped, tag = 'scratch operand']
  %s0 = inlined_call_operand.vmem [shape: bf16[128,256], index: 0, kind: input, shape index: {}]
  %s1 = inlined_call_operand.vmem [shape: bf16[256,128], index: 1, kind: input, shape index: {}]
  %s2 = inlined_call_operand.vmem [shape: f32[1,128], index: 2, kind: input, shape index: {}]
  %s3 = inlined_call_operand.vmem [shape: f32[1,128], index: 3, kind: input, shape index: {}]
  %s4 = inlined_call_operand.vmem [shape: bf16[128,128], index: 4, kind: output, shape index: {}]
  %s5 = sld [smem:[#allocation0]]
  $region34: #{densenet_forward.13} parent=0
    _
  %s7 = ssub.s32 1, %s5
  %s8 = scalar_select 0, %s7, %s5
  // Predicated region
  $region2: #{densenet_forward.13} parent=0 // pred_check
    _
  $region3: #{densenet_forward.13} parent=0 // pred_check_branch
    %10 = sbr.rel (0) target = $region5
  $region4: #{densenet_forward.13} parent=0 // pred_region
    _
  $region5: #{densenet_forward.13} parent=0 // pred_fallthru
    _
  // Predicated region
  $region6: #{densenet_forward.13} parent=0 // pred_check
    _
  $region7: #{densenet_forward.13} parent=0 // pred_check_branch
    %12 = sbr.rel (0) target = $region9
  $region8: #{densenet_forward.13} parent=0 // pred_region
    _
  $region9: #{densenet_forward.13} parent=0 // pred_fallthru
    _
  // Predicated region
  $region10: #{densenet_forward.13} parent=0 // pred_check
    _
  $region11: #{densenet_forward.13} parent=0 // pred_check_branch
    %14 = sbr.rel (0) target = $region13
  $region12: #{densenet_forward.13} parent=0 // pred_region
    _
  $region13: #{densenet_forward.13} parent=0 // pred_fallthru
    _
  // Predicated region
  $region14: #{densenet_forward.13} parent=0 // pred_check
    _
  $region15: #{densenet_forward.13} parent=0 // pred_check_branch
    %16 = sbr.rel (0) target = $region17
  $region16: #{densenet_forward.13} parent=0 // pred_region
    _
  $region17: #{densenet_forward.13} parent=0 // pred_fallthru
    _
  %p18 = scmp.eq.s32.totalorder 0, 0
  // Predicated region
  $region18: #{densenet_forward.13} parent=0 // pred_check
    %p19 = pneg %p18
  $region19: #{densenet_forward.13} parent=0 // pred_check_branch
    %21 = sbr.rel (%p19) target = $region21
  $region20: #{densenet_forward.13} parent=0 // pred_region
    %22 = vst [vmem:[#allocation2] sm:$0xff] 0.0
    %23 = vst [vmem:[#allocation2 + $0x8] sm:$0xff] 0.0
    %24 = vst [vmem:[#allocation2 + $0x10] sm:$0xff] 0.0
    %25 = vst [vmem:[#allocation2 + $0x18] sm:$0xff] 0.0
    %26 = vst [vmem:[#allocation2 + $0x20] sm:$0xff] 0.0
    %27 = vst [vmem:[#allocation2 + $0x28] sm:$0xff] 0.0
    %28 = vst [vmem:[#allocation2 + $0x30] sm:$0xff] 0.0
    %29 = vst [vmem:[#allocation2 + $0x38] sm:$0xff] 0.0
    %30 = vst [vmem:[#allocation2 + $0x40] sm:$0xff] 0.0
    %31 = vst [vmem:[#allocation2 + $0x48] sm:$0xff] 0.0
    %32 = vst [vmem:[#allocation2 + $0x50] sm:$0xff] 0.0
    %33 = vst [vmem:[#allocation2 + $0x58] sm:$0xff] 0.0
    %34 = vst [vmem:[#allocation2 + $0x60] sm:$0xff] 0.0
    %35 = vst [vmem:[#allocation2 + $0x68] sm:$0xff] 0.0
    %36 = vst [vmem:[#allocation2 + $0x70] sm:$0xff] 0.0
    %37 = vst [vmem:[#allocation2 + $0x78] sm:$0xff] 0.0
  $region21: #{densenet_forward.13} parent=0 // pred_fallthru
    _
  %v38 = vld [vmem:[%s0] sm:$0xff]
  %v39 = vld [vmem:[%s0 + $0x8] sm:$0xff]
  %v40 = vld [vmem:[%s0 + $0x10] sm:$0xff]
  %v41 = vld [vmem:[%s0 + $0x18] sm:$0xff]
  %v42 = vld [vmem:[%s0 + $0x20] sm:$0xff]
  %v43 = vld [vmem:[%s0 + $0x28] sm:$0xff]
  %v44 = vld [vmem:[%s0 + $0x30] sm:$0xff]
  %v45 = vld [vmem:[%s0 + $0x38] sm:$0xff]
  %v46 = vld [vmem:[%s0 + $0x40] sm:$0xff]
  %v47 = vld [vmem:[%s0 + $0x48] sm:$0xff]
  %v48 = vld [vmem:[%s0 + $0x50] sm:$0xff]
  %v49 = vld [vmem:[%s0 + $0x58] sm:$0xff]
  %v50 = vld [vmem:[%s0 + $0x60] sm:$0xff]
  %v51 = vld [vmem:[%s0 + $0x68] sm:$0xff]
  %v52 = vld [vmem:[%s0 + $0x70] sm:$0xff]
  %v53 = vld [vmem:[%s0 + $0x78] sm:$0xff]
  %v54 = vld [vmem:[#allocation2] sm:$0xff]
  %v55 = vld [vmem:[#allocation2 + $0x8] sm:$0xff]
  %v56 = vld [vmem:[#allocation2 + $0x10] sm:$0xff]
  %v57 = vld [vmem:[#allocation2 + $0x18] sm:$0xff]
  %v58 = vld [vmem:[#allocation2 + $0x20] sm:$0xff]
  %v59 = vld [vmem:[#allocation2 + $0x28] sm:$0xff]
  %v60 = vld [vmem:[#allocation2 + $0x30] sm:$0xff]
  %v61 = vld [vmem:[#allocation2 + $0x38] sm:$0xff]
  %v62 = vld [vmem:[#allocation2 + $0x40] sm:$0xff]
  %v63 = vld [vmem:[#allocation2 + $0x48] sm:$0xff]
  %v64 = vld [vmem:[#allocation2 + $0x50] sm:$0xff]
  %v65 = vld [vmem:[#allocation2 + $0x58] sm:$0xff]
  %v66 = vld [vmem:[#allocation2 + $0x60] sm:$0xff]
  %v67 = vld [vmem:[#allocation2 + $0x68] sm:$0xff]
  %v68 = vld [vmem:[#allocation2 + $0x70] sm:$0xff]
  %v69 = vld [vmem:[#allocation2 + $0x78] sm:$0xff]
  %v70 = vld [vmem:[%s1] sm:$0xf]
  %v71 = vld [vmem:[%s1 + $0x4] sm:$0xf]
  %v72 = vld [vmem:[%s1 + $0x8] sm:$0xf]
  %v73 = vld [vmem:[%s1 + $0xc] sm:$0xf]
  %v74 = vld [vmem:[%s1 + $0x10] sm:$0xf]
  %v75 = vld [vmem:[%s1 + $0x14] sm:$0xf]
  %v76 = vld [vmem:[%s1 + $0x18] sm:$0xf]
  %v77 = vld [vmem:[%s1 + $0x1c] sm:$0xf]
  %v78 = vld [vmem:[%s1 + $0x20] sm:$0xf]
  %v79 = vld [vmem:[%s1 + $0x24] sm:$0xf]
  %v80 = vld [vmem:[%s1 + $0x28] sm:$0xf]
  %v81 = vld [vmem:[%s1 + $0x2c] sm:$0xf]
  %v82 = vld [vmem:[%s1 + $0x30] sm:$0xf]
  %v83 = vld [vmem:[%s1 + $0x34] sm:$0xf]
  %v84 = vld [vmem:[%s1 + $0x38] sm:$0xf]
  %v85 = vld [vmem:[%s1 + $0x3c] sm:$0xf]
  %v86 = vld [vmem:[%s1 + $0x40] sm:$0xf]
  %v87 = vld [vmem:[%s1 + $0x44] sm:$0xf]
  %v88 = vld [vmem:[%s1 + $0x48] sm:$0xf]
  %v89 = vld [vmem:[%s1 + $0x4c] sm:$0xf]
  %v90 = vld [vmem:[%s1 + $0x50] sm:$0xf]
  %v91 = vld [vmem:[%s1 + $0x54] sm:$0xf]
  %v92 = vld [vmem:[%s1 + $0x58] sm:$0xf]
  %v93 = vld [vmem:[%s1 + $0x5c] sm:$0xf]
  %v94 = vld [vmem:[%s1 + $0x60] sm:$0xf]
  %v95 = vld [vmem:[%s1 + $0x64] sm:$0xf]
  %v96 = vld [vmem:[%s1 + $0x68] sm:$0xf]
  %v97 = vld [vmem:[%s1 + $0x6c] sm:$0xf]
  %v98 = vld [vmem:[%s1 + $0x70] sm:$0xf]
  %v99 = vld [vmem:[%s1 + $0x74] sm:$0xf]
  %v100 = vld [vmem:[%s1 + $0x78] sm:$0xf]
  %v101 = vld [vmem:[%s1 + $0x7c] sm:$0xf]
  %v118 = vunpack.c.l.b16 %v38
  %v119 = vunpack.c.h.b16 %v38
  %v120 = vunpack.c.l.b16 %v39
  %v121 = vunpack.c.h.b16 %v39
  %v122 = vunpack.c.l.b16 %v40
  %v123 = vunpack.c.h.b16 %v40
  %v124 = vunpack.c.l.b16 %v41
  %v125 = vunpack.c.h.b16 %v41
  %v126 = vunpack.c.l.b16 %v42
  %v127 = vunpack.c.h.b16 %v42
  %v128 = vunpack.c.l.b16 %v43
  %v129 = vunpack.c.h.b16 %v43
  %v130 = vunpack.c.l.b16 %v44
  %v131 = vunpack.c.h.b16 %v44
  %v132 = vunpack.c.l.b16 %v45
  %v133 = vunpack.c.h.b16 %v45
  %v134 = vunpack.c.l.b16 %v46
  %v135 = vunpack.c.h.b16 %v46
  %v136 = vunpack.c.l.b16 %v47
  %v137 = vunpack.c.h.b16 %v47
  %v138 = vunpack.c.l.b16 %v48
  %v139 = vunpack.c.h.b16 %v48
  %v140 = vunpack.c.l.b16 %v49
  %v141 = vunpack.c.h.b16 %v49
  %v142 = vunpack.c.l.b16 %v50
  %v143 = vunpack.c.h.b16 %v50
  %v144 = vunpack.c.l.b16 %v51
  %v145 = vunpack.c.h.b16 %v51
  %v146 = vunpack.c.l.b16 %v52
  %v147 = vunpack.c.h.b16 %v52
  %v148 = vunpack.c.l.b16 %v53
  %v149 = vunpack.c.h.b16 %v53
  %v150 = vpack.c.b16 %v120, %v118
  %v151 = vpack.c.b16 %v121, %v119
  %v152 = vpack.c.b16 %v124, %v122
  %v153 = vpack.c.b16 %v125, %v123
  %v154 = vpack.c.b16 %v128, %v126
  %v155 = vpack.c.b16 %v129, %v127
  %v156 = vpack.c.b16 %v132, %v130
  %v157 = vpack.c.b16 %v133, %v131
  %v158 = vpack.c.b16 %v136, %v134
  %v159 = vpack.c.b16 %v137, %v135
  %v160 = vpack.c.b16 %v140, %v138
  %v161 = vpack.c.b16 %v141, %v139
  %v162 = vpack.c.b16 %v144, %v142
  %v163 = vpack.c.b16 %v145, %v143
  %v164 = vpack.c.b16 %v148, %v146
  %v165 = vpack.c.b16 %v149, %v147
  %v214 = vunpack.c.l.b16 %v70
  %v215 = vunpack.c.l.b16 %v71
  %v216 = vunpack.c.l.b16 %v72
  %v217 = vunpack.c.l.b16 %v73
  %v218 = vunpack.c.l.b16 %v74
  %v219 = vunpack.c.l.b16 %v75
  %v220 = vunpack.c.l.b16 %v76
  %v221 = vunpack.c.l.b16 %v77
  %v222 = vunpack.c.l.b16 %v78
  %v223 = vunpack.c.l.b16 %v79
  %v224 = vunpack.c.l.b16 %v80
  %v225 = vunpack.c.l.b16 %v81
  %v226 = vunpack.c.l.b16 %v82
  %v227 = vunpack.c.l.b16 %v83
  %v228 = vunpack.c.l.b16 %v84
  %v229 = vunpack.c.l.b16 %v85
  %v230 = vunpack.c.l.b16 %v86
  %v231 = vunpack.c.l.b16 %v87
  %v232 = vunpack.c.l.b16 %v88
  %v233 = vunpack.c.l.b16 %v89
  %v234 = vunpack.c.l.b16 %v90
  %v235 = vunpack.c.l.b16 %v91
  %v236 = vunpack.c.l.b16 %v92
  %v237 = vunpack.c.l.b16 %v93
  %v238 = vunpack.c.l.b16 %v94
  %v239 = vunpack.c.l.b16 %v95
  %v240 = vunpack.c.l.b16 %v96
  %v241 = vunpack.c.l.b16 %v97
  %v242 = vunpack.c.l.b16 %v98
  %v243 = vunpack.c.l.b16 %v99
  %v244 = vunpack.c.l.b16 %v100
  %v245 = vunpack.c.l.b16 %v101
  %v246 = vpack.c.b16 %v215, %v214
  %v247 = vpack.c.b16 %v217, %v216
  %v248 = vpack.c.b16 %v219, %v218
  %v249 = vpack.c.b16 %v221, %v220
  %v250 = vpack.c.b16 %v223, %v222
  %v251 = vpack.c.b16 %v225, %v224
  %v252 = vpack.c.b16 %v227, %v226
  %v253 = vpack.c.b16 %v229, %v228
  %v254 = vpack.c.b16 %v231, %v230
  %v255 = vpack.c.b16 %v233, %v232
  %v256 = vpack.c.b16 %v235, %v234
  %v257 = vpack.c.b16 %v237, %v236
  %v258 = vpack.c.b16 %v239, %v238
  %v259 = vpack.c.b16 %v241, %v240
  %v260 = vpack.c.b16 %v243, %v242
  %v261 = vpack.c.b16 %v245, %v244
  %278 = vmatprep.subr.bf16.mxu0 0
  %279 = vmatpush1.bf16.msra.mxu0 %v253
  %280 = vmatprep.subr.bf16.mxu0 0
  %281 = vmatpush1.bf16.msra.mxu0 %v252
  %282 = vmatprep.subr.bf16.mxu0 0
  %283 = vmatpush1.bf16.msra.mxu0 %v251
  %284 = vmatprep.subr.bf16.mxu0 0
  %285 = vmatpush1.bf16.msra.mxu0 %v250
  %286 = vmatprep.subr.bf16.mxu0 0
  %287 = vmatpush1.bf16.msra.mxu0 %v249
  %288 = vmatprep.subr.bf16.mxu0 0
  %289 = vmatpush1.bf16.msra.mxu0 %v248
  %290 = vmatprep.subr.bf16.mxu0 0
  %291 = vmatpush1.bf16.msra.mxu0 %v247
  %292 = vmatprep.subr.bf16.mxu0 0
  %293 = vmatpush1.bf16.msra.mxu0 %v246
  %294 = vmatprep.subr.bf16.mxu0 0
  %295 = vmatpush2.bf16.msra.mxu0 %v261
  %296 = vmatprep.subr.bf16.mxu0 0
  %297 = vmatpush2.bf16.msra.mxu0 %v260
  %298 = vmatprep.subr.bf16.mxu0 0
  %299 = vmatpush2.bf16.msra.mxu0 %v259
  %300 = vmatprep.subr.bf16.mxu0 0
  %301 = vmatpush2.bf16.msra.mxu0 %v258
  %302 = vmatprep.subr.bf16.mxu0 0
  %303 = vmatpush2.bf16.msra.mxu0 %v257
  %304 = vmatprep.subr.bf16.mxu0 0
  %305 = vmatpush2.bf16.msra.mxu0 %v256
  %306 = vmatprep.subr.bf16.mxu0 0
  %307 = vmatpush2.bf16.msra.mxu0 %v255
  %308 = vmatprep.subr.bf16.mxu0 0
  %309 = vmatpush2.bf16.msra.mxu0 %v254
  %310 = vmatprep.mubr.bf16.mxu0 %v151
  %311 = vmatmul.mubr.bf16.gmra.mxu0 %v150
  %v312 = vpop.f32.mrf.mxu0
  %v313 = vadd.f32 0.0, %v312
  %v314 = vpop.f32.mrf.mxu0
  %v315 = vpop.f32.mrf.mxu0
  %v316 = vadd.f32 0.0, %v315
  %v317 = vpop.f32.mrf.mxu0
  %318 = vmatprep.mubr.bf16.mxu0 %v153
  %319 = vmatmul.mubr.bf16.gmra.mxu0 %v152
  %v320 = vpop.f32.mrf.mxu0
  %v321 = vadd.f32 0.0, %v320
  %v322 = vpop.f32.mrf.mxu0
  %v323 = vpop.f32.mrf.mxu0
  %v324 = vadd.f32 0.0, %v323
  %v325 = vpop.f32.mrf.mxu0
  %326 = vmatprep.mubr.bf16.mxu0 %v155
  %327 = vmatmul.mubr.bf16.gmra.mxu0 %v154
  %v328 = vpop.f32.mrf.mxu0
  %v329 = vadd.f32 0.0, %v328
  %v330 = vpop.f32.mrf.mxu0
  %v331 = vpop.f32.mrf.mxu0
  %v332 = vadd.f32 0.0, %v331
  %v333 = vpop.f32.mrf.mxu0
  %334 = vmatprep.mubr.bf16.mxu0 %v157
  %335 = vmatmul.mubr.bf16.gmra.mxu0 %v156
  %v336 = vpop.f32.mrf.mxu0
  %v337 = vadd.f32 0.0, %v336
  %v338 = vpop.f32.mrf.mxu0
  %v339 = vpop.f32.mrf.mxu0
  %v340 = vadd.f32 0.0, %v339
  %v341 = vpop.f32.mrf.mxu0
  %342 = vmatprep.mubr.bf16.mxu0 %v159
  %343 = vmatmul.mubr.bf16.gmra.mxu0 %v158
  %v344 = vpop.f32.mrf.mxu0
  %v345 = vadd.f32 0.0, %v344
  %v346 = vpop.f32.mrf.mxu0
  %v347 = vpop.f32.mrf.mxu0
  %v348 = vadd.f32 0.0, %v347
  %v349 = vpop.f32.mrf.mxu0
  %350 = vmatprep.mubr.bf16.mxu0 %v161
  %351 = vmatmul.mubr.bf16.gmra.mxu0 %v160
  %v352 = vpop.f32.mrf.mxu0
  %v353 = vadd.f32 0.0, %v352
  %v354 = vpop.f32.mrf.mxu0
  %v355 = vpop.f32.mrf.mxu0
  %v356 = vadd.f32 0.0, %v355
  %v357 = vpop.f32.mrf.mxu0
  %358 = vmatprep.mubr.bf16.mxu0 %v163
  %359 = vmatmul.mubr.bf16.gmra.mxu0 %v162
  %v360 = vpop.f32.mrf.mxu0
  %v361 = vadd.f32 0.0, %v360
  %v362 = vpop.f32.mrf.mxu0
  %v363 = vpop.f32.mrf.mxu0
  %v364 = vadd.f32 0.0, %v363
  %v365 = vpop.f32.mrf.mxu0
  %366 = vmatprep.mubr.bf16.mxu0 %v165
  %367 = vmatmul.mubr.bf16.gmra.mxu0 %v164
  %v368 = vpop.f32.mrf.mxu0
  %v369 = vadd.f32 0.0, %v368
  %v370 = vpop.f32.mrf.mxu0
  %v371 = vpop.f32.mrf.mxu0
  %v372 = vadd.f32 0.0, %v371
  %v373 = vpop.f32.mrf.mxu0
  %374 = vdwg.mxu0
  %v375 = vadd.f32 %v54, %v313
  %v376 = vadd.f32 %v55, %v316
  %v377 = vadd.f32 %v56, %v321
  %v378 = vadd.f32 %v57, %v324
  %v379 = vadd.f32 %v58, %v329
  %v380 = vadd.f32 %v59, %v332
  %v381 = vadd.f32 %v60, %v337
  %v382 = vadd.f32 %v61, %v340
  %v383 = vadd.f32 %v62, %v345
  %v384 = vadd.f32 %v63, %v348
  %v385 = vadd.f32 %v64, %v353
  %v386 = vadd.f32 %v65, %v356
  %v387 = vadd.f32 %v66, %v361
  %v388 = vadd.f32 %v67, %v364
  %v389 = vadd.f32 %v68, %v369
  %v390 = vadd.f32 %v69, %v372
  %391 = vst [vmem:[#allocation2] sm:$0xff] %v375
  %392 = vst [vmem:[#allocation2 + $0x8] sm:$0xff] %v376
  %393 = vst [vmem:[#allocation2 + $0x10] sm:$0xff] %v377
  %394 = vst [vmem:[#allocation2 + $0x18] sm:$0xff] %v378
  %395 = vst [vmem:[#allocation2 + $0x20] sm:$0xff] %v379
  %396 = vst [vmem:[#allocation2 + $0x28] sm:$0xff] %v380
  %397 = vst [vmem:[#allocation2 + $0x30] sm:$0xff] %v381
  %398 = vst [vmem:[#allocation2 + $0x38] sm:$0xff] %v382
  %399 = vst [vmem:[#allocation2 + $0x40] sm:$0xff] %v383
  %400 = vst [vmem:[#allocation2 + $0x48] sm:$0xff] %v384
  %401 = vst [vmem:[#allocation2 + $0x50] sm:$0xff] %v385
  %402 = vst [vmem:[#allocation2 + $0x58] sm:$0xff] %v386
  %403 = vst [vmem:[#allocation2 + $0x60] sm:$0xff] %v387
  %404 = vst [vmem:[#allocation2 + $0x68] sm:$0xff] %v388
  %405 = vst [vmem:[#allocation2 + $0x70] sm:$0xff] %v389
  %406 = vst [vmem:[#allocation2 + $0x78] sm:$0xff] %v390
  // Predicated region
  $region22: #{densenet_forward.13} parent=0 // pred_check
    %p407 = pneg %p18
  $region23: #{densenet_forward.13} parent=0 // pred_check_branch
    %409 = sbr.rel (%p407) target = $region25
  $region24: #{densenet_forward.13} parent=0 // pred_region
    %v410 = vld [vmem:[#allocation2] sm:$0xff]
    %v411 = vld [vmem:[#allocation2 + $0x8] sm:$0xff]
    %v412 = vld [vmem:[#allocation2 + $0x10] sm:$0xff]
    %v413 = vld [vmem:[#allocation2 + $0x18] sm:$0xff]
    %v414 = vld [vmem:[#allocation2 + $0x20] sm:$0xff]
    %v415 = vld [vmem:[#allocation2 + $0x28] sm:$0xff]
    %v416 = vld [vmem:[#allocation2 + $0x30] sm:$0xff]
    %v417 = vld [vmem:[#allocation2 + $0x38] sm:$0xff]
    %v418 = vld [vmem:[#allocation2 + $0x40] sm:$0xff]
    %v419 = vld [vmem:[#allocation2 + $0x48] sm:$0xff]
    %v420 = vld [vmem:[#allocation2 + $0x50] sm:$0xff]
    %v421 = vld [vmem:[#allocation2 + $0x58] sm:$0xff]
    %v422 = vld [vmem:[#allocation2 + $0x60] sm:$0xff]
    %v423 = vld [vmem:[#allocation2 + $0x68] sm:$0xff]
    %v424 = vld [vmem:[#allocation2 + $0x70] sm:$0xff]
    %v425 = vld [vmem:[#allocation2 + $0x78] sm:$0xff]
    %v426 = vld [vmem:[%s2] sm:$0x1]
    %v428 = vlaneseq
    %v429 = vshrl.u32 %v428, 7
    %v430 = vsub.s32 0, %v429
    %v431 = vrot.slane %v426, %v430
    %v433 = vmul.f32 %v410, %v431
    %v434 = vmul.f32 %v411, %v431
    %v435 = vmul.f32 %v412, %v431
    %v436 = vmul.f32 %v413, %v431
    %v437 = vmul.f32 %v414, %v431
    %v438 = vmul.f32 %v415, %v431
    %v439 = vmul.f32 %v416, %v431
    %v440 = vmul.f32 %v417, %v431
    %v441 = vmul.f32 %v418, %v431
    %v442 = vmul.f32 %v419, %v431
    %v443 = vmul.f32 %v420, %v431
    %v444 = vmul.f32 %v421, %v431
    %v445 = vmul.f32 %v422, %v431
    %v446 = vmul.f32 %v423, %v431
    %v447 = vmul.f32 %v424, %v431
    %v448 = vmul.f32 %v425, %v431
    %v449 = vld [vmem:[%s3] sm:$0x1]
    %v451 = vlaneseq
    %v452 = vshrl.u32 %v451, 7
    %v453 = vsub.s32 0, %v452
    %v454 = vrot.slane %v449, %v453
    %v456 = vadd.f32 %v433, %v454
    %v457 = vadd.f32 %v434, %v454
    %v458 = vadd.f32 %v435, %v454
    %v459 = vadd.f32 %v436, %v454
    %v460 = vadd.f32 %v437, %v454
    %v461 = vadd.f32 %v438, %v454
    %v462 = vadd.f32 %v439, %v454
    %v463 = vadd.f32 %v440, %v454
    %v464 = vadd.f32 %v441, %v454
    %v465 = vadd.f32 %v442, %v454
    %v466 = vadd.f32 %v443, %v454
    %v467 = vadd.f32 %v444, %v454
    %v468 = vadd.f32 %v445, %v454
    %v469 = vadd.f32 %v446, %v454
    %v470 = vadd.f32 %v447, %v454
    %v471 = vadd.f32 %v448, %v454
    %v472 = vmax.f32 %v456, 0.0
    %v473 = vmax.f32 %v457, 0.0
    %v474 = vmax.f32 %v458, 0.0
    %v475 = vmax.f32 %v459, 0.0
    %v476 = vmax.f32 %v460, 0.0
    %v477 = vmax.f32 %v461, 0.0
    %v478 = vmax.f32 %v462, 0.0
    %v479 = vmax.f32 %v463, 0.0
    %v480 = vmax.f32 %v464, 0.0
    %v481 = vmax.f32 %v465, 0.0
    %v482 = vmax.f32 %v466, 0.0
    %v483 = vmax.f32 %v467, 0.0
    %v484 = vmax.f32 %v468, 0.0
    %v485 = vmax.f32 %v469, 0.0
    %v486 = vmax.f32 %v470, 0.0
    %v487 = vmax.f32 %v471, 0.0
    %v488 = vpack.c.bf16 %v473, %v472
    %v489 = vpack.c.bf16 %v475, %v474
    %v490 = vpack.c.bf16 %v477, %v476
    %v491 = vpack.c.bf16 %v479, %v478
    %v492 = vpack.c.bf16 %v481, %v480
    %v493 = vpack.c.bf16 %v483, %v482
    %v494 = vpack.c.bf16 %v485, %v484
    %v495 = vpack.c.bf16 %v487, %v486
    %v504 = vunpack.c.l.b16 %v488
    %v505 = vunpack.c.h.b16 %v488
    %v506 = vunpack.c.l.b16 %v489
    %v507 = vunpack.c.h.b16 %v489
    %v508 = vunpack.c.l.b16 %v490
    %v509 = vunpack.c.h.b16 %v490
    %v510 = vunpack.c.l.b16 %v491
    %v511 = vunpack.c.h.b16 %v491
    %v512 = vunpack.c.l.b16 %v492
    %v513 = vunpack.c.h.b16 %v492
    %v514 = vunpack.c.l.b16 %v493
    %v515 = vunpack.c.h.b16 %v493
    %v516 = vunpack.c.l.b16 %v494
    %v517 = vunpack.c.h.b16 %v494
    %v518 = vunpack.c.l.b16 %v495
    %v519 = vunpack.c.h.b16 %v495
    %v520 = vpack.c.b16 %v504, %v504
    %v521 = vpack.c.b16 %v505, %v505
    %v522 = vpack.c.b16 %v506, %v506
    %v523 = vpack.c.b16 %v507, %v507
    %v524 = vpack.c.b16 %v508, %v508
    %v525 = vpack.c.b16 %v509, %v509
    %v526 = vpack.c.b16 %v510, %v510
    %v527 = vpack.c.b16 %v511, %v511
    %v528 = vpack.c.b16 %v512, %v512
    %v529 = vpack.c.b16 %v513, %v513
    %v530 = vpack.c.b16 %v514, %v514
    %v531 = vpack.c.b16 %v515, %v515
    %v532 = vpack.c.b16 %v516, %v516
    %v533 = vpack.c.b16 %v517, %v517
    %v534 = vpack.c.b16 %v518, %v518
    %v535 = vpack.c.b16 %v519, %v519
    %552 = vst [vmem:[%s4] sm:$0xf] %v520
    %553 = vst [vmem:[%s4 + $0x4] sm:$0xf] %v521
    %554 = vst [vmem:[%s4 + $0x8] sm:$0xf] %v522
    %555 = vst [vmem:[%s4 + $0xc] sm:$0xf] %v523
    %556 = vst [vmem:[%s4 + $0x10] sm:$0xf] %v524
    %557 = vst [vmem:[%s4 + $0x14] sm:$0xf] %v525
    %558 = vst [vmem:[%s4 + $0x18] sm:$0xf] %v526
    %559 = vst [vmem:[%s4 + $0x1c] sm:$0xf] %v527
    %560 = vst [vmem:[%s4 + $0x20] sm:$0xf] %v528
    %561 = vst [vmem:[%s4 + $0x24] sm:$0xf] %v529
    %562 = vst [vmem:[%s4 + $0x28] sm:$0xf] %v530
    %563 = vst [vmem:[%s4 + $0x2c] sm:$0xf] %v531
    %564 = vst [vmem:[%s4 + $0x30] sm:$0xf] %v532
    %565 = vst [vmem:[%s4 + $0x34] sm:$0xf] %v533
    %566 = vst [vmem:[%s4 + $0x38] sm:$0xf] %v534
    %567 = vst [vmem:[%s4 + $0x3c] sm:$0xf] %v535
  $region25: #{densenet_forward.13} parent=0 // pred_fallthru
    _
  // Predicated region
  $region26: #{densenet_forward.13} parent=0 // pred_check
    _
  $region27: #{densenet_forward.13} parent=0 // pred_check_branch
    %569 = sbr.rel (0) target = $region29
  $region28: #{densenet_forward.13} parent=0 // pred_region
    _
  $region29: #{densenet_forward.13} parent=0 // pred_fallthru
    _
  // Predicated region
  $region30: #{densenet_forward.13} parent=0 // pred_check
    _
  $region31: #{densenet_forward.13} parent=0 // pred_check_branch
    %571 = sbr.rel (0) target = $region33
  $region32: #{densenet_forward.13} parent=0 // pred_region
    _
  $region33: #{densenet_forward.13} parent=0 // pred_fallthru
    _

// kernel: densenet_forward.19
$region0: #{densenet_forward.19}
  #allocation0 [shape = 'u32[]', space=smem, size = 0x4, offset = 0x4, fixed_abs, tag = 'smem constant byte address 0x4 - core index']
  #allocation1 [shape = 'u32[144,128]{1,0:T(1,128)}', space=vmem, size = 0x12000, scoped, tag = 'internal scratch']
  #allocation2 [shape = 'f32[32,128]{1,0:T(8,128)}', space=vmem, size = 0x4000, scoped, tag = 'scratch operand']
  %s0 = inlined_call_operand.vmem [shape: bf16[32,128], index: 0, kind: input, shape index: {}]
  %s1 = inlined_call_operand.vmem [shape: bf16[128,128], index: 1, kind: input, shape index: {}]
  %s2 = inlined_call_operand.vmem [shape: f32[1,128], index: 2, kind: input, shape index: {}]
  %s3 = inlined_call_operand.vmem [shape: f32[1,128], index: 3, kind: input, shape index: {}]
  %s4 = inlined_call_operand.vmem [shape: bf16[32,128], index: 4, kind: output, shape index: {}]
  %s5 = sld [smem:[#allocation0]]
  $region34: #{densenet_forward.19} parent=0
    _
  %s7 = ssub.s32 1, %s5
  %s8 = scalar_select 0, %s7, %s5
  // Predicated region
  $region2: #{densenet_forward.19} parent=0 // pred_check
    _
  $region3: #{densenet_forward.19} parent=0 // pred_check_branch
    %10 = sbr.rel (0) target = $region5
  $region4: #{densenet_forward.19} parent=0 // pred_region
    _
  $region5: #{densenet_forward.19} parent=0 // pred_fallthru
    _
  // Predicated region
  $region6: #{densenet_forward.19} parent=0 // pred_check
    _
  $region7: #{densenet_forward.19} parent=0 // pred_check_branch
    %12 = sbr.rel (0) target = $region9
  $region8: #{densenet_forward.19} parent=0 // pred_region
    _
  $region9: #{densenet_forward.19} parent=0 // pred_fallthru
    _
  // Predicated region
  $region10: #{densenet_forward.19} parent=0 // pred_check
    _
  $region11: #{densenet_forward.19} parent=0 // pred_check_branch
    %14 = sbr.rel (0) target = $region13
  $region12: #{densenet_forward.19} parent=0 // pred_region
    _
  $region13: #{densenet_forward.19} parent=0 // pred_fallthru
    _
  // Predicated region
  $region14: #{densenet_forward.19} parent=0 // pred_check
    _
  $region15: #{densenet_forward.19} parent=0 // pred_check_branch
    %16 = sbr.rel (0) target = $region17
  $region16: #{densenet_forward.19} parent=0 // pred_region
    _
  $region17: #{densenet_forward.19} parent=0 // pred_fallthru
    _
  %p18 = scmp.eq.s32.totalorder 0, 0
  // Predicated region
  $region18: #{densenet_forward.19} parent=0 // pred_check
    %p19 = pneg %p18
  $region19: #{densenet_forward.19} parent=0 // pred_check_branch
    %21 = sbr.rel (%p19) target = $region21
  $region20: #{densenet_forward.19} parent=0 // pred_region
    %22 = vst [vmem:[#allocation2] sm:$0xff] 0.0
    %23 = vst [vmem:[#allocation2 + $0x8] sm:$0xff] 0.0
    %24 = vst [vmem:[#allocation2 + $0x10] sm:$0xff] 0.0
    %25 = vst [vmem:[#allocation2 + $0x18] sm:$0xff] 0.0
  $region21: #{densenet_forward.19} parent=0 // pred_fallthru
    _
  %v26 = vld [vmem:[%s0] sm:$0xf]
  %v27 = vld [vmem:[%s0 + $0x4] sm:$0xf]
  %v28 = vld [vmem:[%s0 + $0x8] sm:$0xf]
  %v29 = vld [vmem:[%s0 + $0xc] sm:$0xf]
  %v30 = vunpack.c.l.bf16 %v26
  %v31 = vunpack.c.l.bf16 %v27
  %v32 = vunpack.c.l.bf16 %v28
  %v33 = vunpack.c.l.bf16 %v29
  %v34 = vld [vmem:[%s2] sm:$0x1]
  %v36 = vlaneseq
  %v37 = vshrl.u32 %v36, 7
  %v38 = vsub.s32 0, %v37
  %v39 = vrot.slane %v34, %v38
  %v41 = vmul.f32 %v30, %v39
  %v42 = vmul.f32 %v31, %v39
  %v43 = vmul.f32 %v32, %v39
  %v44 = vmul.f32 %v33, %v39
  %v45 = vld [vmem:[%s3] sm:$0x1]
  %v47 = vlaneseq
  %v48 = vshrl.u32 %v47, 7
  %v49 = vsub.s32 0, %v48
  %v50 = vrot.slane %v45, %v49
  %v52 = vadd.f32 %v41, %v50
  %v53 = vadd.f32 %v42, %v50
  %v54 = vadd.f32 %v43, %v50
  %v55 = vadd.f32 %v44, %v50
  %v56 = vmax.f32 %v52, 0.0
  %v57 = vmax.f32 %v53, 0.0
  %v58 = vmax.f32 %v54, 0.0
  %v59 = vmax.f32 %v55, 0.0
  %v60 = vpack.c.bf16 %v57, %v56
  %v61 = vpack.c.bf16 %v59, %v58
  %v62 = vld [vmem:[#allocation2] sm:$0xff]
  %v63 = vld [vmem:[#allocation2 + $0x8] sm:$0xff]
  %v64 = vld [vmem:[#allocation2 + $0x10] sm:$0xff]
  %v65 = vld [vmem:[#allocation2 + $0x18] sm:$0xff]
  %v66 = vld [vmem:[%s1] sm:$0xf]
  %v67 = vld [vmem:[%s1 + $0x4] sm:$0xf]
  %v68 = vld [vmem:[%s1 + $0x8] sm:$0xf]
  %v69 = vld [vmem:[%s1 + $0xc] sm:$0xf]
  %v70 = vld [vmem:[%s1 + $0x10] sm:$0xf]
  %v71 = vld [vmem:[%s1 + $0x14] sm:$0xf]
  %v72 = vld [vmem:[%s1 + $0x18] sm:$0xf]
  %v73 = vld [vmem:[%s1 + $0x1c] sm:$0xf]
  %v74 = vld [vmem:[%s1 + $0x20] sm:$0xf]
  %v75 = vld [vmem:[%s1 + $0x24] sm:$0xf]
  %v76 = vld [vmem:[%s1 + $0x28] sm:$0xf]
  %v77 = vld [vmem:[%s1 + $0x2c] sm:$0xf]
  %v78 = vld [vmem:[%s1 + $0x30] sm:$0xf]
  %v79 = vld [vmem:[%s1 + $0x34] sm:$0xf]
  %v80 = vld [vmem:[%s1 + $0x38] sm:$0xf]
  %v81 = vld [vmem:[%s1 + $0x3c] sm:$0xf]
  %v98 = vunpack.c.l.b16 %v66
  %v99 = vunpack.c.l.b16 %v67
  %v100 = vunpack.c.l.b16 %v68
  %v101 = vunpack.c.l.b16 %v69
  %v102 = vunpack.c.l.b16 %v70
  %v103 = vunpack.c.l.b16 %v71
  %v104 = vunpack.c.l.b16 %v72
  %v105 = vunpack.c.l.b16 %v73
  %v106 = vunpack.c.l.b16 %v74
  %v107 = vunpack.c.l.b16 %v75
  %v108 = vunpack.c.l.b16 %v76
  %v109 = vunpack.c.l.b16 %v77
  %v110 = vunpack.c.l.b16 %v78
  %v111 = vunpack.c.l.b16 %v79
  %v112 = vunpack.c.l.b16 %v80
  %v113 = vunpack.c.l.b16 %v81
  %v114 = vpack.c.b16 %v99, %v98
  %v115 = vpack.c.b16 %v101, %v100
  %v116 = vpack.c.b16 %v103, %v102
  %v117 = vpack.c.b16 %v105, %v104
  %v118 = vpack.c.b16 %v107, %v106
  %v119 = vpack.c.b16 %v109, %v108
  %v120 = vpack.c.b16 %v111, %v110
  %v121 = vpack.c.b16 %v113, %v112
  %130 = vmatprep.subr.bf16.mxu0 0
  %131 = vmatpush1.bf16.msra.mxu0 %v121
  %132 = vmatprep.subr.bf16.mxu0 0
  %133 = vmatpush1.bf16.msra.mxu0 %v120
  %134 = vmatprep.subr.bf16.mxu0 0
  %135 = vmatpush1.bf16.msra.mxu0 %v119
  %136 = vmatprep.subr.bf16.mxu0 0
  %137 = vmatpush1.bf16.msra.mxu0 %v118
  %138 = vmatprep.subr.bf16.mxu0 0
  %139 = vmatpush1.bf16.msra.mxu0 %v117
  %140 = vmatprep.subr.bf16.mxu0 0
  %141 = vmatpush1.bf16.msra.mxu0 %v116
  %142 = vmatprep.subr.bf16.mxu0 0
  %143 = vmatpush1.bf16.msra.mxu0 %v115
  %144 = vmatprep.subr.bf16.mxu0 0
  %145 = vmatpush1.bf16.msra.mxu0 %v114
  %146 = vmatprep.subr.bf16.mxu0 0
  %147 = vmatpush2.bf16.msra.mxu0 0
  %148 = vmatprep.subr.bf16.mxu0 0
  %149 = vmatpush2.bf16.msra.mxu0 0
  %150 = vmatprep.subr.bf16.mxu0 0
  %151 = vmatpush2.bf16.msra.mxu0 0
  %152 = vmatprep.subr.bf16.mxu0 0
  %153 = vmatpush2.bf16.msra.mxu0 0
  %154 = vmatprep.subr.bf16.mxu0 0
  %155 = vmatpush2.bf16.msra.mxu0 0
  %156 = vmatprep.subr.bf16.mxu0 0
  %157 = vmatpush2.bf16.msra.mxu0 0
  %158 = vmatprep.subr.bf16.mxu0 0
  %159 = vmatpush2.bf16.msra.mxu0 0
  %160 = vmatprep.subr.bf16.mxu0 0
  %161 = vmatpush2.bf16.msra.mxu0 0
  %162 = vmatprep.mubr.bf16.mxu0 0
  %163 = vmatmul.mubr.bf16.gmra.mxu0 %v60
  %v164 = vpop.f32.mrf.mxu0
  %v165 = vadd.f32 0.0, %v164
  %v166 = vpop.f32.mrf.mxu0
  %v167 = vpop.f32.mrf.mxu0
  %v168 = vadd.f32 0.0, %v167
  %v169 = vpop.f32.mrf.mxu0
  %170 = vmatprep.mubr.bf16.mxu0 0
  %171 = vmatmul.mubr.bf16.gmra.mxu0 %v61
  %v172 = vpop.f32.mrf.mxu0
  %v173 = vadd.f32 0.0, %v172
  %v174 = vpop.f32.mrf.mxu0
  %v175 = vpop.f32.mrf.mxu0
  %v176 = vadd.f32 0.0, %v175
  %v177 = vpop.f32.mrf.mxu0
  %178 = vdwg.mxu0
  %v179 = vadd.f32 %v62, %v165
  %v180 = vadd.f32 %v63, %v168
  %v181 = vadd.f32 %v64, %v173
  %v182 = vadd.f32 %v65, %v176
  %183 = vst [vmem:[#allocation2] sm:$0xff] %v179
  %184 = vst [vmem:[#allocation2 + $0x8] sm:$0xff] %v180
  %185 = vst [vmem:[#allocation2 + $0x10] sm:$0xff] %v181
  %186 = vst [vmem:[#allocation2 + $0x18] sm:$0xff] %v182
  // Predicated region
  $region22: #{densenet_forward.19} parent=0 // pred_check
    %p187 = pneg %p18
  $region23: #{densenet_forward.19} parent=0 // pred_check_branch
    %189 = sbr.rel (%p187) target = $region25
  $region24: #{densenet_forward.19} parent=0 // pred_region
    %v190 = vld [vmem:[#allocation2] sm:$0xff]
    %v191 = vld [vmem:[#allocation2 + $0x8] sm:$0xff]
    %v192 = vld [vmem:[#allocation2 + $0x10] sm:$0xff]
    %v193 = vld [vmem:[#allocation2 + $0x18] sm:$0xff]
    %v194 = vpack.c.bf16 %v191, %v190
    %v195 = vpack.c.bf16 %v193, %v192
    %v198 = vunpack.c.l.b16 %v194
    %v199 = vunpack.c.h.b16 %v194
    %v200 = vunpack.c.l.b16 %v195
    %v201 = vunpack.c.h.b16 %v195
    %v202 = vpack.c.b16 %v198, %v198
    %v203 = vpack.c.b16 %v199, %v199
    %v204 = vpack.c.b16 %v200, %v200
    %v205 = vpack.c.b16 %v201, %v201
    %210 = vst [vmem:[%s4] sm:$0xf] %v202
    %211 = vst [vmem:[%s4 + $0x4] sm:$0xf] %v203
    %212 = vst [vmem:[%s4 + $0x8] sm:$0xf] %v204
    %213 = vst [vmem:[%s4 + $0xc] sm:$0xf] %v205
  $region25: #{densenet_forward.19} parent=0 // pred_fallthru
    _
  // Predicated region
  $region26: #{densenet_forward.19} parent=0 // pred_check
    _
  $region27: #{densenet_forward.19} parent=0 // pred_check_branch
    %215 = sbr.rel (0) target = $region29
  $region28: #{densenet_forward.19} parent=0 // pred_region
    _
  $region29: #{densenet_forward.19} parent=0 // pred_fallthru
    _
  // Predicated region
  $region30: #{densenet_forward.19} parent=0 // pred_check
    _
  $region31: #{densenet_forward.19} parent=0 // pred_check_branch
    %217 = sbr.rel (0) target = $region33
  $region32: #{densenet_forward.19} parent=0 // pred_region
    _
  $region33: #{densenet_forward.19} parent=0 // pred_fallthru
    _

// kernel: densenet_forward.16
$region0: #{densenet_forward.16}
  #allocation0 [shape = 'u32[]', space=smem, size = 0x4, offset = 0x4, fixed_abs, tag = 'smem constant byte address 0x4 - core index']
  #allocation1 [shape = 'u32[144,128]{1,0:T(1,128)}', space=vmem, size = 0x12000, scoped, tag = 'internal scratch']
  %s0 = inlined_call_operand.vmem [shape: bf16[2,42,128], index: 0, kind: input, shape index: {}]
  %s1 = inlined_call_operand.vmem [shape: bf16[9,128,128], index: 1, kind: input, shape index: {}]
  %s2 = inlined_call_operand.vmem [shape: bf16[2,24,128], index: 2, kind: output, shape index: {}]
  %s3 = sld [smem:[#allocation0]]
  $region41: #{densenet_forward.16} parent=0
    _
  %s5 = ssub.s32 1, %s3
  %s6 = scalar_select 0, %s5, %s3
  loop: start=0, step=1, limit=4
  $region2: #{densenet_forward.16} parent=0 // loop_pre_header
    _
  $region3: #{densenet_forward.16} parent=0 // loop_header
    %s8 = sphi 0, %s12
    %p9 = scmp.ge.s32.totalorder %s8, 4
    %s15 = sphi 0, %s27
    %s16 = sphi 0, %s23
    %s17 = sphi 0, %s15
    %s18 = sphi 0, %s16
    %s19 = sphi 0, %s17
    %s20 = sphi 0, %s18
    %s30 = sphi 0, %s32
    %s33 = sphi 0, %s30
    %s34 = sphi 0, %s33
    %s50 = sphi 0, %s34
    %s56 = sphi 0, %s58
    %s59 = sphi 0, %s56
    %s60 = sphi 0, %s59
    %s76 = sphi 0, %s60
    %s84 = sphi 0, %s86
    %s87 = sphi 0, %s84
    %s88 = sphi 0, %s87
    %s104 = sphi 0, %s88
  $region4: #{densenet_forward.16} parent=0 // loop_header_branch
    %11 = sbr.rel (%p9) target = $region8
  $region5: #{densenet_forward.16} parent=0 // loop_body
    %s13 = ssub.s32 %s8, 1
    %s14 = ssub.s32 %s8, 2
    %s21 = sadd.s32 1, %s16
    %p22 = scmp.ge.s32.totalorder %s21, 1
    %s23 = scalar_select %p22, 0, %s21
    %s24 = sadd.s32 1, %s15
    %s25 = scalar_select %p22, %s24, %s15
    %p26 = scmp.ge.s32.totalorder %s25, 2
    %s27 = scalar_select %p26, 0, %s25
    %s28 = ssub.s32 %s15, %s27
    %p29 = scmp.eq.s32.totalorder %s28, 0
    %s31 = sadd.s32 %s30, 1
    %s32 = scalar_select %p29, %s30, %s31
    %p35 = pneg %p29
    %p36 = scmp.eq.s32.totalorder %s8, 1
    %p37 = por %p35, %p36
    %p38 = scmp.ne.s32.totalorder %s30, %s33
    %p39 = scmp.eq.s32.totalorder %s8, 0
    %p40 = por %p38, %p39
    %p41 = scmp.ne.s32.totalorder %s30, %s33
    %p42 = scmp.eq.s32.totalorder %s13, 1
    %p43 = por %p41, %p42
    %p44 = scmp.ne.s32.totalorder %s33, %s34
    %p45 = scmp.eq.s32.totalorder %s13, 0
    %p46 = por %p44, %p45
    %p47 = scmp.ne.s32.totalorder %s33, %s34
    %p48 = scmp.eq.s32.totalorder %s14, 1
    %p49 = por %p47, %p48
    %p51 = scmp.ne.s32.totalorder %s34, %s50
    %p52 = scmp.eq.s32.totalorder %s14, 0
    %p53 = por %p51, %p52
    %s54 = ssub.s32 %s16, %s23
    %p55 = scmp.eq.s32.totalorder %s54, 0
    %s57 = sadd.s32 %s56, 1
    %s58 = scalar_select %p55, %s56, %s57
    %p61 = pneg %p55
    %p62 = scmp.eq.s32.totalorder %s8, 1
    %p63 = por %p61, %p62
    %p64 = scmp.ne.s32.totalorder %s56, %s59
    %p65 = scmp.eq.s32.totalorder %s8, 0
    %p66 = por %p64, %p65
    %p67 = scmp.ne.s32.totalorder %s56, %s59
    %p68 = scmp.eq.s32.totalorder %s13, 1
    %p69 = por %p67, %p68
    %p70 = scmp.ne.s32.totalorder %s59, %s60
    %p71 = scmp.eq.s32.totalorder %s13, 0
    %p72 = por %p70, %p71
    %p73 = scmp.ne.s32.totalorder %s59, %s60
    %p74 = scmp.eq.s32.totalorder %s14, 1
    %p75 = por %p73, %p74
    %p77 = scmp.ne.s32.totalorder %s60, %s76
    %p78 = scmp.eq.s32.totalorder %s14, 0
    %p79 = por %p77, %p78
    %s80 = ssub.s32 %s15, %s27
    %s81 = ssub.s32 %s16, %s23
    %s82 = sor.u32 %s80, %s81
    %p83 = scmp.eq.s32.totalorder %s82, 0
    %s85 = sadd.s32 %s84, 1
    %s86 = scalar_select %p83, %s84, %s85
    %p89 = pneg %p83
    %p90 = scmp.eq.s32.totalorder %s8, 1
    %p91 = por %p89, %p90
    %p92 = scmp.ne.s32.totalorder %s84, %s87
    %p93 = scmp.eq.s32.totalorder %s8, 0
    %p94 = por %p92, %p93
    %p95 = scmp.ne.s32.totalorder %s84, %s87
    %p96 = scmp.eq.s32.totalorder %s13, 1
    %p97 = por %p95, %p96
    %p98 = scmp.ne.s32.totalorder %s87, %s88
    %p99 = scmp.eq.s32.totalorder %s13, 0
    %p100 = por %p98, %p99
    %p101 = scmp.ne.s32.totalorder %s87, %s88
    %p102 = scmp.eq.s32.totalorder %s14, 1
    %p103 = por %p101, %p102
    %p105 = scmp.ne.s32.totalorder %s88, %s104
    %p106 = scmp.eq.s32.totalorder %s14, 0
    %p107 = por %p105, %p106
    %p108 = scmp.le.s32.totalorder 1, %s8
    %p109 = scmp.lt.s32.totalorder %s8, 3
    %p110 = pnand %p108, %p109
    %p111 = pneg %p110
    // Predicated region
    $region9: #{densenet_forward.16} parent=5 // pred_check
      _
    $region10: #{densenet_forward.16} parent=5 // pred_check_branch
      %113 = sbr.rel (%p110) target = $region12
    $region11: #{densenet_forward.16} parent=5 // pred_region
      %s114 = ssub.s32 %s8, 1
      // Predicated region
      $region13: #{densenet_forward.16} parent=11 // pred_check
        %p115 = pneg %p72
      $region14: #{densenet_forward.16} parent=11 // pred_check_branch
        %117 = sbr.rel (%p115) target = $region16
      $region15: #{densenet_forward.16} parent=11 // pred_region
        %p118 = scmp.lt.s32.totalorder %s18, 0
        %s119 = scalar_select %p118, %s18, 0
        %s120 = smul.addr %s119, 4
        %s121 = scalar_lea.vmem %s1, %s120
      $region16: #{densenet_forward.16} parent=11 // pred_fallthru
        _
    $region12: #{densenet_forward.16} parent=5 // pred_fallthru
      _
    %p122 = scmp.lt.s32.totalorder %s8, 2
    // Predicated region
    $region17: #{densenet_forward.16} parent=5 // pred_check
      %p123 = pneg %p122
    $region18: #{densenet_forward.16} parent=5 // pred_check_branch
      %125 = sbr.rel (%p123) target = $region20
    $region19: #{densenet_forward.16} parent=5 // pred_region
      // Predicated region
      $region21: #{densenet_forward.16} parent=19 // pred_check
        %p126 = pneg %p40
      $region22: #{densenet_forward.16} parent=19 // pred_check_branch
        %128 = sbr.rel (%p126) target = $region24
      $region23: #{densenet_forward.16} parent=19 // pred_region
        %p129 = scmp.lt.s32.totalorder %s15, 1
        %s130 = scalar_select %p129, %s15, 1
        %s131 = smul.addr %s130, 6
        %s132 = smul.addr %s131, 4
        %s133 = scalar_lea.vmem %s0, %s132
      $region24: #{densenet_forward.16} parent=19 // pred_fallthru
        _
    $region20: #{densenet_forward.16} parent=5 // pred_fallthru
      _
    %p134 = scmp.le.s32.totalorder 1, %s8
    %p135 = scmp.lt.s32.totalorder %s8, 3
    %p136 = pnand %p134, %p135
    %p137 = pneg %p136
    // Predicated region
    $region25: #{densenet_forward.16} parent=5 // pred_check
      _
    $region26: #{densenet_forward.16} parent=5 // pred_check_branch
      %139 = sbr.rel (%p136) target = $region28
    $region27: #{densenet_forward.16} parent=5 // pred_region
      %s140 = ssub.s32 %s8, 1
      %p141 = scmp.lt.s32.totalorder %s17, 1
      %s142 = scalar_select %p141, %s17, 1
      %s143 = smul.addr %s142, 6
      %s144 = smul.addr %s143, 4
      %s145 = scalar_lea.vmem %s0, %s144
      %p146 = pneg %p46
      %p147 = pneg %p43
      %p148 = scmp.lt.s32.totalorder %s18, 0
      %s149 = scalar_select %p148, %s18, 0
      %s150 = smul.addr %s149, 4
      %s151 = scalar_lea.vmem %s1, %s150
      %p152 = pneg %p72
      %p153 = pneg %p69
      %p154 = pneg %p100
      %p155 = pneg %p97
      %p156 = scmp.lt.s32.totalorder %s17, 1
      %s157 = scalar_select %p156, %s17, 1
      %p158 = scmp.lt.s32.totalorder %s18, 0
      %s159 = scalar_select %p158, %s18, 0
      %s160 = smul.addr %s157, 3
      %s161 = sadd.s32 %s159, %s160
      %s162 = smul.addr %s161, 4
      %s163 = scalar_lea.vmem %s2, %s162
      %p164 = scmp.lt.s32.totalorder %s17, 1
      %s165 = scalar_select %p164, %s17, 1
      %s166 = smul.addr %s165, 6
      %s167 = smul.addr %s166, 4
      %s168 = scalar_lea.vmem %s0, %s167
      %p169 = scmp.lt.s32.totalorder %s18, 0
      %s170 = scalar_select %p169, %s18, 0
      %s171 = smul.addr %s170, 4
      %s172 = scalar_lea.vmem %s1, %s171
      %p173 = scmp.lt.s32.totalorder %s17, 1
      %s174 = scalar_select %p173, %s17, 1
      %p175 = scmp.lt.s32.totalorder %s18, 0
      %s176 = scalar_select %p175, %s18, 0
      %s177 = smul.addr %s174, 3
      %s178 = sadd.s32 %s176, %s177
      %s179 = smul.addr %s178, 4
      %s180 = scalar_lea.vmem %s2, %s179
      %v182 = vld [vmem:[%s168] sm:$0xf]
      %v183 = vld [vmem:[%s168 + $0x4] sm:$0xf]
      %v184 = vld [vmem:[%s168 + $0x8] sm:$0xf]
      %v185 = vld [vmem:[%s172] sm:$0xf]
      %v186 = vld [vmem:[%s172 + $0x4] sm:$0xf]
      %v187 = vld [vmem:[%s172 + $0x8] sm:$0xf]
      %v188 = vld [vmem:[%s172 + $0xc] sm:$0xf]
      %v189 = vld [vmem:[%s172 + $0x10] sm:$0xf]
      %v190 = vld [vmem:[%s172 + $0x14] sm:$0xf]
      %v191 = vld [vmem:[%s172 + $0x18] sm:$0xf]
      %v192 = vld [vmem:[%s172 + $0x1c] sm:$0xf]
      %v193 = vld [vmem:[%s172 + $0x20] sm:$0xf]
      %v194 = vld [vmem:[%s172 + $0x24] sm:$0xf]
      %v195 = vld [vmem:[%s172 + $0x28] sm:$0xf]
      %v196 = vld [vmem:[%s172 + $0x2c] sm:$0xf]
      %v197 = vld [vmem:[%s172 + $0x30] sm:$0xf]
      %v198 = vld [vmem:[%s172 + $0x34] sm:$0xf]
      %v199 = vld [vmem:[%s172 + $0x38] sm:$0xf]
      %v200 = vld [vmem:[%s172 + $0x3c] sm:$0xf]
      %v201 = vld [vmem:[%s168 + $0xc] sm:$0x1]
      %s202 = scalar_lea.vmem %s172, 64
      %v203 = vld [vmem:[%s202] sm:$0xf]
      %v204 = vld [vmem:[%s202 + $0x4] sm:$0xf]
      %v205 = vld [vmem:[%s202 + $0x8] sm:$0xf]
      %v206 = vld [vmem:[%s202 + $0xc] sm:$0xf]
      %v207 = vld [vmem:[%s202 + $0x10] sm:$0xf]
      %v208 = vld [vmem:[%s202 + $0x14] sm:$0xf]
      %v209 = vld [vmem:[%s202 + $0x18] sm:$0xf]
      %v210 = vld [vmem:[%s202 + $0x1c] sm:$0xf]
      %v211 = vld [vmem:[%s202 + $0x20] sm:$0xf]
      %v212 = vld [vmem:[%s202 + $0x24] sm:$0xf]
      %v213 = vld [vmem:[%s202 + $0x28] sm:$0xf]
      %v214 = vld [vmem:[%s202 + $0x2c] sm:$0xf]
      %v215 = vld [vmem:[%s202 + $0x30] sm:$0xf]
      %v216 = vld [vmem:[%s202 + $0x34] sm:$0xf]
      %v217 = vld [vmem:[%s202 + $0x38] sm:$0xf]
      %v218 = vld [vmem:[%s202 + $0x3c] sm:$0xf]
      %v223 = vunpack.c.l.b16 %v182
      %v224 = vunpack.c.l.b16 %v183
      %v225 = vunpack.c.l.b16 %v184
      %v226 = vunpack.c.l.b16 %v201
      %v227 = vpack.c.b16 %v224, %v223
      %v228 = vpack.c.b16 %v226, %v225
      %vm229 = vsmask.f32 7424
      %v231 = vshrl.u32 %v227, 16
      %v233 = vshll.u32 %v227, 16
      %v235 = vrot.slane %v233, 1
      %v236 = vor.u32 %v231, %v235
      %v238 = vshll.u32 %v228, 16
      %v240 = vrot.slane %v238, 1
      %v241 = vsel %vm229, %v236, %v240
      %v242 = vshrl.u32 %v228, 16
      %v244 = vor.u32 %v242, %v240
      %v263 = vunpack.c.l.b16 %v203
      %v264 = vunpack.c.l.b16 %v204
      %v265 = vunpack.c.l.b16 %v205
      %v266 = vunpack.c.l.b16 %v206
      %v267 = vunpack.c.l.b16 %v207
      %v268 = vunpack.c.l.b16 %v208
      %v269 = vunpack.c.l.b16 %v209
      %v270 = vunpack.c.l.b16 %v210
      %v271 = vunpack.c.l.b16 %v211
      %v272 = vunpack.c.l.b16 %v212
      %v273 = vunpack.c.l.b16 %v213
      %v274 = vunpack.c.l.b16 %v214
      %v275 = vunpack.c.l.b16 %v215
      %v276 = vunpack.c.l.b16 %v216
      %v277 = vunpack.c.l.b16 %v217
      %v278 = vunpack.c.l.b16 %v218
      %v279 = vpack.c.b16 %v264, %v263
      %v280 = vpack.c.b16 %v266, %v265
      %v281 = vpack.c.b16 %v268, %v267
      %v282 = vpack.c.b16 %v270, %v269
      %v283 = vpack.c.b16 %v272, %v271
      %v284 = vpack.c.b16 %v274, %v273
      %v285 = vpack.c.b16 %v276, %v275
      %v286 = vpack.c.b16 %v278, %v277
      %295 = vmatprep.subr.bf16.mxu0 0
      %296 = vmatpush1.bf16.msra.mxu0 %v286
      %297 = vmatprep.subr.bf16.mxu0 0
      %298 = vmatpush1.bf16.msra.mxu0 %v285
      %299 = vmatprep.subr.bf16.mxu0 0
      %300 = vmatpush1.bf16.msra.mxu0 %v284
      %301 = vmatprep.subr.bf16.mxu0 0
      %302 = vmatpush1.bf16.msra.mxu0 %v283
      %303 = vmatprep.subr.bf16.mxu0 0
      %304 = vmatpush1.bf16.msra.mxu0 %v282
      %305 = vmatprep.subr.bf16.mxu0 0
      %306 = vmatpush1.bf16.msra.mxu0 %v281
      %307 = vmatprep.subr.bf16.mxu0 0
      %308 = vmatpush1.bf16.msra.mxu0 %v280
      %309 = vmatprep.subr.bf16.mxu0 0
      %310 = vmatpush1.bf16.msra.mxu0 %v279
      %311 = vmatprep.subr.bf16.mxu0 0
      %312 = vmatpush2.bf16.msra.mxu0 0
      %313 = vmatprep.subr.bf16.mxu0 0
      %314 = vmatpush2.bf16.msra.mxu0 0
      %315 = vmatprep.subr.bf16.mxu0 0
      %316 = vmatpush2.bf16.msra.mxu0 0
      %317 = vmatprep.subr.bf16.mxu0 0
      %318 = vmatpush2.bf16.msra.mxu0 0
      %319 = vmatprep.subr.bf16.mxu0 0
      %320 = vmatpush2.bf16.msra.mxu0 0
      %321 = vmatprep.subr.bf16.mxu0 0
      %322 = vmatpush2.bf16.msra.mxu0 0
      %323 = vmatprep.subr.bf16.mxu0 0
      %324 = vmatpush2.bf16.msra.mxu0 0
      %325 = vmatprep.subr.bf16.mxu0 0
      %326 = vmatpush2.bf16.msra.mxu0 0
      %327 = vmatprep.mubr.bf16.mxu0 0
      %328 = vmatmul.mubr.bf16.gmra.mxu0 %v241
      %v329 = vpop.f32.mrf.mxu0
      %v330 = vadd.f32 0.0, %v329
      %v331 = vpop.f32.mrf.mxu0
      %v332 = vpop.f32.mrf.mxu0
      %v333 = vadd.f32 0.0, %v332
      %v334 = vpop.f32.mrf.mxu0
      %335 = vmatprep.mubr.bf16.mxu0 0
      %336 = vmatmul.mubr.bf16.gmra.mxu0 %v244
      %v337 = vpop.f32.mrf.mxu0
      %v338 = vadd.f32 0.0, %v337
      %v339 = vpop.f32.mrf.mxu0
      %v340 = vpop.f32.mrf.mxu0
      %v341 = vpop.f32.mrf.mxu0
      %342 = vdwg.mxu0
      %v343 = vpack.c.b16 %v225, %v225
      %v362 = vunpack.c.l.b16 %v185
      %v363 = vunpack.c.l.b16 %v186
      %v364 = vunpack.c.l.b16 %v187
      %v365 = vunpack.c.l.b16 %v188
      %v366 = vunpack.c.l.b16 %v189
      %v367 = vunpack.c.l.b16 %v190
      %v368 = vunpack.c.l.b16 %v191
      %v369 = vunpack.c.l.b16 %v192
      %v370 = vunpack.c.l.b16 %v193
      %v371 = vunpack.c.l.b16 %v194
      %v372 = vunpack.c.l.b16 %v195
      %v373 = vunpack.c.l.b16 %v196
      %v374 = vunpack.c.l.b16 %v197
      %v375 = vunpack.c.l.b16 %v198
      %v376 = vunpack.c.l.b16 %v199
      %v377 = vunpack.c.l.b16 %v200
      %v378 = vpack.c.b16 %v363, %v362
      %v379 = vpack.c.b16 %v365, %v364
      %v380 = vpack.c.b16 %v367, %v366
      %v381 = vpack.c.b16 %v369, %v368
      %v382 = vpack.c.b16 %v371, %v370
      %v383 = vpack.c.b16 %v373, %v372
      %v384 = vpack.c.b16 %v375, %v374
      %v385 = vpack.c.b16 %v377, %v376
      %394 = vmatprep.subr.bf16.mxu0 0
      %395 = vmatpush1.bf16.msra.mxu0 %v385
      %396 = vmatprep.subr.bf16.mxu0 0
      %397 = vmatpush1.bf16.msra.mxu0 %v384
      %398 = vmatprep.subr.bf16.mxu0 0
      %399 = vmatpush1.bf16.msra.mxu0 %v383
      %400 = vmatprep.subr.bf16.mxu0 0
      %401 = vmatpush1.bf16.msra.mxu0 %v382
      %402 = vmatprep.subr.bf16.mxu0 0
      %403 = vmatpush1.bf16.msra.mxu0 %v381
      %404 = vmatprep.subr.bf16.mxu0 0
      %405 = vmatpush1.bf16.msra.mxu0 %v380
      %406 = vmatprep.subr.bf16.mxu0 0
      %407 = vmatpush1.bf16.msra.mxu0 %v379
      %408 = vmatprep.subr.bf16.mxu0 0
      %409 = vmatpush1.bf16.msra.mxu0 %v378
      %410 = vmatprep.subr.bf16.mxu0 0
      %411 = vmatpush2.bf16.msra.mxu0 0
      %412 = vmatprep.subr.bf16.mxu0 0
      %413 = vmatpush2.bf16.msra.mxu0 0
      %414 = vmatprep.subr.bf16.mxu0 0
      %415 = vmatpush2.bf16.msra.mxu0 0
      %416 = vmatprep.subr.bf16.mxu0 0
      %417 = vmatpush2.bf16.msra.mxu0 0
      %418 = vmatprep.subr.bf16.mxu0 0
      %419 = vmatpush2.bf16.msra.mxu0 0
      %420 = vmatprep.subr.bf16.mxu0 0
      %421 = vmatpush2.bf16.msra.mxu0 0
      %422 = vmatprep.subr.bf16.mxu0 0
      %423 = vmatpush2.bf16.msra.mxu0 0
      %424 = vmatprep.subr.bf16.mxu0 0
      %425 = vmatpush2.bf16.msra.mxu0 0
      %426 = vmatprep.mubr.bf16.mxu0 0
      %427 = vmatmul.mubr.bf16.gmra.mxu0 %v227
      %v428 = vpop.f32.mrf.mxu0
      %v429 = vadd.f32 %v330, %v428
      %v430 = vpop.f32.mrf.mxu0
      %v431 = vpop.f32.mrf.mxu0
      %v432 = vadd.f32 %v333, %v431
      %v433 = vpop.f32.mrf.mxu0
      %434 = vmatprep.mubr.bf16.mxu0 0
      %435 = vmatmul.mubr.bf16.gmra.mxu0 %v343
      %v436 = vpop.f32.mrf.mxu0
      %v437 = vadd.f32 %v338, %v436
      %v438 = vpop.f32.mrf.mxu0
      %v439 = vpop.f32.mrf.mxu0
      %v440 = vpop.f32.mrf.mxu0
      %441 = vdwg.mxu0
      %v442 = vld [vmem:[%s168] sm:$0xe]
      %s443 = scalar_lea.vmem %s172, 128
      %v444 = vld [vmem:[%s443] sm:$0xf]
      %v445 = vld [vmem:[%s443 + $0x4] sm:$0xf]
      %v446 = vld [vmem:[%s443 + $0x8] sm:$0xf]
      %v447 = vld [vmem:[%s443 + $0xc] sm:$0xf]
      %v448 = vld [vmem:[%s443 + $0x10] sm:$0xf]
      %v449 = vld [vmem:[%s443 + $0x14] sm:$0xf]
      %v450 = vld [vmem:[%s443 + $0x18] sm:$0xf]
      %v451 = vld [vmem:[%s443 + $0x1c] sm:$0xf]
      %v452 = vld [vmem:[%s443 + $0x20] sm:$0xf]
      %v453 = vld [vmem:[%s443 + $0x24] sm:$0xf]
      %v454 = vld [vmem:[%s443 + $0x28] sm:$0xf]
      %v455 = vld [vmem:[%s443 + $0x2c] sm:$0xf]
      %v456 = vld [vmem:[%s443 + $0x30] sm:$0xf]
      %v457 = vld [vmem:[%s443 + $0x34] sm:$0xf]
      %v458 = vld [vmem:[%s443 + $0x38] sm:$0xf]
      %v459 = vld [vmem:[%s443 + $0x3c] sm:$0xf]
      %v461 = vunpack.c.l.b16 %v442
      %v462 = vpack.c.b16 %v224, %v461
      %vm463 = vcmask 1046528
      %v464 = vrot.slane %v462, 1
      %v465 = vrot.slane %v228, 1
      %v466 = vsel %vm463, %v464, %v465
      %v485 = vunpack.c.l.b16 %v444
      %v486 = vunpack.c.l.b16 %v445
      %v487 = vunpack.c.l.b16 %v446
      %v488 = vunpack.c.l.b16 %v447
      %v489 = vunpack.c.l.b16 %v448
      %v490 = vunpack.c.l.b16 %v449
      %v491 = vunpack.c.l.b16 %v450
      %v492 = vunpack.c.l.b16 %v451
      %v493 = vunpack.c.l.b16 %v452
      %v494 = vunpack.c.l.b16 %v453
      %v495 = vunpack.c.l.b16 %v454
      %v496 = vunpack.c.l.b16 %v455
      %v497 = vunpack.c.l.b16 %v456
      %v498 = vunpack.c.l.b16 %v457
      %v499 = vunpack.c.l.b16 %v458
      %v500 = vunpack.c.l.b16 %v459
      %v501 = vpack.c.b16 %v486, %v485
      %v502 = vpack.c.b16 %v488, %v487
      %v503 = vpack.c.b16 %v490, %v489
      %v504 = vpack.c.b16 %v492, %v491
      %v505 = vpack.c.b16 %v494, %v493
      %v506 = vpack.c.b16 %v496, %v495
      %v507 = vpack.c.b16 %v498, %v497
      %v508 = vpack.c.b16 %v500, %v499
      %517 = vmatprep.subr.bf16.mxu0 0
      %518 = vmatpush1.bf16.msra.mxu0 %v508
      %519 = vmatprep.subr.bf16.mxu0 0
      %520 = vmatpush1.bf16.msra.mxu0 %v507
      %521 = vmatprep.subr.bf16.mxu0 0
      %522 = vmatpush1.bf16.msra.mxu0 %v506
      %523 = vmatprep.subr.bf16.mxu0 0
      %524 = vmatpush1.bf16.msra.mxu0 %v505
      %525 = vmatprep.subr.bf16.mxu0 0
      %526 = vmatpush1.bf16.msra.mxu0 %v504
      %527 = vmatprep.subr.bf16.mxu0 0
      %528 = vmatpush1.bf16.msra.mxu0 %v503
      %529 = vmatprep.subr.bf16.mxu0 0
      %530 = vmatpush1.bf16.msra.mxu0 %v502
      %531 = vmatprep.subr.bf16.mxu0 0
      %532 = vmatpush1.bf16.msra.mxu0 %v501
      %533 = vmatprep.subr.bf16.mxu0 0
      %534 = vmatpush2.bf16.msra.mxu0 0
      %535 = vmatprep.subr.bf16.mxu0 0
      %536 = vmatpush2.bf16.msra.mxu0 0
      %537 = vmatprep.subr.bf16.mxu0 0
      %538 = vmatpush2.bf16.msra.mxu0 0
      %539 = vmatprep.subr.bf16.mxu0 0
      %540 = vmatpush2.bf16.msra.mxu0 0
      %541 = vmatprep.subr.bf16.mxu0 0
      %542 = vmatpush2.bf16.msra.mxu0 0
      %543 = vmatprep.subr.bf16.mxu0 0
      %544 = vmatpush2.bf16.msra.mxu0 0
      %545 = vmatprep.subr.bf16.mxu0 0
      %546 = vmatpush2.bf16.msra.mxu0 0
      %547 = vmatprep.subr.bf16.mxu0 0
      %548 = vmatpush2.bf16.msra.mxu0 0
      %549 = vmatprep.mubr.bf16.mxu0 0
      %550 = vmatmul.mubr.bf16.gmra.mxu0 %v466
      %v551 = vpop.f32.mrf.mxu0
      %v552 = vadd.f32 0.0, %v551
      %v553 = vpop.f32.mrf.mxu0
      %v554 = vpop.f32.mrf.mxu0
      %v555 = vadd.f32 0.0, %v554
      %v556 = vpop.f32.mrf.mxu0
      %557 = vmatprep.mubr.bf16.mxu0 0
      %558 = vmatmul.mubr.bf16.gmra.mxu0 %v465
      %v559 = vpop.f32.mrf.mxu0
      %v560 = vadd.f32 0.0, %v559
      %v561 = vpop.f32.mrf.mxu0
      %v562 = vpop.f32.mrf.mxu0
      %v563 = vpop.f32.mrf.mxu0
      %564 = vdwg.mxu0
      %v565 = vadd.f32 %v429, %v552
      %v566 = vadd.f32 %v432, %v555
      %v567 = vadd.f32 %v437, %v560
      %v568 = vld [vmem:[%s168] sm:$0x8]
      %v569 = vld [vmem:[%s168 + $0xc] sm:$0x7]
      %s570 = scalar_lea.vmem %s172, 192
      %v571 = vld [vmem:[%s570] sm:$0xf]
      %v572 = vld [vmem:[%s570 + $0x4] sm:$0xf]
      %v573 = vld [vmem:[%s570 + $0x8] sm:$0xf]
      %v574 = vld [vmem:[%s570 + $0xc] sm:$0xf]
      %v575 = vld [vmem:[%s570 + $0x10] sm:$0xf]
      %v576 = vld [vmem:[%s570 + $0x14] sm:$0xf]
      %v577 = vld [vmem:[%s570 + $0x18] sm:$0xf]
      %v578 = vld [vmem:[%s570 + $0x1c] sm:$0xf]
      %v579 = vld [vmem:[%s570 + $0x20] sm:$0xf]
      %v580 = vld [vmem:[%s570 + $0x24] sm:$0xf]
      %v581 = vld [vmem:[%s570 + $0x28] sm:$0xf]
      %v582 = vld [vmem:[%s570 + $0x2c] sm:$0xf]
      %v583 = vld [vmem:[%s570 + $0x30] sm:$0xf]
      %v584 = vld [vmem:[%s570 + $0x34] sm:$0xf]
      %v585 = vld [vmem:[%s570 + $0x38] sm:$0xf]
      %v586 = vld [vmem:[%s570 + $0x3c] sm:$0xf]
      %v589 = vunpack.c.l.b16 %v568
      %v590 = vunpack.c.l.b16 %v569
      %v591 = vpack.c.b16 %v224, %v589
      %v592 = vpack.c.b16 %v590, %v225
      %vm593 = vcmask 1044480
      %v594 = vrot.slane %v591, 3
      %v595 = vrot.slane %v592, 3
      %v596 = vsel %vm593, %v594, %v595
      %v615 = vunpack.c.l.b16 %v571
      %v616 = vunpack.c.l.b16 %v572
      %v617 = vunpack.c.l.b16 %v573
      %v618 = vunpack.c.l.b16 %v574
      %v619 = vunpack.c.l.b16 %v575
      %v620 = vunpack.c.l.b16 %v576
      %v621 = vunpack.c.l.b16 %v577
      %v622 = vunpack.c.l.b16 %v578
      %v623 = vunpack.c.l.b16 %v579
      %v624 = vunpack.c.l.b16 %v580
      %v625 = vunpack.c.l.b16 %v581
      %v626 = vunpack.c.l.b16 %v582
      %v627 = vunpack.c.l.b16 %v583
      %v628 = vunpack.c.l.b16 %v584
      %v629 = vunpack.c.l.b16 %v585
      %v630 = vunpack.c.l.b16 %v586
      %v631 = vpack.c.b16 %v616, %v615
      %v632 = vpack.c.b16 %v618, %v617
      %v633 = vpack.c.b16 %v620, %v619
      %v634 = vpack.c.b16 %v622, %v621
      %v635 = vpack.c.b16 %v624, %v623
      %v636 = vpack.c.b16 %v626, %v625
      %v637 = vpack.c.b16 %v628, %v627
      %v638 = vpack.c.b16 %v630, %v629
      %647 = vmatprep.subr.bf16.mxu0 0
      %648 = vmatpush1.bf16.msra.mxu0 %v638
      %649 = vmatprep.subr.bf16.mxu0 0
      %650 = vmatpush1.bf16.msra.mxu0 %v637
      %651 = vmatprep.subr.bf16.mxu0 0
      %652 = vmatpush1.bf16.msra.mxu0 %v636
      %653 = vmatprep.subr.bf16.mxu0 0
      %654 = vmatpush1.bf16.msra.mxu0 %v635
      %655 = vmatprep.subr.bf16.mxu0 0
      %656 = vmatpush1.bf16.msra.mxu0 %v634
      %657 = vmatprep.subr.bf16.mxu0 0
      %658 = vmatpush1.bf16.msra.mxu0 %v633
      %659 = vmatprep.subr.bf16.mxu0 0
      %660 = vmatpush1.bf16.msra.mxu0 %v632
      %661 = vmatprep.subr.bf16.mxu0 0
      %662 = vmatpush1.bf16.msra.mxu0 %v631
      %663 = vmatprep.subr.bf16.mxu0 0
      %664 = vmatpush2.bf16.msra.mxu0 0
      %665 = vmatprep.subr.bf16.mxu0 0
      %666 = vmatpush2.bf16.msra.mxu0 0
      %667 = vmatprep.subr.bf16.mxu0 0
      %668 = vmatpush2.bf16.msra.mxu0 0
      %669 = vmatprep.subr.bf16.mxu0 0
      %670 = vmatpush2.bf16.msra.mxu0 0
      %671 = vmatprep.subr.bf16.mxu0 0
      %672 = vmatpush2.bf16.msra.mxu0 0
      %673 = vmatprep.subr.bf16.mxu0 0
      %674 = vmatpush2.bf16.msra.mxu0 0
      %675 = vmatprep.subr.bf16.mxu0 0
      %676 = vmatpush2.bf16.msra.mxu0 0
      %677 = vmatprep.subr.bf16.mxu0 0
      %678 = vmatpush2.bf16.msra.mxu0 0
      %679 = vmatprep.mubr.bf16.mxu0 0
      %680 = vmatmul.mubr.bf16.gmra.mxu0 %v596
      %v681 = vpop.f32.mrf.mxu0
      %v682 = vadd.f32 0.0, %v681
      %v683 = vpop.f32.mrf.mxu0
      %v684 = vpop.f32.mrf.mxu0
      %v685 = vadd.f32 0.0, %v684
      %v686 = vpop.f32.mrf.mxu0
      %687 = vmatprep.mubr.bf16.mxu0 0
      %688 = vmatmul.mubr.bf16.gmra.mxu0 %v595
      %v689 = vpop.f32.mrf.mxu0
      %v690 = vadd.f32 0.0, %v689
      %v691 = vpop.f32.mrf.mxu0
      %v692 = vpop.f32.mrf.mxu0
      %v693 = vpop.f32.mrf.mxu0
      %694 = vdwg.mxu0
      %v695 = vadd.f32 %v565, %v682
      %v696 = vadd.f32 %v566, %v685
      %v697 = vadd.f32 %v567, %v690
      %v698 = vld [vmem:[%s168 + $0xc] sm:$0xf]
      %s699 = scalar_lea.vmem %s172, 256
      %v700 = vld [vmem:[%s699] sm:$0xf]
      %v701 = vld [vmem:[%s699 + $0x4] sm:$0xf]
      %v702 = vld [vmem:[%s699 + $0x8] sm:$0xf]
      %v703 = vld [vmem:[%s699 + $0xc] sm:$0xf]
      %v704 = vld [vmem:[%s699 + $0x10] sm:$0xf]
      %v705 = vld [vmem:[%s699 + $0x14] sm:$0xf]
      %v706 = vld [vmem:[%s699 + $0x18] sm:$0xf]
      %v707 = vld [vmem:[%s699 + $0x1c] sm:$0xf]
      %v708 = vld [vmem:[%s699 + $0x20] sm:$0xf]
      %v709 = vld [vmem:[%s699 + $0x24] sm:$0xf]
      %v710 = vld [vmem:[%s699 + $0x28] sm:$0xf]
      %v711 = vld [vmem:[%s699 + $0x2c] sm:$0xf]
      %v712 = vld [vmem:[%s699 + $0x30] sm:$0xf]
      %v713 = vld [vmem:[%s699 + $0x34] sm:$0xf]
      %v714 = vld [vmem:[%s699 + $0x38] sm:$0xf]
      %v715 = vld [vmem:[%s699 + $0x3c] sm:$0xf]
      %v717 = vunpack.c.l.b16 %v698
      %v718 = vpack.c.b16 %v717, %v225
      %vm719 = vsmask.f32 4352
      %v721 = vshrl.u32 %v591, 16
      %v723 = vrot.slane %v721, 3
      %v724 = vshll.u32 %v591, 16
      %v726 = vrot.slane %v724, 4
      %v727 = vor.u32 %v723, %v726
      %v729 = vshrl.u32 %v718, 16
      %v731 = vrot.slane %v729, 3
      %v732 = vshll.u32 %v718, 16
      %v734 = vrot.slane %v732, 4
      %v735 = vor.u32 %v731, %v734
      %v736 = vsel %vm719, %v727, %v735
      %v755 = vunpack.c.l.b16 %v700
      %v756 = vunpack.c.l.b16 %v701
      %v757 = vunpack.c.l.b16 %v702
      %v758 = vunpack.c.l.b16 %v703
      %v759 = vunpack.c.l.b16 %v704
      %v760 = vunpack.c.l.b16 %v705
      %v761 = vunpack.c.l.b16 %v706
      %v762 = vunpack.c.l.b16 %v707
      %v763 = vunpack.c.l.b16 %v708
      %v764 = vunpack.c.l.b16 %v709
      %v765 = vunpack.c.l.b16 %v710
      %v766 = vunpack.c.l.b16 %v711
      %v767 = vunpack.c.l.b16 %v712
      %v768 = vunpack.c.l.b16 %v713
      %v769 = vunpack.c.l.b16 %v714
      %v770 = vunpack.c.l.b16 %v715
      %v771 = vpack.c.b16 %v756, %v755
      %v772 = vpack.c.b16 %v758, %v757
      %v773 = vpack.c.b16 %v760, %v759
      %v774 = vpack.c.b16 %v762, %v761
      %v775 = vpack.c.b16 %v764, %v763
      %v776 = vpack.c.b16 %v766, %v765
      %v777 = vpack.c.b16 %v768, %v767
      %v778 = vpack.c.b16 %v770, %v769
      %787 = vmatprep.subr.bf16.mxu0 0
      %788 = vmatpush1.bf16.msra.mxu0 %v778
      %789 = vmatprep.subr.bf16.mxu0 0
      %790 = vmatpush1.bf16.msra.mxu0 %v777
      %791 = vmatprep.subr.bf16.mxu0 0
      %792 = vmatpush1.bf16.msra.mxu0 %v776
      %793 = vmatprep.subr.bf16.mxu0 0
      %794 = vmatpush1.bf16.msra.mxu0 %v775
      %795 = vmatprep.subr.bf16.mxu0 0
      %796 = vmatpush1.bf16.msra.mxu0 %v774
      %797 = vmatprep.subr.bf16.mxu0 0
      %798 = vmatpush1.bf16.msra.mxu0 %v773
      %799 = vmatprep.subr.bf16.mxu0 0
      %800 = vmatpush1.bf16.msra.mxu0 %v772
      %801 = vmatprep.subr.bf16.mxu0 0
      %802 = vmatpush1.bf16.msra.mxu0 %v771
      %803 = vmatprep.subr.bf16.mxu0 0
      %804 = vmatpush2.bf16.msra.mxu0 0
      %805 = vmatprep.subr.bf16.mxu0 0
      %806 = vmatpush2.bf16.msra.mxu0 0
      %807 = vmatprep.subr.bf16.mxu0 0
      %808 = vmatpush2.bf16.msra.mxu0 0
      %809 = vmatprep.subr.bf16.mxu0 0
      %810 = vmatpush2.bf16.msra.mxu0 0
      %811 = vmatprep.subr.bf16.mxu0 0
      %812 = vmatpush2.bf16.msra.mxu0 0
      %813 = vmatprep.subr.bf16.mxu0 0
      %814 = vmatpush2.bf16.msra.mxu0 0
      %815 = vmatprep.subr.bf16.mxu0 0
      %816 = vmatpush2.bf16.msra.mxu0 0
      %817 = vmatprep.subr.bf16.mxu0 0
      %818 = vmatpush2.bf16.msra.mxu0 0
      %819 = vmatprep.mubr.bf16.mxu0 0
      %820 = vmatmul.mubr.bf16.gmra.mxu0 %v736
      %v821 = vpop.f32.mrf.mxu0
      %v822 = vadd.f32 0.0, %v821
      %v823 = vpop.f32.mrf.mxu0
      %v824 = vpop.f32.mrf.mxu0
      %v825 = vadd.f32 0.0, %v824
      %v826 = vpop.f32.mrf.mxu0
      %827 = vmatprep.mubr.bf16.mxu0 0
      %828 = vmatmul.mubr.bf16.gmra.mxu0 %v735
      %v829 = vpop.f32.mrf.mxu0
      %v830 = vadd.f32 0.0, %v829
      %v831 = vpop.f32.mrf.mxu0
      %v832 = vpop.f32.mrf.mxu0
      %v833 = vpop.f32.mrf.mxu0
      %834 = vdwg.mxu0
      %v835 = vadd.f32 %v695, %v822
      %v836 = vadd.f32 %v696, %v825
      %v837 = vadd.f32 %v697, %v830
      %s838 = scalar_lea.vmem %s172, 320
      %v839 = vld [vmem:[%s838] sm:$0xf]
      %v840 = vld [vmem:[%s838 + $0x4] sm:$0xf]
      %v841 = vld [vmem:[%s838 + $0x8] sm:$0xf]
      %v842 = vld [vmem:[%s838 + $0xc] sm:$0xf]
      %v843 = vld [vmem:[%s838 + $0x10] sm:$0xf]
      %v844 = vld [vmem:[%s838 + $0x14] sm:$0xf]
      %v845 = vld [vmem:[%s838 + $0x18] sm:$0xf]
      %v846 = vld [vmem:[%s838 + $0x1c] sm:$0xf]
      %v847 = vld [vmem:[%s838 + $0x20] sm:$0xf]
      %v848 = vld [vmem:[%s838 + $0x24] sm:$0xf]
      %v849 = vld [vmem:[%s838 + $0x28] sm:$0xf]
      %v850 = vld [vmem:[%s838 + $0x2c] sm:$0xf]
      %v851 = vld [vmem:[%s838 + $0x30] sm:$0xf]
      %v852 = vld [vmem:[%s838 + $0x34] sm:$0xf]
      %v853 = vld [vmem:[%s838 + $0x38] sm:$0xf]
      %v854 = vld [vmem:[%s838 + $0x3c] sm:$0xf]
      %v855 = vpack.c.b16 %v225, %v224
      %v856 = vpack.c.b16 %v717, %v717
      %v875 = vunpack.c.l.b16 %v839
      %v876 = vunpack.c.l.b16 %v840
      %v877 = vunpack.c.l.b16 %v841
      %v878 = vunpack.c.l.b16 %v842
      %v879 = vunpack.c.l.b16 %v843
      %v880 = vunpack.c.l.b16 %v844
      %v881 = vunpack.c.l.b16 %v845
      %v882 = vunpack.c.l.b16 %v846
      %v883 = vunpack.c.l.b16 %v847
      %v884 = vunpack.c.l.b16 %v848
      %v885 = vunpack.c.l.b16 %v849
      %v886 = vunpack.c.l.b16 %v850
      %v887 = vunpack.c.l.b16 %v851
      %v888 = vunpack.c.l.b16 %v852
      %v889 = vunpack.c.l.b16 %v853
      %v890 = vunpack.c.l.b16 %v854
      %v891 = vpack.c.b16 %v876, %v875
      %v892 = vpack.c.b16 %v878, %v877
      %v893 = vpack.c.b16 %v880, %v879
      %v894 = vpack.c.b16 %v882, %v881
      %v895 = vpack.c.b16 %v884, %v883
      %v896 = vpack.c.b16 %v886, %v885
      %v897 = vpack.c.b16 %v888, %v887
      %v898 = vpack.c.b16 %v890, %v889
      %907 = vmatprep.subr.bf16.mxu0 0
      %908 = vmatpush1.bf16.msra.mxu0 %v898
      %909 = vmatprep.subr.bf16.mxu0 0
      %910 = vmatpush1.bf16.msra.mxu0 %v897
      %911 = vmatprep.subr.bf16.mxu0 0
      %912 = vmatpush1.bf16.msra.mxu0 %v896
      %913 = vmatprep.subr.bf16.mxu0 0
      %914 = vmatpush1.bf16.msra.mxu0 %v895
      %915 = vmatprep.subr.bf16.mxu0 0
      %916 = vmatpush1.bf16.msra.mxu0 %v894
      %917 = vmatprep.subr.bf16.mxu0 0
      %918 = vmatpush1.bf16.msra.mxu0 %v893
      %919 = vmatprep.subr.bf16.mxu0 0
      %920 = vmatpush1.bf16.msra.mxu0 %v892
      %921 = vmatprep.subr.bf16.mxu0 0
      %922 = vmatpush1.bf16.msra.mxu0 %v891
      %923 = vmatprep.subr.bf16.mxu0 0
      %924 = vmatpush2.bf16.msra.mxu0 0
      %925 = vmatprep.subr.bf16.mxu0 0
      %926 = vmatpush2.bf16.msra.mxu0 0
      %927 = vmatprep.subr.bf16.mxu0 0
      %928 = vmatpush2.bf16.msra.mxu0 0
      %929 = vmatprep.subr.bf16.mxu0 0
      %930 = vmatpush2.bf16.msra.mxu0 0
      %931 = vmatprep.subr.bf16.mxu0 0
      %932 = vmatpush2.bf16.msra.mxu0 0
      %933 = vmatprep.subr.bf16.mxu0 0
      %934 = vmatpush2.bf16.msra.mxu0 0
      %935 = vmatprep.subr.bf16.mxu0 0
      %936 = vmatpush2.bf16.msra.mxu0 0
      %937 = vmatprep.subr.bf16.mxu0 0
      %938 = vmatpush2.bf16.msra.mxu0 0
      %939 = vmatprep.mubr.bf16.mxu0 0
      %940 = vmatmul.mubr.bf16.gmra.mxu0 %v855
      %v941 = vpop.f32.mrf.mxu0
      %v942 = vadd.f32 0.0, %v941
      %v943 = vpop.f32.mrf.mxu0
      %v944 = vpop.f32.mrf.mxu0
      %v945 = vadd.f32 0.0, %v944
      %v946 = vpop.f32.mrf.mxu0
      %947 = vmatprep.mubr.bf16.mxu0 0
      %948 = vmatmul.mubr.bf16.gmra.mxu0 %v856
      %v949 = vpop.f32.mrf.mxu0
      %v950 = vadd.f32 0.0, %v949
      %v951 = vpop.f32.mrf.mxu0
      %v952 = vpop.f32.mrf.mxu0
      %v953 = vpop.f32.mrf.mxu0
      %954 = vdwg.mxu0
      %v955 = vadd.f32 %v835, %v942
      %v956 = vadd.f32 %v836, %v945
      %v957 = vadd.f32 %v837, %v950
      %v958 = vld [vmem:[%s168 + $0x4] sm:$0xc]
      %v959 = vld [vmem:[%s168 + $0x8] sm:$0xf]
      %v960 = vld [vmem:[%s168 + $0xc] sm:$0xf]
      %v961 = vld [vmem:[%s168 + $0x10] sm:$0x3]
      %s962 = scalar_lea.vmem %s172, 384
      %v963 = vld [vmem:[%s962] sm:$0xf]
      %v964 = vld [vmem:[%s962 + $0x4] sm:$0xf]
      %v965 = vld [vmem:[%s962 + $0x8] sm:$0xf]
      %v966 = vld [vmem:[%s962 + $0xc] sm:$0xf]
      %v967 = vld [vmem:[%s962 + $0x10] sm:$0xf]
      %v968 = vld [vmem:[%s962 + $0x14] sm:$0xf]
      %v969 = vld [vmem:[%s962 + $0x18] sm:$0xf]
      %v970 = vld [vmem:[%s962 + $0x1c] sm:$0xf]
      %v971 = vld [vmem:[%s962 + $0x20] sm:$0xf]
      %v972 = vld [vmem:[%s962 + $0x24] sm:$0xf]
      %v973 = vld [vmem:[%s962 + $0x28] sm:$0xf]
      %v974 = vld [vmem:[%s962 + $0x2c] sm:$0xf]
      %v975 = vld [vmem:[%s962 + $0x30] sm:$0xf]
      %v976 = vld [vmem:[%s962 + $0x34] sm:$0xf]
      %v977 = vld [vmem:[%s962 + $0x38] sm:$0xf]
      %v978 = vld [vmem:[%s962 + $0x3c] sm:$0xf]
      %v983 = vunpack.c.l.b16 %v958
      %v984 = vunpack.c.l.b16 %v959
      %v985 = vunpack.c.l.b16 %v960
      %v986 = vunpack.c.l.b16 %v961
      %v987 = vpack.c.b16 %v984, %v983
      %v988 = vpack.c.b16 %v986, %v985
      %vm989 = vcmask 1045504
      %v990 = vrot.slane %v987, 2
      %v991 = vrot.slane %v988, 2
      %v992 = vsel %vm989, %v990, %v991
      %v1011 = vunpack.c.l.b16 %v963
      %v1012 = vunpack.c.l.b16 %v964
      %v1013 = vunpack.c.l.b16 %v965
      %v1014 = vunpack.c.l.b16 %v966
      %v1015 = vunpack.c.l.b16 %v967
      %v1016 = vunpack.c.l.b16 %v968
      %v1017 = vunpack.c.l.b16 %v969
      %v1018 = vunpack.c.l.b16 %v970
      %v1019 = vunpack.c.l.b16 %v971
      %v1020 = vunpack.c.l.b16 %v972
      %v1021 = vunpack.c.l.b16 %v973
      %v1022 = vunpack.c.l.b16 %v974
      %v1023 = vunpack.c.l.b16 %v975
      %v1024 = vunpack.c.l.b16 %v976
      %v1025 = vunpack.c.l.b16 %v977
      %v1026 = vunpack.c.l.b16 %v978
      %v1027 = vpack.c.b16 %v1012, %v1011
      %v1028 = vpack.c.b16 %v1014, %v1013
      %v1029 = vpack.c.b16 %v1016, %v1015
      %v1030 = vpack.c.b16 %v1018, %v1017
      %v1031 = vpack.c.b16 %v1020, %v1019
      %v1032 = vpack.c.b16 %v1022, %v1021
      %v1033 = vpack.c.b16 %v1024, %v1023
      %v1034 = vpack.c.b16 %v1026, %v1025
      %1043 = vmatprep.subr.bf16.mxu0 0
      %1044 = vmatpush1.bf16.msra.mxu0 %v1034
      %1045 = vmatprep.subr.bf16.mxu0 0
      %1046 = vmatpush1.bf16.msra.mxu0 %v1033
      %1047 = vmatprep.subr.bf16.mxu0 0
      %1048 = vmatpush1.bf16.msra.mxu0 %v1032
      %1049 = vmatprep.subr.bf16.mxu0 0
      %1050 = vmatpush1.bf16.msra.mxu0 %v1031
      %1051 = vmatprep.subr.bf16.mxu0 0
      %1052 = vmatpush1.bf16.msra.mxu0 %v1030
      %1053 = vmatprep.subr.bf16.mxu0 0
      %1054 = vmatpush1.bf16.msra.mxu0 %v1029
      %1055 = vmatprep.subr.bf16.mxu0 0
      %1056 = vmatpush1.bf16.msra.mxu0 %v1028
      %1057 = vmatprep.subr.bf16.mxu0 0
      %1058 = vmatpush1.bf16.msra.mxu0 %v1027
      %1059 = vmatprep.subr.bf16.mxu0 0
      %1060 = vmatpush2.bf16.msra.mxu0 0
      %1061 = vmatprep.subr.bf16.mxu0 0
      %1062 = vmatpush2.bf16.msra.mxu0 0
      %1063 = vmatprep.subr.bf16.mxu0 0
      %1064 = vmatpush2.bf16.msra.mxu0 0
      %1065 = vmatprep.subr.bf16.mxu0 0
      %1066 = vmatpush2.bf16.msra.mxu0 0
      %1067 = vmatprep.subr.bf16.mxu0 0
      %1068 = vmatpush2.bf16.msra.mxu0 0
      %1069 = vmatprep.subr.bf16.mxu0 0
      %1070 = vmatpush2.bf16.msra.mxu0 0
      %1071 = vmatprep.subr.bf16.mxu0 0
      %1072 = vmatpush2.bf16.msra.mxu0 0
      %1073 = vmatprep.subr.bf16.mxu0 0
      %1074 = vmatpush2.bf16.msra.mxu0 0
      %1075 = vmatprep.mubr.bf16.mxu0 0
      %1076 = vmatmul.mubr.bf16.gmra.mxu0 %v992
      %v1077 = vpop.f32.mrf.mxu0
      %v1078 = vadd.f32 0.0, %v1077
      %v1079 = vpop.f32.mrf.mxu0
      %v1080 = vpop.f32.mrf.mxu0
      %v1081 = vadd.f32 0.0, %v1080
      %v1082 = vpop.f32.mrf.mxu0
      %1083 = vmatprep.mubr.bf16.mxu0 0
      %1084 = vmatmul.mubr.bf16.gmra.mxu0 %v991
      %v1085 = vpop.f32.mrf.mxu0
      %v1086 = vadd.f32 0.0, %v1085
      %v1087 = vpop.f32.mrf.mxu0
      %v1088 = vpop.f32.mrf.mxu0
      %v1089 = vpop.f32.mrf.mxu0
      %1090 = vdwg.mxu0
      %v1091 = vadd.f32 %v955, %v1078
      %v1092 = vadd.f32 %v956, %v1081
      %v1093 = vadd.f32 %v957, %v1086
      %v1094 = vld [vmem:[%s168 + $0x10] sm:$0x7]
      %s1095 = scalar_lea.vmem %s172, 448
      %v1096 = vld [vmem:[%s1095] sm:$0xf]
      %v1097 = vld [vmem:[%s1095 + $0x4] sm:$0xf]
      %v1098 = vld [vmem:[%s1095 + $0x8] sm:$0xf]
      %v1099 = vld [vmem:[%s1095 + $0xc] sm:$0xf]
      %v1100 = vld [vmem:[%s1095 + $0x10] sm:$0xf]
      %v1101 = vld [vmem:[%s1095 + $0x14] sm:$0xf]
      %v1102 = vld [vmem:[%s1095 + $0x18] sm:$0xf]
      %v1103 = vld [vmem:[%s1095 + $0x1c] sm:$0xf]
      %v1104 = vld [vmem:[%s1095 + $0x20] sm:$0xf]
      %v1105 = vld [vmem:[%s1095 + $0x24] sm:$0xf]
      %v1106 = vld [vmem:[%s1095 + $0x28] sm:$0xf]
      %v1107 = vld [vmem:[%s1095 + $0x2c] sm:$0xf]
      %v1108 = vld [vmem:[%s1095 + $0x30] sm:$0xf]
      %v1109 = vld [vmem:[%s1095 + $0x34] sm:$0xf]
      %v1110 = vld [vmem:[%s1095 + $0x38] sm:$0xf]
      %v1111 = vld [vmem:[%s1095 + $0x3c] sm:$0xf]
      %v1113 = vunpack.c.l.b16 %v1094
      %v1114 = vpack.c.b16 %v1113, %v985
      %vm1115 = vsmask.f32 5376
      %v1117 = vshrl.u32 %v987, 16
      %v1119 = vrot.slane %v1117, 2
      %v1120 = vshll.u32 %v987, 16
      %v1122 = vrot.slane %v1120, 3
      %v1123 = vor.u32 %v1119, %v1122
      %v1125 = vshrl.u32 %v1114, 16
      %v1127 = vrot.slane %v1125, 2
      %v1128 = vshll.u32 %v1114, 16
      %v1130 = vrot.slane %v1128, 3
      %v1131 = vor.u32 %v1127, %v1130
      %v1132 = vsel %vm1115, %v1123, %v1131
      %v1151 = vunpack.c.l.b16 %v1096
      %v1152 = vunpack.c.l.b16 %v1097
      %v1153 = vunpack.c.l.b16 %v1098
      %v1154 = vunpack.c.l.b16 %v1099
      %v1155 = vunpack.c.l.b16 %v1100
      %v1156 = vunpack.c.l.b16 %v1101
      %v1157 = vunpack.c.l.b16 %v1102
      %v1158 = vunpack.c.l.b16 %v1103
      %v1159 = vunpack.c.l.b16 %v1104
      %v1160 = vunpack.c.l.b16 %v1105
      %v1161 = vunpack.c.l.b16 %v1106
      %v1162 = vunpack.c.l.b16 %v1107
      %v1163 = vunpack.c.l.b16 %v1108
      %v1164 = vunpack.c.l.b16 %v1109
      %v1165 = vunpack.c.l.b16 %v1110
      %v1166 = vunpack.c.l.b16 %v1111
      %v1167 = vpack.c.b16 %v1152, %v1151
      %v1168 = vpack.c.b16 %v1154, %v1153
      %v1169 = vpack.c.b16 %v1156, %v1155
      %v1170 = vpack.c.b16 %v1158, %v1157
      %v1171 = vpack.c.b16 %v1160, %v1159
      %v1172 = vpack.c.b16 %v1162, %v1161
      %v1173 = vpack.c.b16 %v1164, %v1163
      %v1174 = vpack.c.b16 %v1166, %v1165
      %1183 = vmatprep.subr.bf16.mxu0 0
      %1184 = vmatpush1.bf16.msra.mxu0 %v1174
      %1185 = vmatprep.subr.bf16.mxu0 0
      %1186 = vmatpush1.bf16.msra.mxu0 %v1173
      %1187 = vmatprep.subr.bf16.mxu0 0
      %1188 = vmatpush1.bf16.msra.mxu0 %v1172
      %1189 = vmatprep.subr.bf16.mxu0 0
      %1190 = vmatpush1.bf16.msra.mxu0 %v1171
      %1191 = vmatprep.subr.bf16.mxu0 0
      %1192 = vmatpush1.bf16.msra.mxu0 %v1170
      %1193 = vmatprep.subr.bf16.mxu0 0
      %1194 = vmatpush1.bf16.msra.mxu0 %v1169
      %1195 = vmatprep.subr.bf16.mxu0 0
      %1196 = vmatpush1.bf16.msra.mxu0 %v1168
      %1197 = vmatprep.subr.bf16.mxu0 0
      %1198 = vmatpush1.bf16.msra.mxu0 %v1167
      %1199 = vmatprep.subr.bf16.mxu0 0
      %1200 = vmatpush2.bf16.msra.mxu0 0
      %1201 = vmatprep.subr.bf16.mxu0 0
      %1202 = vmatpush2.bf16.msra.mxu0 0
      %1203 = vmatprep.subr.bf16.mxu0 0
      %1204 = vmatpush2.bf16.msra.mxu0 0
      %1205 = vmatprep.subr.bf16.mxu0 0
      %1206 = vmatpush2.bf16.msra.mxu0 0
      %1207 = vmatprep.subr.bf16.mxu0 0
      %1208 = vmatpush2.bf16.msra.mxu0 0
      %1209 = vmatprep.subr.bf16.mxu0 0
      %1210 = vmatpush2.bf16.msra.mxu0 0
      %1211 = vmatprep.subr.bf16.mxu0 0
      %1212 = vmatpush2.bf16.msra.mxu0 0
      %1213 = vmatprep.subr.bf16.mxu0 0
      %1214 = vmatpush2.bf16.msra.mxu0 0
      %1215 = vmatprep.mubr.bf16.mxu0 0
      %1216 = vmatmul.mubr.bf16.gmra.mxu0 %v1132
      %v1217 = vpop.f32.mrf.mxu0
      %v1218 = vadd.f32 0.0, %v1217
      %v1219 = vpop.f32.mrf.mxu0
      %v1220 = vpop.f32.mrf.mxu0
      %v1221 = vadd.f32 0.0, %v1220
      %v1222 = vpop.f32.mrf.mxu0
      %1223 = vmatprep.mubr.bf16.mxu0 0
      %1224 = vmatmul.mubr.bf16.gmra.mxu0 %v1131
      %v1225 = vpop.f32.mrf.mxu0
      %v1226 = vadd.f32 0.0, %v1225
      %v1227 = vpop.f32.mrf.mxu0
      %v1228 = vpop.f32.mrf.mxu0
      %v1229 = vpop.f32.mrf.mxu0
      %1230 = vdwg.mxu0
      %v1231 = vadd.f32 %v1091, %v1218
      %v1232 = vadd.f32 %v1092, %v1221
      %v1233 = vadd.f32 %v1093, %v1226
      %v1234 = vld [vmem:[%s168 + $0x4] sm:$0x8]
      %s1235 = scalar_lea.vmem %s172, 512
      %v1236 = vld [vmem:[%s1235] sm:$0xf]
      %v1237 = vld [vmem:[%s1235 + $0x4] sm:$0xf]
      %v1238 = vld [vmem:[%s1235 + $0x8] sm:$0xf]
      %v1239 = vld [vmem:[%s1235 + $0xc] sm:$0xf]
      %v1240 = vld [vmem:[%s1235 + $0x10] sm:$0xf]
      %v1241 = vld [vmem:[%s1235 + $0x14] sm:$0xf]
      %v1242 = vld [vmem:[%s1235 + $0x18] sm:$0xf]
      %v1243 = vld [vmem:[%s1235 + $0x1c] sm:$0xf]
      %v1244 = vld [vmem:[%s1235 + $0x20] sm:$0xf]
      %v1245 = vld [vmem:[%s1235 + $0x24] sm:$0xf]
      %v1246 = vld [vmem:[%s1235 + $0x28] sm:$0xf]
      %v1247 = vld [vmem:[%s1235 + $0x2c] sm:$0xf]
      %v1248 = vld [vmem:[%s1235 + $0x30] sm:$0xf]
      %v1249 = vld [vmem:[%s1235 + $0x34] sm:$0xf]
      %v1250 = vld [vmem:[%s1235 + $0x38] sm:$0xf]
      %v1251 = vld [vmem:[%s1235 + $0x3c] sm:$0xf]
      %v1253 = vunpack.c.l.b16 %v1234
      %v1254 = vpack.c.b16 %v984, %v1253
      %v1255 = vrot.slane %v1254, 3
      %v1256 = vrot.slane %v1114, 3
      %v1257 = vsel %vm593, %v1255, %v1256
      %v1276 = vunpack.c.l.b16 %v1236
      %v1277 = vunpack.c.l.b16 %v1237
      %v1278 = vunpack.c.l.b16 %v1238
      %v1279 = vunpack.c.l.b16 %v1239
      %v1280 = vunpack.c.l.b16 %v1240
      %v1281 = vunpack.c.l.b16 %v1241
      %v1282 = vunpack.c.l.b16 %v1242
      %v1283 = vunpack.c.l.b16 %v1243
      %v1284 = vunpack.c.l.b16 %v1244
      %v1285 = vunpack.c.l.b16 %v1245
      %v1286 = vunpack.c.l.b16 %v1246
      %v1287 = vunpack.c.l.b16 %v1247
      %v1288 = vunpack.c.l.b16 %v1248
      %v1289 = vunpack.c.l.b16 %v1249
      %v1290 = vunpack.c.l.b16 %v1250
      %v1291 = vunpack.c.l.b16 %v1251
      %v1292 = vpack.c.b16 %v1277, %v1276
      %v1293 = vpack.c.b16 %v1279, %v1278
      %v1294 = vpack.c.b16 %v1281, %v1280
      %v1295 = vpack.c.b16 %v1283, %v1282
      %v1296 = vpack.c.b16 %v1285, %v1284
      %v1297 = vpack.c.b16 %v1287, %v1286
      %v1298 = vpack.c.b16 %v1289, %v1288
      %v1299 = vpack.c.b16 %v1291, %v1290
      %1308 = vmatprep.subr.bf16.mxu0 0
      %1309 = vmatpush1.bf16.msra.mxu0 %v1299
      %1310 = vmatprep.subr.bf16.mxu0 0
      %1311 = vmatpush1.bf16.msra.mxu0 %v1298
      %1312 = vmatprep.subr.bf16.mxu0 0
      %1313 = vmatpush1.bf16.msra.mxu0 %v1297
      %1314 = vmatprep.subr.bf16.mxu0 0
      %1315 = vmatpush1.bf16.msra.mxu0 %v1296
      %1316 = vmatprep.subr.bf16.mxu0 0
      %1317 = vmatpush1.bf16.msra.mxu0 %v1295
      %1318 = vmatprep.subr.bf16.mxu0 0
      %1319 = vmatpush1.bf16.msra.mxu0 %v1294
      %1320 = vmatprep.subr.bf16.mxu0 0
      %1321 = vmatpush1.bf16.msra.mxu0 %v1293
      %1322 = vmatprep.subr.bf16.mxu0 0
      %1323 = vmatpush1.bf16.msra.mxu0 %v1292
      %1324 = vmatprep.subr.bf16.mxu0 0
      %1325 = vmatpush2.bf16.msra.mxu0 0
      %1326 = vmatprep.subr.bf16.mxu0 0
      %1327 = vmatpush2.bf16.msra.mxu0 0
      %1328 = vmatprep.subr.bf16.mxu0 0
      %1329 = vmatpush2.bf16.msra.mxu0 0
      %1330 = vmatprep.subr.bf16.mxu0 0
      %1331 = vmatpush2.bf16.msra.mxu0 0
      %1332 = vmatprep.subr.bf16.mxu0 0
      %1333 = vmatpush2.bf16.msra.mxu0 0
      %1334 = vmatprep.subr.bf16.mxu0 0
      %1335 = vmatpush2.bf16.msra.mxu0 0
      %1336 = vmatprep.subr.bf16.mxu0 0
      %1337 = vmatpush2.bf16.msra.mxu0 0
      %1338 = vmatprep.subr.bf16.mxu0 0
      %1339 = vmatpush2.bf16.msra.mxu0 0
      %1340 = vmatprep.mubr.bf16.mxu0 0
      %1341 = vmatmul.mubr.bf16.gmra.mxu0 %v1257
      %v1342 = vpop.f32.mrf.mxu0
      %v1343 = vadd.f32 0.0, %v1342
      %v1344 = vpop.f32.mrf.mxu0
      %v1345 = vpop.f32.mrf.mxu0
      %v1346 = vadd.f32 0.0, %v1345
      %v1347 = vpop.f32.mrf.mxu0
      %1348 = vmatprep.mubr.bf16.mxu0 0
      %1349 = vmatmul.mubr.bf16.gmra.mxu0 %v1256
      %v1350 = vpop.f32.mrf.mxu0
      %v1351 = vadd.f32 0.0, %v1350
      %v1352 = vpop.f32.mrf.mxu0
      %v1353 = vpop.f32.mrf.mxu0
      %v1354 = vpop.f32.mrf.mxu0
      %1355 = vdwg.mxu0
      %v1356 = vadd.f32 %v1231, %v1343
      %v1357 = vadd.f32 %v1232, %v1346
      %v1358 = vadd.f32 %v1233, %v1351
      %v1359 = vpack.c.bf16 %v1357, %v1356
      %v1360 = vpack.c.bf16 %v1358, %v1358
      %v1363 = vunpack.c.l.b16 %v1359
      %v1364 = vunpack.c.h.b16 %v1359
      %v1365 = vunpack.c.l.b16 %v1360
      %v1366 = vpack.c.b16 %v1363, %v1363
      %v1367 = vpack.c.b16 %v1364, %v1364
      %v1368 = vpack.c.b16 %v1365, %v1365
      %1372 = vst [vmem:[%s180] sm:$0xf] %v1366
      %1373 = vst [vmem:[%s180 + $0x4] sm:$0xf] %v1367
      %1374 = vst [vmem:[%s180 + $0x8] sm:$0xf] %v1368
      %p1375 = scmp.lt.s32.totalorder %s17, 1
      %s1376 = scalar_select %p1375, %s17, 1
      %p1377 = scmp.lt.s32.totalorder %s18, 0
      %s1378 = scalar_select %p1377, %s18, 0
      %s1379 = smul.addr %s1376, 3
      %s1380 = sadd.s32 %s1378, %s1379
      %s1381 = smul.addr %s1380, 4
      %s1382 = scalar_lea.vmem %s2, %s1381
      // Predicated region
      $region29: #{densenet_forward.16} parent=27 // pred_check
        %p1383 = pneg %p97
      $region30: #{densenet_forward.16} parent=27 // pred_check_branch
        %1385 = sbr.rel (%p1383) target = $region32
      $region31: #{densenet_forward.16} parent=27 // pred_region
        _
      $region32: #{densenet_forward.16} parent=27 // pred_fallthru
        _
    $region28: #{densenet_forward.16} parent=5 // pred_fallthru
      _
    %p1386 = scmp.le.s32.totalorder 2, %s8
    // Predicated region
    $region33: #{densenet_forward.16} parent=5 // pred_check
      %p1387 = pneg %p1386
    $region34: #{densenet_forward.16} parent=5 // pred_check_branch
      %1389 = sbr.rel (%p1387) target = $region36
    $region35: #{densenet_forward.16} parent=5 // pred_region
      %s1390 = ssub.s32 %s8, 2
      // Predicated region
      $region37: #{densenet_forward.16} parent=35 // pred_check
        %p1391 = pneg %p103
      $region38: #{densenet_forward.16} parent=35 // pred_check_branch
        %1393 = sbr.rel (%p1391) target = $region40
      $region39: #{densenet_forward.16} parent=35 // pred_region
        %p1394 = scmp.lt.s32.totalorder %s19, 1
        %s1395 = scalar_select %p1394, %s19, 1
        %p1396 = scmp.lt.s32.totalorder %s20, 0
        %s1397 = scalar_select %p1396, %s20, 0
        %s1398 = smul.addr %s1395, 3
        %s1399 = sadd.s32 %s1397, %s1398
        %s1400 = smul.addr %s1399, 4
        %s1401 = scalar_lea.vmem %s2, %s1400
      $region40: #{densenet_forward.16} parent=35 // pred_fallthru
        _
    $region36: #{densenet_forward.16} parent=5 // pred_fallthru
      _
  $region6: #{densenet_forward.16} parent=0 // loop_footer
    %s12 = sadd.s32 1, %s8
  $region7: #{densenet_forward.16} parent=0 // loop_footer_branch
    %7 = sbr.rel target = $region3
  $region8: #{densenet_forward.16} parent=0 // loop_exit
    _

// kernel: densenet_forward.20
$region0: #{densenet_forward.20}
  #allocation0 [shape = 'u32[]', space=smem, size = 0x4, offset = 0x4, fixed_abs, tag = 'smem constant byte address 0x4 - core index']
  #allocation1 [shape = 'u32[144,128]{1,0:T(1,128)}', space=vmem, size = 0x12000, scoped, tag = 'internal scratch']
  %s0 = inlined_call_operand.vmem [shape: bf16[4,2,2,256], index: 0, kind: input, shape index: {}]
  %s1 = inlined_call_operand.vmem [shape: bf16[2,2,2,128], index: 1, kind: output, shape index: {}]
  %s2 = sld [smem:[#allocation0]]
  $region37: #{densenet_forward.20} parent=0
    _
  %s4 = ssub.s32 1, %s2
  %s5 = scalar_select 0, %s4, %s2
  loop: start=0, step=1, limit=4
  $region2: #{densenet_forward.20} parent=0 // loop_pre_header
    _
  $region3: #{densenet_forward.20} parent=0 // loop_header
    %s7 = sphi 0, %s11
    %p8 = scmp.ge.s32.totalorder %s7, 4
    %s17 = sphi 0, %s19
    %s20 = sphi 0, %s17
    %s21 = sphi 0, %s20
    %s37 = sphi 0, %s21
    %s43 = sphi 0, %s45
    %s46 = sphi 0, %s43
    %s47 = sphi 0, %s46
    %s63 = sphi 0, %s47
  $region4: #{densenet_forward.20} parent=0 // loop_header_branch
    %10 = sbr.rel (%p8) target = $region8
  $region5: #{densenet_forward.20} parent=0 // loop_body
    %s12 = ssub.s32 %s7, 1
    %s13 = ssub.s32 %s7, 2
    %s14 = sadd.s32 %s7, 1
    %s15 = ssub.s32 %s7, %s14
    %p16 = scmp.eq.s32.totalorder %s15, 0
    %s18 = sadd.s32 %s17, 1
    %s19 = scalar_select %p16, %s17, %s18
    %p22 = pneg %p16
    %p23 = scmp.eq.s32.totalorder %s7, 1
    %p24 = por %p22, %p23
    %p25 = scmp.ne.s32.totalorder %s17, %s20
    %p26 = scmp.eq.s32.totalorder %s7, 0
    %p27 = por %p25, %p26
    %p28 = scmp.ne.s32.totalorder %s17, %s20
    %p29 = scmp.eq.s32.totalorder %s12, 1
    %p30 = por %p28, %p29
    %p31 = scmp.ne.s32.totalorder %s20, %s21
    %p32 = scmp.eq.s32.totalorder %s12, 0
    %p33 = por %p31, %p32
    %p34 = scmp.ne.s32.totalorder %s20, %s21
    %p35 = scmp.eq.s32.totalorder %s13, 1
    %p36 = por %p34, %p35
    %p38 = scmp.ne.s32.totalorder %s21, %s37
    %p39 = scmp.eq.s32.totalorder %s13, 0
    %p40 = por %p38, %p39
    %s41 = ssub.s32 %s7, %s14
    %p42 = scmp.eq.s32.totalorder %s41, 0
    %s44 = sadd.s32 %s43, 1
    %s45 = scalar_select %p42, %s43, %s44
    %p48 = pneg %p42
    %p49 = scmp.eq.s32.totalorder %s7, 1
    %p50 = por %p48, %p49
    %p51 = scmp.ne.s32.totalorder %s43, %s46
    %p52 = scmp.eq.s32.totalorder %s7, 0
    %p53 = por %p51, %p52
    %p54 = scmp.ne.s32.totalorder %s43, %s46
    %p55 = scmp.eq.s32.totalorder %s12, 1
    %p56 = por %p54, %p55
    %p57 = scmp.ne.s32.totalorder %s46, %s47
    %p58 = scmp.eq.s32.totalorder %s12, 0
    %p59 = por %p57, %p58
    %p60 = scmp.ne.s32.totalorder %s46, %s47
    %p61 = scmp.eq.s32.totalorder %s13, 1
    %p62 = por %p60, %p61
    %p64 = scmp.ne.s32.totalorder %s47, %s63
    %p65 = scmp.eq.s32.totalorder %s13, 0
    %p66 = por %p64, %p65
    %p67 = scmp.le.s32.totalorder 1, %s7
    %p68 = scmp.lt.s32.totalorder %s7, 3
    %p69 = pnand %p67, %p68
    %p70 = pneg %p69
    // Predicated region
    $region9: #{densenet_forward.20} parent=5 // pred_check
      _
    $region10: #{densenet_forward.20} parent=5 // pred_check_branch
      %72 = sbr.rel (%p69) target = $region12
    $region11: #{densenet_forward.20} parent=5 // pred_region
      %s73 = ssub.s32 %s7, 1
    $region12: #{densenet_forward.20} parent=5 // pred_fallthru
      _
    %p74 = scmp.lt.s32.totalorder %s7, 2
    // Predicated region
    $region13: #{densenet_forward.20} parent=5 // pred_check
      %p75 = pneg %p74
    $region14: #{densenet_forward.20} parent=5 // pred_check_branch
      %77 = sbr.rel (%p75) target = $region16
    $region15: #{densenet_forward.20} parent=5 // pred_region
      // Predicated region
      $region17: #{densenet_forward.20} parent=15 // pred_check
        %p78 = pneg %p27
      $region18: #{densenet_forward.20} parent=15 // pred_check_branch
        %80 = sbr.rel (%p78) target = $region20
      $region19: #{densenet_forward.20} parent=15 // pred_region
        %s81 = smul.u32 2, %s7
        %p82 = scmp.lt.s32.totalorder %s81, 3
        %s83 = scalar_select %p82, %s81, 3
        %s84 = smul.addr %s83, 4
        %s85 = scalar_lea.vmem %s0, %s84
        %s86 = smul.u32 2, %s7
      $region20: #{densenet_forward.20} parent=15 // pred_fallthru
        _
    $region16: #{densenet_forward.20} parent=5 // pred_fallthru
      _
    %p87 = scmp.le.s32.totalorder 1, %s7
    %p88 = scmp.lt.s32.totalorder %s7, 3
    %p89 = pnand %p87, %p88
    %p90 = pneg %p89
    // Predicated region
    $region21: #{densenet_forward.20} parent=5 // pred_check
      _
    $region22: #{densenet_forward.20} parent=5 // pred_check_branch
      %92 = sbr.rel (%p89) target = $region24
    $region23: #{densenet_forward.20} parent=5 // pred_region
      %s93 = ssub.s32 %s7, 1
      %s94 = smul.u32 2, %s12
      %p95 = scmp.lt.s32.totalorder %s94, 3
      %s96 = scalar_select %p95, %s94, 3
      %s97 = smul.addr %s96, 4
      %s98 = scalar_lea.vmem %s0, %s97
      %p99 = pneg %p33
      %p100 = pneg %p30
      %p101 = pneg %p59
      %p102 = pneg %p56
      %p103 = scmp.lt.s32.totalorder %s12, 1
      %s104 = scalar_select %p103, %s12, 1
      %s105 = smul.addr %s104, 2
      %s106 = scalar_lea.vmem %s1, %s105
      %s107 = smul.u32 2, %s12
      %p108 = scmp.lt.s32.totalorder %s107, 3
      %s109 = scalar_select %p108, %s107, 3
      %s110 = smul.addr %s109, 4
      %s111 = scalar_lea.vmem %s0, %s110
      %s112 = smul.u32 2, %s12
      %p113 = scmp.lt.s32.totalorder %s12, 1
      %s114 = scalar_select %p113, %s12, 1
      %s115 = smul.addr %s114, 2
      %s116 = scalar_lea.vmem %s1, %s115
      %v117 = vld [vmem:[%s111] sm:$0x3]
      %v118 = vld [vmem:[%s111 + $0x4] sm:$0x3]
      %v119 = vunpack.c.l.bf16 %v117
      %v120 = vunpack.c.l.bf16 %v118
      %s121 = scalar_lea.vmem %s111, 2
      %v122 = vld [vmem:[%s121] sm:$0x3]
      %v123 = vld [vmem:[%s121 + $0x4] sm:$0x3]
      %v124 = vunpack.c.l.bf16 %v122
      %v125 = vunpack.c.l.bf16 %v123
      %v126 = vadd.f32 %v119, %v124
      %v127 = vadd.f32 %v120, %v125
      %v130 = vrot.slane %v126, 2
      %v131 = vrot.slane %v127, 2
      %v134 = vadd.f32 %v126, %v130
      %v135 = vadd.f32 %v127, %v131
      %v136 = vmul.f32 %v134, 0.25
      %v137 = vmul.f32 %v135, 0.25
      %v138 = vpack.c.bf16 %v136, %v136
      %v139 = vpack.c.bf16 %v137, %v137
      %140 = vst [vmem:[%s116] sm:$0x1] %v138
      %141 = vst [vmem:[%s116 + $0x1] sm:$0x1] %v139
      %p142 = scmp.lt.s32.totalorder %s12, 1
      %s143 = scalar_select %p142, %s12, 1
      %s144 = smul.addr %s143, 2
      %s145 = scalar_lea.vmem %s1, %s144
      // Predicated region
      $region25: #{densenet_forward.20} parent=23 // pred_check
        %p146 = pneg %p56
      $region26: #{densenet_forward.20} parent=23 // pred_check_branch
        %148 = sbr.rel (%p146) target = $region28
      $region27: #{densenet_forward.20} parent=23 // pred_region
        _
      $region28: #{densenet_forward.20} parent=23 // pred_fallthru
        _
    $region24: #{densenet_forward.20} parent=5 // pred_fallthru
      _
    %p149 = scmp.le.s32.totalorder 2, %s7
    // Predicated region
    $region29: #{densenet_forward.20} parent=5 // pred_check
      %p150 = pneg %p149
    $region30: #{densenet_forward.20} parent=5 // pred_check_branch
      %152 = sbr.rel (%p150) target = $region32
    $region31: #{densenet_forward.20} parent=5 // pred_region
      %s153 = ssub.s32 %s7, 2
      // Predicated region
      $region33: #{densenet_forward.20} parent=31 // pred_check
        %p154 = pneg %p62
      $region34: #{densenet_forward.20} parent=31 // pred_check_branch
        %156 = sbr.rel (%p154) target = $region36
      $region35: #{densenet_forward.20} parent=31 // pred_region
        %p157 = scmp.lt.s32.totalorder %s13, 1
        %s158 = scalar_select %p157, %s13, 1
        %s159 = smul.addr %s158, 2
        %s160 = scalar_lea.vmem %s1, %s159
      $region36: #{densenet_forward.20} parent=31 // pred_fallthru
        _
    $region32: #{densenet_forward.20} parent=5 // pred_fallthru
      _
  $region6: #{densenet_forward.20} parent=0 // loop_footer
    %s11 = sadd.s32 1, %s7
  $region7: #{densenet_forward.20} parent=0 // loop_footer_branch
    %6 = sbr.rel target = $region3
  $region8: #{densenet_forward.20} parent=0 // loop_exit
    _

// kernel: densenet_forward.21
$region0: #{densenet_forward.21}
  #allocation0 [shape = 'u32[]', space=smem, size = 0x4, offset = 0x4, fixed_abs, tag = 'smem constant byte address 0x4 - core index']
  #allocation1 [shape = 'u32[144,128]{1,0:T(1,128)}', space=vmem, size = 0x12000, scoped, tag = 'internal scratch']
  #allocation2 [shape = 'f32[8,128]{1,0:T(8,128)}', space=vmem, size = 0x1000, scoped, tag = 'scratch operand']
  %s0 = inlined_call_operand.vmem [shape: bf16[8,128], index: 0, kind: input, shape index: {}]
  %s1 = inlined_call_operand.vmem [shape: bf16[128,128], index: 1, kind: input, shape index: {}]
  %s2 = inlined_call_operand.vmem [shape: f32[1,128], index: 2, kind: input, shape index: {}]
  %s3 = inlined_call_operand.vmem [shape: f32[1,128], index: 3, kind: input, shape index: {}]
  %s4 = inlined_call_operand.vmem [shape: f32[1,128], index: 4, kind: input, shape index: {}]
  %s5 = inlined_call_operand.vmem [shape: f32[1,128], index: 5, kind: input, shape index: {}]
  %s6 = inlined_call_operand.vmem [shape: bf16[8,128], index: 6, kind: output, shape index: {}]
  %s7 = sld [smem:[#allocation0]]
  $region42: #{densenet_forward.21} parent=0
    _
  %s9 = ssub.s32 1, %s7
  %s10 = scalar_select 0, %s9, %s7
  // Predicated region
  $region2: #{densenet_forward.21} parent=0 // pred_check
    _
  $region3: #{densenet_forward.21} parent=0 // pred_check_branch
    %12 = sbr.rel (0) target = $region5
  $region4: #{densenet_forward.21} parent=0 // pred_region
    _
  $region5: #{densenet_forward.21} parent=0 // pred_fallthru
    _
  // Predicated region
  $region6: #{densenet_forward.21} parent=0 // pred_check
    _
  $region7: #{densenet_forward.21} parent=0 // pred_check_branch
    %14 = sbr.rel (0) target = $region9
  $region8: #{densenet_forward.21} parent=0 // pred_region
    _
  $region9: #{densenet_forward.21} parent=0 // pred_fallthru
    _
  // Predicated region
  $region10: #{densenet_forward.21} parent=0 // pred_check
    _
  $region11: #{densenet_forward.21} parent=0 // pred_check_branch
    %16 = sbr.rel (0) target = $region13
  $region12: #{densenet_forward.21} parent=0 // pred_region
    _
  $region13: #{densenet_forward.21} parent=0 // pred_fallthru
    _
  // Predicated region
  $region14: #{densenet_forward.21} parent=0 // pred_check
    _
  $region15: #{densenet_forward.21} parent=0 // pred_check_branch
    %18 = sbr.rel (0) target = $region17
  $region16: #{densenet_forward.21} parent=0 // pred_region
    _
  $region17: #{densenet_forward.21} parent=0 // pred_fallthru
    _
  // Predicated region
  $region18: #{densenet_forward.21} parent=0 // pred_check
    _
  $region19: #{densenet_forward.21} parent=0 // pred_check_branch
    %20 = sbr.rel (0) target = $region21
  $region20: #{densenet_forward.21} parent=0 // pred_region
    _
  $region21: #{densenet_forward.21} parent=0 // pred_fallthru
    _
  // Predicated region
  $region22: #{densenet_forward.21} parent=0 // pred_check
    _
  $region23: #{densenet_forward.21} parent=0 // pred_check_branch
    %22 = sbr.rel (0) target = $region25
  $region24: #{densenet_forward.21} parent=0 // pred_region
    _
  $region25: #{densenet_forward.21} parent=0 // pred_fallthru
    _
  %p24 = scmp.eq.s32.totalorder 0, 0
  // Predicated region
  $region26: #{densenet_forward.21} parent=0 // pred_check
    %p25 = pneg %p24
  $region27: #{densenet_forward.21} parent=0 // pred_check_branch
    %27 = sbr.rel (%p25) target = $region29
  $region28: #{densenet_forward.21} parent=0 // pred_region
    %28 = vst [vmem:[#allocation2] sm:$0xff] 0.0
  $region29: #{densenet_forward.21} parent=0 // pred_fallthru
    _
  %v29 = vld [vmem:[%s0] sm:$0xf]
  %v30 = vunpack.c.l.bf16 %v29
  %v31 = vld [vmem:[%s2] sm:$0x1]
  %v33 = vlaneseq
  %v34 = vshrl.u32 %v33, 7
  %v35 = vsub.s32 0, %v34
  %v36 = vrot.slane %v31, %v35
  %v38 = vmul.f32 %v30, %v36
  %v39 = vld [vmem:[%s3] sm:$0x1]
  %v41 = vlaneseq
  %v42 = vshrl.u32 %v41, 7
  %v43 = vsub.s32 0, %v42
  %v44 = vrot.slane %v39, %v43
  %v46 = vadd.f32 %v38, %v44
  %v47 = vmax.f32 %v46, 0.0
  %v48 = vpack.c.bf16 %v47, %v47
  %v49 = vld [vmem:[#allocation2] sm:$0xff]
  %v50 = vld [vmem:[%s1] sm:$0xf]
  %v51 = vld [vmem:[%s1 + $0x4] sm:$0xf]
  %v52 = vld [vmem:[%s1 + $0x8] sm:$0xf]
  %v53 = vld [vmem:[%s1 + $0xc] sm:$0xf]
  %v54 = vld [vmem:[%s1 + $0x10] sm:$0xf]
  %v55 = vld [vmem:[%s1 + $0x14] sm:$0xf]
  %v56 = vld [vmem:[%s1 + $0x18] sm:$0xf]
  %v57 = vld [vmem:[%s1 + $0x1c] sm:$0xf]
  %v58 = vld [vmem:[%s1 + $0x20] sm:$0xf]
  %v59 = vld [vmem:[%s1 + $0x24] sm:$0xf]
  %v60 = vld [vmem:[%s1 + $0x28] sm:$0xf]
  %v61 = vld [vmem:[%s1 + $0x2c] sm:$0xf]
  %v62 = vld [vmem:[%s1 + $0x30] sm:$0xf]
  %v63 = vld [vmem:[%s1 + $0x34] sm:$0xf]
  %v64 = vld [vmem:[%s1 + $0x38] sm:$0xf]
  %v65 = vld [vmem:[%s1 + $0x3c] sm:$0xf]
  %v82 = vunpack.c.l.b16 %v50
  %v83 = vunpack.c.l.b16 %v51
  %v84 = vunpack.c.l.b16 %v52
  %v85 = vunpack.c.l.b16 %v53
  %v86 = vunpack.c.l.b16 %v54
  %v87 = vunpack.c.l.b16 %v55
  %v88 = vunpack.c.l.b16 %v56
  %v89 = vunpack.c.l.b16 %v57
  %v90 = vunpack.c.l.b16 %v58
  %v91 = vunpack.c.l.b16 %v59
  %v92 = vunpack.c.l.b16 %v60
  %v93 = vunpack.c.l.b16 %v61
  %v94 = vunpack.c.l.b16 %v62
  %v95 = vunpack.c.l.b16 %v63
  %v96 = vunpack.c.l.b16 %v64
  %v97 = vunpack.c.l.b16 %v65
  %v98 = vpack.c.b16 %v83, %v82
  %v99 = vpack.c.b16 %v85, %v84
  %v100 = vpack.c.b16 %v87, %v86
  %v101 = vpack.c.b16 %v89, %v88
  %v102 = vpack.c.b16 %v91, %v90
  %v103 = vpack.c.b16 %v93, %v92
  %v104 = vpack.c.b16 %v95, %v94
  %v105 = vpack.c.b16 %v97, %v96
  %114 = vmatprep.subr.bf16.mxu0 0
  %115 = vmatpush1.bf16.msra.mxu0 %v105
  %116 = vmatprep.subr.bf16.mxu0 0
  %117 = vmatpush1.bf16.msra.mxu0 %v104
  %118 = vmatprep.subr.bf16.mxu0 0
  %119 = vmatpush1.bf16.msra.mxu0 %v103
  %120 = vmatprep.subr.bf16.mxu0 0
  %121 = vmatpush1.bf16.msra.mxu0 %v102
  %122 = vmatprep.subr.bf16.mxu0 0
  %123 = vmatpush1.bf16.msra.mxu0 %v101
  %124 = vmatprep.subr.bf16.mxu0 0
  %125 = vmatpush1.bf16.msra.mxu0 %v100
  %126 = vmatprep.subr.bf16.mxu0 0
  %127 = vmatpush1.bf16.msra.mxu0 %v99
  %128 = vmatprep.subr.bf16.mxu0 0
  %129 = vmatpush1.bf16.msra.mxu0 %v98
  %130 = vmatprep.subr.bf16.mxu0 0
  %131 = vmatpush2.bf16.msra.mxu0 0
  %132 = vmatprep.subr.bf16.mxu0 0
  %133 = vmatpush2.bf16.msra.mxu0 0
  %134 = vmatprep.subr.bf16.mxu0 0
  %135 = vmatpush2.bf16.msra.mxu0 0
  %136 = vmatprep.subr.bf16.mxu0 0
  %137 = vmatpush2.bf16.msra.mxu0 0
  %138 = vmatprep.subr.bf16.mxu0 0
  %139 = vmatpush2.bf16.msra.mxu0 0
  %140 = vmatprep.subr.bf16.mxu0 0
  %141 = vmatpush2.bf16.msra.mxu0 0
  %142 = vmatprep.subr.bf16.mxu0 0
  %143 = vmatpush2.bf16.msra.mxu0 0
  %144 = vmatprep.subr.bf16.mxu0 0
  %145 = vmatpush2.bf16.msra.mxu0 0
  %146 = vmatprep.mubr.bf16.mxu0 0
  %147 = vmatmul.mubr.bf16.gmra.mxu0 %v48
  %v148 = vpop.f32.mrf.mxu0
  %v149 = vadd.f32 0.0, %v148
  %v150 = vpop.f32.mrf.mxu0
  %v151 = vpop.f32.mrf.mxu0
  %v152 = vpop.f32.mrf.mxu0
  %153 = vdwg.mxu0
  %v154 = vadd.f32 %v49, %v149
  %155 = vst [vmem:[#allocation2] sm:$0xff] %v154
  // Predicated region
  $region30: #{densenet_forward.21} parent=0 // pred_check
    %p156 = pneg %p24
  $region31: #{densenet_forward.21} parent=0 // pred_check_branch
    %158 = sbr.rel (%p156) target = $region33
  $region32: #{densenet_forward.21} parent=0 // pred_region
    %v159 = vld [vmem:[#allocation2] sm:$0xff]
    %v160 = vld [vmem:[%s4] sm:$0x1]
    %v162 = vlaneseq
    %v163 = vshrl.u32 %v162, 7
    %v164 = vsub.s32 0, %v163
    %v165 = vrot.slane %v160, %v164
    %v167 = vmul.f32 %v159, %v165
    %v168 = vld [vmem:[%s5] sm:$0x1]
    %v170 = vlaneseq
    %v171 = vshrl.u32 %v170, 7
    %v172 = vsub.s32 0, %v171
    %v173 = vrot.slane %v168, %v172
    %v175 = vadd.f32 %v167, %v173
    %v176 = vmax.f32 %v175, 0.0
    %v177 = vpack.c.bf16 %v176, %v176
    %178 = vst [vmem:[%s6] sm:$0xf] %v177
  $region33: #{densenet_forward.21} parent=0 // pred_fallthru
    _
  // Predicated region
  $region34: #{densenet_forward.21} parent=0 // pred_check
    _
  $region35: #{densenet_forward.21} parent=0 // pred_check_branch
    %180 = sbr.rel (0) target = $region37
  $region36: #{densenet_forward.21} parent=0 // pred_region
    _
  $region37: #{densenet_forward.21} parent=0 // pred_fallthru
    _
  // Predicated region
  $region38: #{densenet_forward.21} parent=0 // pred_check
    _
  $region39: #{densenet_forward.21} parent=0 // pred_check_branch
    %182 = sbr.rel (0) target = $region41
  $region40: #{densenet_forward.21} parent=0 // pred_region
    _
  $region41: #{densenet_forward.21} parent=0 // pred_fallthru
    _

// kernel: densenet_forward.25
$region0: #{densenet_forward.25}
  #allocation0 [shape = 'u32[]', space=smem, size = 0x4, offset = 0x4, fixed_abs, tag = 'smem constant byte address 0x4 - core index']
  #allocation1 [shape = 'u32[144,128]{1,0:T(1,128)}', space=vmem, size = 0x12000, scoped, tag = 'internal scratch']
  %s0 = inlined_call_operand.vmem [shape: bf16[2,4,128], index: 0, kind: input, shape index: {}]
  %s1 = inlined_call_operand.vmem [shape: f32[1,1,128], index: 1, kind: input, shape index: {}]
  %s2 = inlined_call_operand.vmem [shape: f32[1,1,128], index: 2, kind: input, shape index: {}]
  %s3 = inlined_call_operand.vmem [shape: f32[128,128], index: 3, kind: input, shape index: {}]
  %s4 = inlined_call_operand.vmem [shape: f32[1,128], index: 4, kind: input, shape index: {}]
  %s5 = inlined_call_operand.hbm [shape: f32[2,128], index: 5, kind: output, shape index: {}]
  %s6 = sld [smem:[#allocation0]]
  $region30: #{densenet_forward.25} parent=0
    _
  %s8 = ssub.s32 1, %s6
  %s9 = scalar_select 0, %s8, %s6
  $region1: #{densenet_forward.25} parent=0
    #allocation2 [shape = 'u8[1024]{0}', space=vmem, size = 0x400, scoped, tag = 'output window, operand 0, single buffered']
    #allocation3 [shape = 's32[1]{0}', space=sflag, size = 0x4, scoped, tag = 'scoped memory for densenet_forward.25']
    %10 = vsyncpa [#allocation3], 0
    // Predicated region
    $region2: #{densenet_forward.25} parent=1 // pred_check
      _
    $region3: #{densenet_forward.25} parent=1 // pred_check_branch
      %12 = sbr.rel (0) target = $region5
    $region4: #{densenet_forward.25} parent=1 // pred_region
      _
    $region5: #{densenet_forward.25} parent=1 // pred_fallthru
      _
    // Predicated region
    $region6: #{densenet_forward.25} parent=1 // pred_check
      _
    $region7: #{densenet_forward.25} parent=1 // pred_check_branch
      %14 = sbr.rel (0) target = $region9
    $region8: #{densenet_forward.25} parent=1 // pred_region
      _
    $region9: #{densenet_forward.25} parent=1 // pred_fallthru
      _
    // Predicated region
    $region10: #{densenet_forward.25} parent=1 // pred_check
      _
    $region11: #{densenet_forward.25} parent=1 // pred_check_branch
      %16 = sbr.rel (0) target = $region13
    $region12: #{densenet_forward.25} parent=1 // pred_region
      _
    $region13: #{densenet_forward.25} parent=1 // pred_fallthru
      _
    // Predicated region
    $region14: #{densenet_forward.25} parent=1 // pred_check
      _
    $region15: #{densenet_forward.25} parent=1 // pred_check_branch
      %18 = sbr.rel (0) target = $region17
    $region16: #{densenet_forward.25} parent=1 // pred_region
      _
    $region17: #{densenet_forward.25} parent=1 // pred_fallthru
      _
    // Predicated region
    $region18: #{densenet_forward.25} parent=1 // pred_check
      _
    $region19: #{densenet_forward.25} parent=1 // pred_check_branch
      %20 = sbr.rel (0) target = $region21
    $region20: #{densenet_forward.25} parent=1 // pred_region
      _
    $region21: #{densenet_forward.25} parent=1 // pred_fallthru
      _
    %v21 = vld [vmem:[%s0] sm:$0x3]
    %v22 = vld [vmem:[%s0 + $0x2] sm:$0x3]
    %v23 = vunpack.c.l.bf16 %v21
    %v24 = vunpack.c.l.bf16 %v22
    %v25 = vld [vmem:[%s1] sm:$0x1]
    %v27 = vlaneseq
    %v28 = vshrl.u32 %v27, 7
    %v29 = vsub.s32 0, %v28
    %v30 = vrot.slane %v25, %v29
    %v32 = vmul.f32 %v23, %v30
    %v33 = vmul.f32 %v24, %v30
    %v34 = vld [vmem:[%s2] sm:$0x1]
    %v36 = vlaneseq
    %v37 = vshrl.u32 %v36, 7
    %v38 = vsub.s32 0, %v37
    %v39 = vrot.slane %v34, %v38
    %v41 = vadd.f32 %v32, %v39
    %v42 = vadd.f32 %v33, %v39
    %v43 = vmax.f32 %v41, 0.0
    %v44 = vmax.f32 %v42, 0.0
    %vm45 = vcmask 1043456
    %v46 = vsel %vm45, %v43, 0.0
    %v47 = vrot.slane %v46, 4
    %v48 = vadd.f32 %v46, %v47
    %v49 = vrot.slane %v48, 2
    %v50 = vadd.f32 %v48, %v49
    %v51 = vrot.slane %v50, 1
    %v52 = vadd.f32 %v50, %v51
    %v53 = vsel %vm45, %v44, 0.0
    %v54 = vrot.slane %v53, 4
    %v55 = vadd.f32 %v53, %v54
    %v56 = vrot.slane %v55, 2
    %v57 = vadd.f32 %v55, %v56
    %v58 = vrot.slane %v57, 1
    %v59 = vadd.f32 %v57, %v58
    %v60 = vrcp.pop 4.0
    %v61 = vmul.f32 %v52, %v60
    %v62 = vmul.f32 %v59, %v60
    %v63 = vld [vmem:[%s3] sm:$0xff]
    %v64 = vld [vmem:[%s3 + $0x8] sm:$0xff]
    %v65 = vld [vmem:[%s3 + $0x10] sm:$0xff]
    %v66 = vld [vmem:[%s3 + $0x18] sm:$0xff]
    %v67 = vld [vmem:[%s3 + $0x20] sm:$0xff]
    %v68 = vld [vmem:[%s3 + $0x28] sm:$0xff]
    %v69 = vld [vmem:[%s3 + $0x30] sm:$0xff]
    %v70 = vld [vmem:[%s3 + $0x38] sm:$0xff]
    %v71 = vld [vmem:[%s3 + $0x40] sm:$0xff]
    %v72 = vld [vmem:[%s3 + $0x48] sm:$0xff]
    %v73 = vld [vmem:[%s3 + $0x50] sm:$0xff]
    %v74 = vld [vmem:[%s3 + $0x58] sm:$0xff]
    %v75 = vld [vmem:[%s3 + $0x60] sm:$0xff]
    %v76 = vld [vmem:[%s3 + $0x68] sm:$0xff]
    %v77 = vld [vmem:[%s3 + $0x70] sm:$0xff]
    %v78 = vld [vmem:[%s3 + $0x78] sm:$0xff]
    %v79 = vld [vmem:[%s4] sm:$0x1]
    %v81 = vlaneseq
    %v82 = vshrl.u32 %v81, 7
    %v83 = vsub.s32 0, %v82
    %v84 = vrot.slane %v79, %v83
    %vm88 = vcmask 1041409
    %v89 = vsel %vm88, %v62, %v61
    %91 = vmatprep.subr.mxu0 0.0
    %92 = vmatpush1.msra.mxu0 %v78
    %93 = vmatprep.subr.mxu0 0.0
    %94 = vmatpush1.msra.mxu0 %v77
    %95 = vmatprep.subr.mxu0 0.0
    %96 = vmatpush1.msra.mxu0 %v76
    %97 = vmatprep.subr.mxu0 0.0
    %98 = vmatpush1.msra.mxu0 %v75
    %99 = vmatprep.subr.mxu0 0.0
    %100 = vmatpush1.msra.mxu0 %v74
    %101 = vmatprep.subr.mxu0 0.0
    %102 = vmatpush1.msra.mxu0 %v73
    %103 = vmatprep.subr.mxu0 0.0
    %104 = vmatpush1.msra.mxu0 %v72
    %105 = vmatprep.subr.mxu0 0.0
    %106 = vmatpush1.msra.mxu0 %v71
    %107 = vmatprep.subr.mxu0 0.0
    %108 = vmatpush1.msra.mxu0 %v70
    %109 = vmatprep.subr.mxu0 0.0
    %110 = vmatpush1.msra.mxu0 %v69
    %111 = vmatprep.subr.mxu0 0.0
    %112 = vmatpush1.msra.mxu0 %v68
    %113 = vmatprep.subr.mxu0 0.0
    %114 = vmatpush1.msra.mxu0 %v67
    %115 = vmatprep.subr.mxu0 0.0
    %116 = vmatpush1.msra.mxu0 %v66
    %117 = vmatprep.subr.mxu0 0.0
    %118 = vmatpush1.msra.mxu0 %v65
    %119 = vmatprep.subr.mxu0 0.0
    %120 = vmatpush1.msra.mxu0 %v64
    %121 = vmatprep.subr.mxu0 0.0
    %122 = vmatpush1.msra.mxu0 %v63
    %123 = vmatprep.subr.mxu0 0.0
    %124 = vmatpush2.msra.mxu0 0.0
    %125 = vmatprep.subr.mxu0 0.0
    %126 = vmatpush2.msra.mxu0 0.0
    %127 = vmatprep.subr.mxu0 0.0
    %128 = vmatpush2.msra.mxu0 0.0
    %129 = vmatprep.subr.mxu0 0.0
    %130 = vmatpush2.msra.mxu0 0.0
    %131 = vmatprep.subr.mxu0 0.0
    %132 = vmatpush2.msra.mxu0 0.0
    %133 = vmatprep.subr.mxu0 0.0
    %134 = vmatpush2.msra.mxu0 0.0
    %135 = vmatprep.subr.mxu0 0.0
    %136 = vmatpush2.msra.mxu0 0.0
    %137 = vmatprep.subr.mxu0 0.0
    %138 = vmatpush2.msra.mxu0 0.0
    %139 = vmatprep.subr.mxu0 0.0
    %140 = vmatpush2.msra.mxu0 0.0
    %141 = vmatprep.subr.mxu0 0.0
    %142 = vmatpush2.msra.mxu0 0.0
    %143 = vmatprep.subr.mxu0 0.0
    %144 = vmatpush2.msra.mxu0 0.0
    %145 = vmatprep.subr.mxu0 0.0
    %146 = vmatpush2.msra.mxu0 0.0
    %147 = vmatprep.subr.mxu0 0.0
    %148 = vmatpush2.msra.mxu0 0.0
    %149 = vmatprep.subr.mxu0 0.0
    %150 = vmatpush2.msra.mxu0 0.0
    %151 = vmatprep.subr.mxu0 0.0
    %152 = vmatpush2.msra.mxu0 0.0
    %153 = vmatprep.subr.mxu0 0.0
    %154 = vmatpush2.msra.mxu0 0.0
    %155 = vmatprep.mubr.f32.mxu0 0.0
    %156 = vmatmul.mubr.f32.gmra.mxu0 %v89
    %v157 = vpop.f32.mrf.mxu0
    %v158 = vadd.f32 %v84, %v157
    %v159 = vpop.f32.mrf.mxu0
    %160 = vdwg.mxu0
    %161 = vst [vmem:[#allocation2] sm:$0x3] %v158
    // Predicated region
    $region22: #{densenet_forward.25} parent=1 // pred_check
      _
    $region23: #{densenet_forward.25} parent=1 // pred_check_branch
      %163 = sbr.rel (0) target = $region25
    $region24: #{densenet_forward.25} parent=1 // pred_region
      %s165 = ssub.s32 32, 32
      %166 = vsyncadd [#allocation3], %s165
      %s168 = sshll.u32 [#allocation2], 4
      %s169 = int_to_ptr.vmem [resolvable:$true] %s168
      %171 = dma.vmem_to_hbm [thread:$0]  %s169, 32, %s5, [#allocation3]
    $region25: #{densenet_forward.25} parent=1 // pred_fallthru
      _
    // Predicated region
    $region26: #{densenet_forward.25} parent=1 // pred_check
      _
    $region27: #{densenet_forward.25} parent=1 // pred_check_branch
      %173 = sbr.rel (0) target = $region29
    $region28: #{densenet_forward.25} parent=1 // pred_region
      %174 = dma.done [#allocation3], 32
    $region29: #{densenet_forward.25} parent=1 // pred_fallthru
      _
    %175 = vsyncpa [#allocation3], 1

// kernel: densenet_forward.22
$region0: #{densenet_forward.22}
  #allocation0 [shape = 'u32[]', space=smem, size = 0x4, offset = 0x4, fixed_abs, tag = 'smem constant byte address 0x4 - core index']
  #allocation1 [shape = 'u32[144,128]{1,0:T(1,128)}', space=vmem, size = 0x12000, scoped, tag = 'internal scratch']
  %s0 = inlined_call_operand.vmem [shape: bf16[2,20,128], index: 0, kind: input, shape index: {}]
  %s1 = inlined_call_operand.vmem [shape: bf16[9,128,128], index: 1, kind: input, shape index: {}]
  %s2 = inlined_call_operand.vmem [shape: bf16[2,8,128], index: 2, kind: output, shape index: {}]
  %s3 = sld [smem:[#allocation0]]
  $region41: #{densenet_forward.22} parent=0
    _
  %s5 = ssub.s32 1, %s3
  %s6 = scalar_select 0, %s5, %s3
  loop: start=0, step=1, limit=4
  $region2: #{densenet_forward.22} parent=0 // loop_pre_header
    _
  $region3: #{densenet_forward.22} parent=0 // loop_header
    %s8 = sphi 0, %s12
    %p9 = scmp.ge.s32.totalorder %s8, 4
    %s15 = sphi 0, %s27
    %s16 = sphi 0, %s23
    %s17 = sphi 0, %s15
    %s18 = sphi 0, %s16
    %s19 = sphi 0, %s17
    %s20 = sphi 0, %s18
    %s30 = sphi 0, %s32
    %s33 = sphi 0, %s30
    %s34 = sphi 0, %s33
    %s50 = sphi 0, %s34
    %s56 = sphi 0, %s58
    %s59 = sphi 0, %s56
    %s60 = sphi 0, %s59
    %s76 = sphi 0, %s60
    %s84 = sphi 0, %s86
    %s87 = sphi 0, %s84
    %s88 = sphi 0, %s87
    %s104 = sphi 0, %s88
  $region4: #{densenet_forward.22} parent=0 // loop_header_branch
    %11 = sbr.rel (%p9) target = $region8
  $region5: #{densenet_forward.22} parent=0 // loop_body
    %s13 = ssub.s32 %s8, 1
    %s14 = ssub.s32 %s8, 2
    %s21 = sadd.s32 1, %s16
    %p22 = scmp.ge.s32.totalorder %s21, 1
    %s23 = scalar_select %p22, 0, %s21
    %s24 = sadd.s32 1, %s15
    %s25 = scalar_select %p22, %s24, %s15
    %p26 = scmp.ge.s32.totalorder %s25, 2
    %s27 = scalar_select %p26, 0, %s25
    %s28 = ssub.s32 %s15, %s27
    %p29 = scmp.eq.s32.totalorder %s28, 0
    %s31 = sadd.s32 %s30, 1
    %s32 = scalar_select %p29, %s30, %s31
    %p35 = pneg %p29
    %p36 = scmp.eq.s32.totalorder %s8, 1
    %p37 = por %p35, %p36
    %p38 = scmp.ne.s32.totalorder %s30, %s33
    %p39 = scmp.eq.s32.totalorder %s8, 0
    %p40 = por %p38, %p39
    %p41 = scmp.ne.s32.totalorder %s30, %s33
    %p42 = scmp.eq.s32.totalorder %s13, 1
    %p43 = por %p41, %p42
    %p44 = scmp.ne.s32.totalorder %s33, %s34
    %p45 = scmp.eq.s32.totalorder %s13, 0
    %p46 = por %p44, %p45
    %p47 = scmp.ne.s32.totalorder %s33, %s34
    %p48 = scmp.eq.s32.totalorder %s14, 1
    %p49 = por %p47, %p48
    %p51 = scmp.ne.s32.totalorder %s34, %s50
    %p52 = scmp.eq.s32.totalorder %s14, 0
    %p53 = por %p51, %p52
    %s54 = ssub.s32 %s16, %s23
    %p55 = scmp.eq.s32.totalorder %s54, 0
    %s57 = sadd.s32 %s56, 1
    %s58 = scalar_select %p55, %s56, %s57
    %p61 = pneg %p55
    %p62 = scmp.eq.s32.totalorder %s8, 1
    %p63 = por %p61, %p62
    %p64 = scmp.ne.s32.totalorder %s56, %s59
    %p65 = scmp.eq.s32.totalorder %s8, 0
    %p66 = por %p64, %p65
    %p67 = scmp.ne.s32.totalorder %s56, %s59
    %p68 = scmp.eq.s32.totalorder %s13, 1
    %p69 = por %p67, %p68
    %p70 = scmp.ne.s32.totalorder %s59, %s60
    %p71 = scmp.eq.s32.totalorder %s13, 0
    %p72 = por %p70, %p71
    %p73 = scmp.ne.s32.totalorder %s59, %s60
    %p74 = scmp.eq.s32.totalorder %s14, 1
    %p75 = por %p73, %p74
    %p77 = scmp.ne.s32.totalorder %s60, %s76
    %p78 = scmp.eq.s32.totalorder %s14, 0
    %p79 = por %p77, %p78
    %s80 = ssub.s32 %s15, %s27
    %s81 = ssub.s32 %s16, %s23
    %s82 = sor.u32 %s80, %s81
    %p83 = scmp.eq.s32.totalorder %s82, 0
    %s85 = sadd.s32 %s84, 1
    %s86 = scalar_select %p83, %s84, %s85
    %p89 = pneg %p83
    %p90 = scmp.eq.s32.totalorder %s8, 1
    %p91 = por %p89, %p90
    %p92 = scmp.ne.s32.totalorder %s84, %s87
    %p93 = scmp.eq.s32.totalorder %s8, 0
    %p94 = por %p92, %p93
    %p95 = scmp.ne.s32.totalorder %s84, %s87
    %p96 = scmp.eq.s32.totalorder %s13, 1
    %p97 = por %p95, %p96
    %p98 = scmp.ne.s32.totalorder %s87, %s88
    %p99 = scmp.eq.s32.totalorder %s13, 0
    %p100 = por %p98, %p99
    %p101 = scmp.ne.s32.totalorder %s87, %s88
    %p102 = scmp.eq.s32.totalorder %s14, 1
    %p103 = por %p101, %p102
    %p105 = scmp.ne.s32.totalorder %s88, %s104
    %p106 = scmp.eq.s32.totalorder %s14, 0
    %p107 = por %p105, %p106
    %p108 = scmp.le.s32.totalorder 1, %s8
    %p109 = scmp.lt.s32.totalorder %s8, 3
    %p110 = pnand %p108, %p109
    %p111 = pneg %p110
    // Predicated region
    $region9: #{densenet_forward.22} parent=5 // pred_check
      _
    $region10: #{densenet_forward.22} parent=5 // pred_check_branch
      %113 = sbr.rel (%p110) target = $region12
    $region11: #{densenet_forward.22} parent=5 // pred_region
      %s114 = ssub.s32 %s8, 1
      // Predicated region
      $region13: #{densenet_forward.22} parent=11 // pred_check
        %p115 = pneg %p72
      $region14: #{densenet_forward.22} parent=11 // pred_check_branch
        %117 = sbr.rel (%p115) target = $region16
      $region15: #{densenet_forward.22} parent=11 // pred_region
        %p118 = scmp.lt.s32.totalorder %s18, 0
        %s119 = scalar_select %p118, %s18, 0
        %s120 = smul.addr %s119, 4
        %s121 = scalar_lea.vmem %s1, %s120
      $region16: #{densenet_forward.22} parent=11 // pred_fallthru
        _
    $region12: #{densenet_forward.22} parent=5 // pred_fallthru
      _
    %p122 = scmp.lt.s32.totalorder %s8, 2
    // Predicated region
    $region17: #{densenet_forward.22} parent=5 // pred_check
      %p123 = pneg %p122
    $region18: #{densenet_forward.22} parent=5 // pred_check_branch
      %125 = sbr.rel (%p123) target = $region20
    $region19: #{densenet_forward.22} parent=5 // pred_region
      // Predicated region
      $region21: #{densenet_forward.22} parent=19 // pred_check
        %p126 = pneg %p40
      $region22: #{densenet_forward.22} parent=19 // pred_check_branch
        %128 = sbr.rel (%p126) target = $region24
      $region23: #{densenet_forward.22} parent=19 // pred_region
        %p129 = scmp.lt.s32.totalorder %s15, 1
        %s130 = scalar_select %p129, %s15, 1
        %s131 = smul.addr %s130, 3
        %s132 = smul.addr %s131, 4
        %s133 = scalar_lea.vmem %s0, %s132
      $region24: #{densenet_forward.22} parent=19 // pred_fallthru
        _
    $region20: #{densenet_forward.22} parent=5 // pred_fallthru
      _
    %p134 = scmp.le.s32.totalorder 1, %s8
    %p135 = scmp.lt.s32.totalorder %s8, 3
    %p136 = pnand %p134, %p135
    %p137 = pneg %p136
    // Predicated region
    $region25: #{densenet_forward.22} parent=5 // pred_check
      _
    $region26: #{densenet_forward.22} parent=5 // pred_check_branch
      %139 = sbr.rel (%p136) target = $region28
    $region27: #{densenet_forward.22} parent=5 // pred_region
      %s140 = ssub.s32 %s8, 1
      %p141 = scmp.lt.s32.totalorder %s17, 1
      %s142 = scalar_select %p141, %s17, 1
      %s143 = smul.addr %s142, 3
      %s144 = smul.addr %s143, 4
      %s145 = scalar_lea.vmem %s0, %s144
      %p146 = pneg %p46
      %p147 = pneg %p43
      %p148 = scmp.lt.s32.totalorder %s18, 0
      %s149 = scalar_select %p148, %s18, 0
      %s150 = smul.addr %s149, 4
      %s151 = scalar_lea.vmem %s1, %s150
      %p152 = pneg %p72
      %p153 = pneg %p69
      %p154 = pneg %p100
      %p155 = pneg %p97
      %p156 = scmp.lt.s32.totalorder %s17, 1
      %s157 = scalar_select %p156, %s17, 1
      %p158 = scmp.lt.s32.totalorder %s18, 0
      %s159 = scalar_select %p158, %s18, 0
      %s160 = sadd.s32 %s159, %s157
      %s161 = smul.addr %s160, 4
      %s162 = scalar_lea.vmem %s2, %s161
      %p163 = scmp.lt.s32.totalorder %s17, 1
      %s164 = scalar_select %p163, %s17, 1
      %s165 = smul.addr %s164, 3
      %s166 = smul.addr %s165, 4
      %s167 = scalar_lea.vmem %s0, %s166
      %p168 = scmp.lt.s32.totalorder %s18, 0
      %s169 = scalar_select %p168, %s18, 0
      %s170 = smul.addr %s169, 4
      %s171 = scalar_lea.vmem %s1, %s170
      %p172 = scmp.lt.s32.totalorder %s17, 1
      %s173 = scalar_select %p172, %s17, 1
      %p174 = scmp.lt.s32.totalorder %s18, 0
      %s175 = scalar_select %p174, %s18, 0
      %s176 = sadd.s32 %s175, %s173
      %s177 = smul.addr %s176, 4
      %s178 = scalar_lea.vmem %s2, %s177
      %v180 = vld [vmem:[%s167] sm:$0xf]
      %v181 = vld [vmem:[%s171] sm:$0xf]
      %v182 = vld [vmem:[%s171 + $0x4] sm:$0xf]
      %v183 = vld [vmem:[%s171 + $0x8] sm:$0xf]
      %v184 = vld [vmem:[%s171 + $0xc] sm:$0xf]
      %v185 = vld [vmem:[%s171 + $0x10] sm:$0xf]
      %v186 = vld [vmem:[%s171 + $0x14] sm:$0xf]
      %v187 = vld [vmem:[%s171 + $0x18] sm:$0xf]
      %v188 = vld [vmem:[%s171 + $0x1c] sm:$0xf]
      %v189 = vld [vmem:[%s171 + $0x20] sm:$0xf]
      %v190 = vld [vmem:[%s171 + $0x24] sm:$0xf]
      %v191 = vld [vmem:[%s171 + $0x28] sm:$0xf]
      %v192 = vld [vmem:[%s171 + $0x2c] sm:$0xf]
      %v193 = vld [vmem:[%s171 + $0x30] sm:$0xf]
      %v194 = vld [vmem:[%s171 + $0x34] sm:$0xf]
      %v195 = vld [vmem:[%s171 + $0x38] sm:$0xf]
      %v196 = vld [vmem:[%s171 + $0x3c] sm:$0xf]
      %v197 = vld [vmem:[%s167 + $0x4] sm:$0x1]
      %s198 = scalar_lea.vmem %s171, 64
      %v199 = vld [vmem:[%s198] sm:$0xf]
      %v200 = vld [vmem:[%s198 + $0x4] sm:$0xf]
      %v201 = vld [vmem:[%s198 + $0x8] sm:$0xf]
      %v202 = vld [vmem:[%s198 + $0xc] sm:$0xf]
      %v203 = vld [vmem:[%s198 + $0x10] sm:$0xf]
      %v204 = vld [vmem:[%s198 + $0x14] sm:$0xf]
      %v205 = vld [vmem:[%s198 + $0x18] sm:$0xf]
      %v206 = vld [vmem:[%s198 + $0x1c] sm:$0xf]
      %v207 = vld [vmem:[%s198 + $0x20] sm:$0xf]
      %v208 = vld [vmem:[%s198 + $0x24] sm:$0xf]
      %v209 = vld [vmem:[%s198 + $0x28] sm:$0xf]
      %v210 = vld [vmem:[%s198 + $0x2c] sm:$0xf]
      %v211 = vld [vmem:[%s198 + $0x30] sm:$0xf]
      %v212 = vld [vmem:[%s198 + $0x34] sm:$0xf]
      %v213 = vld [vmem:[%s198 + $0x38] sm:$0xf]
      %v214 = vld [vmem:[%s198 + $0x3c] sm:$0xf]
      %v217 = vunpack.c.l.b16 %v180
      %v218 = vunpack.c.l.b16 %v197
      %v219 = vpack.c.b16 %v218, %v217
      %v221 = vshrl.u32 %v219, 16
      %v223 = vshll.u32 %v219, 16
      %v225 = vrot.slane %v223, 1
      %v226 = vor.u32 %v221, %v225
      %v244 = vunpack.c.l.b16 %v199
      %v245 = vunpack.c.l.b16 %v200
      %v246 = vunpack.c.l.b16 %v201
      %v247 = vunpack.c.l.b16 %v202
      %v248 = vunpack.c.l.b16 %v203
      %v249 = vunpack.c.l.b16 %v204
      %v250 = vunpack.c.l.b16 %v205
      %v251 = vunpack.c.l.b16 %v206
      %v252 = vunpack.c.l.b16 %v207
      %v253 = vunpack.c.l.b16 %v208
      %v254 = vunpack.c.l.b16 %v209
      %v255 = vunpack.c.l.b16 %v210
      %v256 = vunpack.c.l.b16 %v211
      %v257 = vunpack.c.l.b16 %v212
      %v258 = vunpack.c.l.b16 %v213
      %v259 = vunpack.c.l.b16 %v214
      %v260 = vpack.c.b16 %v245, %v244
      %v261 = vpack.c.b16 %v247, %v246
      %v262 = vpack.c.b16 %v249, %v248
      %v263 = vpack.c.b16 %v251, %v250
      %v264 = vpack.c.b16 %v253, %v252
      %v265 = vpack.c.b16 %v255, %v254
      %v266 = vpack.c.b16 %v257, %v256
      %v267 = vpack.c.b16 %v259, %v258
      %276 = vmatprep.subr.bf16.mxu0 0
      %277 = vmatpush1.bf16.msra.mxu0 %v267
      %278 = vmatprep.subr.bf16.mxu0 0
      %279 = vmatpush1.bf16.msra.mxu0 %v266
      %280 = vmatprep.subr.bf16.mxu0 0
      %281 = vmatpush1.bf16.msra.mxu0 %v265
      %282 = vmatprep.subr.bf16.mxu0 0
      %283 = vmatpush1.bf16.msra.mxu0 %v264
      %284 = vmatprep.subr.bf16.mxu0 0
      %285 = vmatpush1.bf16.msra.mxu0 %v263
      %286 = vmatprep.subr.bf16.mxu0 0
      %287 = vmatpush1.bf16.msra.mxu0 %v262
      %288 = vmatprep.subr.bf16.mxu0 0
      %289 = vmatpush1.bf16.msra.mxu0 %v261
      %290 = vmatprep.subr.bf16.mxu0 0
      %291 = vmatpush1.bf16.msra.mxu0 %v260
      %292 = vmatprep.subr.bf16.mxu0 0
      %293 = vmatpush2.bf16.msra.mxu0 0
      %294 = vmatprep.subr.bf16.mxu0 0
      %295 = vmatpush2.bf16.msra.mxu0 0
      %296 = vmatprep.subr.bf16.mxu0 0
      %297 = vmatpush2.bf16.msra.mxu0 0
      %298 = vmatprep.subr.bf16.mxu0 0
      %299 = vmatpush2.bf16.msra.mxu0 0
      %300 = vmatprep.subr.bf16.mxu0 0
      %301 = vmatpush2.bf16.msra.mxu0 0
      %302 = vmatprep.subr.bf16.mxu0 0
      %303 = vmatpush2.bf16.msra.mxu0 0
      %304 = vmatprep.subr.bf16.mxu0 0
      %305 = vmatpush2.bf16.msra.mxu0 0
      %306 = vmatprep.subr.bf16.mxu0 0
      %307 = vmatpush2.bf16.msra.mxu0 0
      %308 = vmatprep.mubr.bf16.mxu0 0
      %309 = vmatmul.mubr.bf16.gmra.mxu0 %v226
      %v310 = vpop.f32.mrf.mxu0
      %v311 = vadd.f32 0.0, %v310
      %v312 = vpop.f32.mrf.mxu0
      %v313 = vpop.f32.mrf.mxu0
      %v314 = vpop.f32.mrf.mxu0
      %315 = vdwg.mxu0
      %v332 = vunpack.c.l.b16 %v181
      %v333 = vunpack.c.l.b16 %v182
      %v334 = vunpack.c.l.b16 %v183
      %v335 = vunpack.c.l.b16 %v184
      %v336 = vunpack.c.l.b16 %v185
      %v337 = vunpack.c.l.b16 %v186
      %v338 = vunpack.c.l.b16 %v187
      %v339 = vunpack.c.l.b16 %v188
      %v340 = vunpack.c.l.b16 %v189
      %v341 = vunpack.c.l.b16 %v190
      %v342 = vunpack.c.l.b16 %v191
      %v343 = vunpack.c.l.b16 %v192
      %v344 = vunpack.c.l.b16 %v193
      %v345 = vunpack.c.l.b16 %v194
      %v346 = vunpack.c.l.b16 %v195
      %v347 = vunpack.c.l.b16 %v196
      %v348 = vpack.c.b16 %v333, %v332
      %v349 = vpack.c.b16 %v335, %v334
      %v350 = vpack.c.b16 %v337, %v336
      %v351 = vpack.c.b16 %v339, %v338
      %v352 = vpack.c.b16 %v341, %v340
      %v353 = vpack.c.b16 %v343, %v342
      %v354 = vpack.c.b16 %v345, %v344
      %v355 = vpack.c.b16 %v347, %v346
      %364 = vmatprep.subr.bf16.mxu0 0
      %365 = vmatpush1.bf16.msra.mxu0 %v355
      %366 = vmatprep.subr.bf16.mxu0 0
      %367 = vmatpush1.bf16.msra.mxu0 %v354
      %368 = vmatprep.subr.bf16.mxu0 0
      %369 = vmatpush1.bf16.msra.mxu0 %v353
      %370 = vmatprep.subr.bf16.mxu0 0
      %371 = vmatpush1.bf16.msra.mxu0 %v352
      %372 = vmatprep.subr.bf16.mxu0 0
      %373 = vmatpush1.bf16.msra.mxu0 %v351
      %374 = vmatprep.subr.bf16.mxu0 0
      %375 = vmatpush1.bf16.msra.mxu0 %v350
      %376 = vmatprep.subr.bf16.mxu0 0
      %377 = vmatpush1.bf16.msra.mxu0 %v349
      %378 = vmatprep.subr.bf16.mxu0 0
      %379 = vmatpush1.bf16.msra.mxu0 %v348
      %380 = vmatprep.subr.bf16.mxu0 0
      %381 = vmatpush2.bf16.msra.mxu0 0
      %382 = vmatprep.subr.bf16.mxu0 0
      %383 = vmatpush2.bf16.msra.mxu0 0
      %384 = vmatprep.subr.bf16.mxu0 0
      %385 = vmatpush2.bf16.msra.mxu0 0
      %386 = vmatprep.subr.bf16.mxu0 0
      %387 = vmatpush2.bf16.msra.mxu0 0
      %388 = vmatprep.subr.bf16.mxu0 0
      %389 = vmatpush2.bf16.msra.mxu0 0
      %390 = vmatprep.subr.bf16.mxu0 0
      %391 = vmatpush2.bf16.msra.mxu0 0
      %392 = vmatprep.subr.bf16.mxu0 0
      %393 = vmatpush2.bf16.msra.mxu0 0
      %394 = vmatprep.subr.bf16.mxu0 0
      %395 = vmatpush2.bf16.msra.mxu0 0
      %396 = vmatprep.mubr.bf16.mxu0 0
      %397 = vmatmul.mubr.bf16.gmra.mxu0 %v180
      %v398 = vpop.f32.mrf.mxu0
      %v399 = vadd.f32 %v311, %v398
      %v400 = vpop.f32.mrf.mxu0
      %v401 = vpop.f32.mrf.mxu0
      %v402 = vpop.f32.mrf.mxu0
      %403 = vdwg.mxu0
      %v404 = vld [vmem:[%s167] sm:$0xe]
      %s405 = scalar_lea.vmem %s171, 128
      %v406 = vld [vmem:[%s405] sm:$0xf]
      %v407 = vld [vmem:[%s405 + $0x4] sm:$0xf]
      %v408 = vld [vmem:[%s405 + $0x8] sm:$0xf]
      %v409 = vld [vmem:[%s405 + $0xc] sm:$0xf]
      %v410 = vld [vmem:[%s405 + $0x10] sm:$0xf]
      %v411 = vld [vmem:[%s405 + $0x14] sm:$0xf]
      %v412 = vld [vmem:[%s405 + $0x18] sm:$0xf]
      %v413 = vld [vmem:[%s405 + $0x1c] sm:$0xf]
      %v414 = vld [vmem:[%s405 + $0x20] sm:$0xf]
      %v415 = vld [vmem:[%s405 + $0x24] sm:$0xf]
      %v416 = vld [vmem:[%s405 + $0x28] sm:$0xf]
      %v417 = vld [vmem:[%s405 + $0x2c] sm:$0xf]
      %v418 = vld [vmem:[%s405 + $0x30] sm:$0xf]
      %v419 = vld [vmem:[%s405 + $0x34] sm:$0xf]
      %v420 = vld [vmem:[%s405 + $0x38] sm:$0xf]
      %v421 = vld [vmem:[%s405 + $0x3c] sm:$0xf]
      %v423 = vunpack.c.l.b16 %v404
      %v424 = vpack.c.b16 %v218, %v423
      %v425 = vrot.slane %v424, 1
      %v443 = vunpack.c.l.b16 %v406
      %v444 = vunpack.c.l.b16 %v407
      %v445 = vunpack.c.l.b16 %v408
      %v446 = vunpack.c.l.b16 %v409
      %v447 = vunpack.c.l.b16 %v410
      %v448 = vunpack.c.l.b16 %v411
      %v449 = vunpack.c.l.b16 %v412
      %v450 = vunpack.c.l.b16 %v413
      %v451 = vunpack.c.l.b16 %v414
      %v452 = vunpack.c.l.b16 %v415
      %v453 = vunpack.c.l.b16 %v416
      %v454 = vunpack.c.l.b16 %v417
      %v455 = vunpack.c.l.b16 %v418
      %v456 = vunpack.c.l.b16 %v419
      %v457 = vunpack.c.l.b16 %v420
      %v458 = vunpack.c.l.b16 %v421
      %v459 = vpack.c.b16 %v444, %v443
      %v460 = vpack.c.b16 %v446, %v445
      %v461 = vpack.c.b16 %v448, %v447
      %v462 = vpack.c.b16 %v450, %v449
      %v463 = vpack.c.b16 %v452, %v451
      %v464 = vpack.c.b16 %v454, %v453
      %v465 = vpack.c.b16 %v456, %v455
      %v466 = vpack.c.b16 %v458, %v457
      %475 = vmatprep.subr.bf16.mxu0 0
      %476 = vmatpush1.bf16.msra.mxu0 %v466
      %477 = vmatprep.subr.bf16.mxu0 0
      %478 = vmatpush1.bf16.msra.mxu0 %v465
      %479 = vmatprep.subr.bf16.mxu0 0
      %480 = vmatpush1.bf16.msra.mxu0 %v464
      %481 = vmatprep.subr.bf16.mxu0 0
      %482 = vmatpush1.bf16.msra.mxu0 %v463
      %483 = vmatprep.subr.bf16.mxu0 0
      %484 = vmatpush1.bf16.msra.mxu0 %v462
      %485 = vmatprep.subr.bf16.mxu0 0
      %486 = vmatpush1.bf16.msra.mxu0 %v461
      %487 = vmatprep.subr.bf16.mxu0 0
      %488 = vmatpush1.bf16.msra.mxu0 %v460
      %489 = vmatprep.subr.bf16.mxu0 0
      %490 = vmatpush1.bf16.msra.mxu0 %v459
      %491 = vmatprep.subr.bf16.mxu0 0
      %492 = vmatpush2.bf16.msra.mxu0 0
      %493 = vmatprep.subr.bf16.mxu0 0
      %494 = vmatpush2.bf16.msra.mxu0 0
      %495 = vmatprep.subr.bf16.mxu0 0
      %496 = vmatpush2.bf16.msra.mxu0 0
      %497 = vmatprep.subr.bf16.mxu0 0
      %498 = vmatpush2.bf16.msra.mxu0 0
      %499 = vmatprep.subr.bf16.mxu0 0
      %500 = vmatpush2.bf16.msra.mxu0 0
      %501 = vmatprep.subr.bf16.mxu0 0
      %502 = vmatpush2.bf16.msra.mxu0 0
      %503 = vmatprep.subr.bf16.mxu0 0
      %504 = vmatpush2.bf16.msra.mxu0 0
      %505 = vmatprep.subr.bf16.mxu0 0
      %506 = vmatpush2.bf16.msra.mxu0 0
      %507 = vmatprep.mubr.bf16.mxu0 0
      %508 = vmatmul.mubr.bf16.gmra.mxu0 %v425
      %v509 = vpop.f32.mrf.mxu0
      %v510 = vadd.f32 0.0, %v509
      %v511 = vpop.f32.mrf.mxu0
      %v512 = vpop.f32.mrf.mxu0
      %v513 = vpop.f32.mrf.mxu0
      %514 = vdwg.mxu0
      %v515 = vadd.f32 %v399, %v510
      %v516 = vld [vmem:[%s167] sm:$0xc]
      %v517 = vld [vmem:[%s167 + $0x4] sm:$0x3]
      %s518 = scalar_lea.vmem %s171, 192
      %v519 = vld [vmem:[%s518] sm:$0xf]
      %v520 = vld [vmem:[%s518 + $0x4] sm:$0xf]
      %v521 = vld [vmem:[%s518 + $0x8] sm:$0xf]
      %v522 = vld [vmem:[%s518 + $0xc] sm:$0xf]
      %v523 = vld [vmem:[%s518 + $0x10] sm:$0xf]
      %v524 = vld [vmem:[%s518 + $0x14] sm:$0xf]
      %v525 = vld [vmem:[%s518 + $0x18] sm:$0xf]
      %v526 = vld [vmem:[%s518 + $0x1c] sm:$0xf]
      %v527 = vld [vmem:[%s518 + $0x20] sm:$0xf]
      %v528 = vld [vmem:[%s518 + $0x24] sm:$0xf]
      %v529 = vld [vmem:[%s518 + $0x28] sm:$0xf]
      %v530 = vld [vmem:[%s518 + $0x2c] sm:$0xf]
      %v531 = vld [vmem:[%s518 + $0x30] sm:$0xf]
      %v532 = vld [vmem:[%s518 + $0x34] sm:$0xf]
      %v533 = vld [vmem:[%s518 + $0x38] sm:$0xf]
      %v534 = vld [vmem:[%s518 + $0x3c] sm:$0xf]
      %v537 = vunpack.c.l.b16 %v516
      %v538 = vunpack.c.l.b16 %v517
      %v539 = vpack.c.b16 %v538, %v537
      %v540 = vrot.slane %v539, 2
      %v558 = vunpack.c.l.b16 %v519
      %v559 = vunpack.c.l.b16 %v520
      %v560 = vunpack.c.l.b16 %v521
      %v561 = vunpack.c.l.b16 %v522
      %v562 = vunpack.c.l.b16 %v523
      %v563 = vunpack.c.l.b16 %v524
      %v564 = vunpack.c.l.b16 %v525
      %v565 = vunpack.c.l.b16 %v526
      %v566 = vunpack.c.l.b16 %v527
      %v567 = vunpack.c.l.b16 %v528
      %v568 = vunpack.c.l.b16 %v529
      %v569 = vunpack.c.l.b16 %v530
      %v570 = vunpack.c.l.b16 %v531
      %v571 = vunpack.c.l.b16 %v532
      %v572 = vunpack.c.l.b16 %v533
      %v573 = vunpack.c.l.b16 %v534
      %v574 = vpack.c.b16 %v559, %v558
      %v575 = vpack.c.b16 %v561, %v560
      %v576 = vpack.c.b16 %v563, %v562
      %v577 = vpack.c.b16 %v565, %v564
      %v578 = vpack.c.b16 %v567, %v566
      %v579 = vpack.c.b16 %v569, %v568
      %v580 = vpack.c.b16 %v571, %v570
      %v581 = vpack.c.b16 %v573, %v572
      %590 = vmatprep.subr.bf16.mxu0 0
      %591 = vmatpush1.bf16.msra.mxu0 %v581
      %592 = vmatprep.subr.bf16.mxu0 0
      %593 = vmatpush1.bf16.msra.mxu0 %v580
      %594 = vmatprep.subr.bf16.mxu0 0
      %595 = vmatpush1.bf16.msra.mxu0 %v579
      %596 = vmatprep.subr.bf16.mxu0 0
      %597 = vmatpush1.bf16.msra.mxu0 %v578
      %598 = vmatprep.subr.bf16.mxu0 0
      %599 = vmatpush1.bf16.msra.mxu0 %v577
      %600 = vmatprep.subr.bf16.mxu0 0
      %601 = vmatpush1.bf16.msra.mxu0 %v576
      %602 = vmatprep.subr.bf16.mxu0 0
      %603 = vmatpush1.bf16.msra.mxu0 %v575
      %604 = vmatprep.subr.bf16.mxu0 0
      %605 = vmatpush1.bf16.msra.mxu0 %v574
      %606 = vmatprep.subr.bf16.mxu0 0
      %607 = vmatpush2.bf16.msra.mxu0 0
      %608 = vmatprep.subr.bf16.mxu0 0
      %609 = vmatpush2.bf16.msra.mxu0 0
      %610 = vmatprep.subr.bf16.mxu0 0
      %611 = vmatpush2.bf16.msra.mxu0 0
      %612 = vmatprep.subr.bf16.mxu0 0
      %613 = vmatpush2.bf16.msra.mxu0 0
      %614 = vmatprep.subr.bf16.mxu0 0
      %615 = vmatpush2.bf16.msra.mxu0 0
      %616 = vmatprep.subr.bf16.mxu0 0
      %617 = vmatpush2.bf16.msra.mxu0 0
      %618 = vmatprep.subr.bf16.mxu0 0
      %619 = vmatpush2.bf16.msra.mxu0 0
      %620 = vmatprep.subr.bf16.mxu0 0
      %621 = vmatpush2.bf16.msra.mxu0 0
      %622 = vmatprep.mubr.bf16.mxu0 0
      %623 = vmatmul.mubr.bf16.gmra.mxu0 %v540
      %v624 = vpop.f32.mrf.mxu0
      %v625 = vadd.f32 0.0, %v624
      %v626 = vpop.f32.mrf.mxu0
      %v627 = vpop.f32.mrf.mxu0
      %v628 = vpop.f32.mrf.mxu0
      %629 = vdwg.mxu0
      %v630 = vadd.f32 %v515, %v625
      %v631 = vld [vmem:[%s167 + $0x4] sm:$0x7]
      %s632 = scalar_lea.vmem %s171, 256
      %v633 = vld [vmem:[%s632] sm:$0xf]
      %v634 = vld [vmem:[%s632 + $0x4] sm:$0xf]
      %v635 = vld [vmem:[%s632 + $0x8] sm:$0xf]
      %v636 = vld [vmem:[%s632 + $0xc] sm:$0xf]
      %v637 = vld [vmem:[%s632 + $0x10] sm:$0xf]
      %v638 = vld [vmem:[%s632 + $0x14] sm:$0xf]
      %v639 = vld [vmem:[%s632 + $0x18] sm:$0xf]
      %v640 = vld [vmem:[%s632 + $0x1c] sm:$0xf]
      %v641 = vld [vmem:[%s632 + $0x20] sm:$0xf]
      %v642 = vld [vmem:[%s632 + $0x24] sm:$0xf]
      %v643 = vld [vmem:[%s632 + $0x28] sm:$0xf]
      %v644 = vld [vmem:[%s632 + $0x2c] sm:$0xf]
      %v645 = vld [vmem:[%s632 + $0x30] sm:$0xf]
      %v646 = vld [vmem:[%s632 + $0x34] sm:$0xf]
      %v647 = vld [vmem:[%s632 + $0x38] sm:$0xf]
      %v648 = vld [vmem:[%s632 + $0x3c] sm:$0xf]
      %v650 = vunpack.c.l.b16 %v631
      %v651 = vpack.c.b16 %v650, %v537
      %v653 = vshrl.u32 %v651, 16
      %v655 = vrot.slane %v653, 2
      %v656 = vshll.u32 %v651, 16
      %v658 = vrot.slane %v656, 3
      %v659 = vor.u32 %v655, %v658
      %v677 = vunpack.c.l.b16 %v633
      %v678 = vunpack.c.l.b16 %v634
      %v679 = vunpack.c.l.b16 %v635
      %v680 = vunpack.c.l.b16 %v636
      %v681 = vunpack.c.l.b16 %v637
      %v682 = vunpack.c.l.b16 %v638
      %v683 = vunpack.c.l.b16 %v639
      %v684 = vunpack.c.l.b16 %v640
      %v685 = vunpack.c.l.b16 %v641
      %v686 = vunpack.c.l.b16 %v642
      %v687 = vunpack.c.l.b16 %v643
      %v688 = vunpack.c.l.b16 %v644
      %v689 = vunpack.c.l.b16 %v645
      %v690 = vunpack.c.l.b16 %v646
      %v691 = vunpack.c.l.b16 %v647
      %v692 = vunpack.c.l.b16 %v648
      %v693 = vpack.c.b16 %v678, %v677
      %v694 = vpack.c.b16 %v680, %v679
      %v695 = vpack.c.b16 %v682, %v681
      %v696 = vpack.c.b16 %v684, %v683
      %v697 = vpack.c.b16 %v686, %v685
      %v698 = vpack.c.b16 %v688, %v687
      %v699 = vpack.c.b16 %v690, %v689
      %v700 = vpack.c.b16 %v692, %v691
      %709 = vmatprep.subr.bf16.mxu0 0
      %710 = vmatpush1.bf16.msra.mxu0 %v700
      %711 = vmatprep.subr.bf16.mxu0 0
      %712 = vmatpush1.bf16.msra.mxu0 %v699
      %713 = vmatprep.subr.bf16.mxu0 0
      %714 = vmatpush1.bf16.msra.mxu0 %v698
      %715 = vmatprep.subr.bf16.mxu0 0
      %716 = vmatpush1.bf16.msra.mxu0 %v697
      %717 = vmatprep.subr.bf16.mxu0 0
      %718 = vmatpush1.bf16.msra.mxu0 %v696
      %719 = vmatprep.subr.bf16.mxu0 0
      %720 = vmatpush1.bf16.msra.mxu0 %v695
      %721 = vmatprep.subr.bf16.mxu0 0
      %722 = vmatpush1.bf16.msra.mxu0 %v694
      %723 = vmatprep.subr.bf16.mxu0 0
      %724 = vmatpush1.bf16.msra.mxu0 %v693
      %725 = vmatprep.subr.bf16.mxu0 0
      %726 = vmatpush2.bf16.msra.mxu0 0
      %727 = vmatprep.subr.bf16.mxu0 0
      %728 = vmatpush2.bf16.msra.mxu0 0
      %729 = vmatprep.subr.bf16.mxu0 0
      %730 = vmatpush2.bf16.msra.mxu0 0
      %731 = vmatprep.subr.bf16.mxu0 0
      %732 = vmatpush2.bf16.msra.mxu0 0
      %733 = vmatprep.subr.bf16.mxu0 0
      %734 = vmatpush2.bf16.msra.mxu0 0
      %735 = vmatprep.subr.bf16.mxu0 0
      %736 = vmatpush2.bf16.msra.mxu0 0
      %737 = vmatprep.subr.bf16.mxu0 0
      %738 = vmatpush2.bf16.msra.mxu0 0
      %739 = vmatprep.subr.bf16.mxu0 0
      %740 = vmatpush2.bf16.msra.mxu0 0
      %741 = vmatprep.mubr.bf16.mxu0 0
      %742 = vmatmul.mubr.bf16.gmra.mxu0 %v659
      %v743 = vpop.f32.mrf.mxu0
      %v744 = vadd.f32 0.0, %v743
      %v745 = vpop.f32.mrf.mxu0
      %v746 = vpop.f32.mrf.mxu0
      %v747 = vpop.f32.mrf.mxu0
      %748 = vdwg.mxu0
      %v749 = vadd.f32 %v630, %v744
      %v750 = vld [vmem:[%s167] sm:$0x8]
      %s751 = scalar_lea.vmem %s171, 320
      %v752 = vld [vmem:[%s751] sm:$0xf]
      %v753 = vld [vmem:[%s751 + $0x4] sm:$0xf]
      %v754 = vld [vmem:[%s751 + $0x8] sm:$0xf]
      %v755 = vld [vmem:[%s751 + $0xc] sm:$0xf]
      %v756 = vld [vmem:[%s751 + $0x10] sm:$0xf]
      %v757 = vld [vmem:[%s751 + $0x14] sm:$0xf]
      %v758 = vld [vmem:[%s751 + $0x18] sm:$0xf]
      %v759 = vld [vmem:[%s751 + $0x1c] sm:$0xf]
      %v760 = vld [vmem:[%s751 + $0x20] sm:$0xf]
      %v761 = vld [vmem:[%s751 + $0x24] sm:$0xf]
      %v762 = vld [vmem:[%s751 + $0x28] sm:$0xf]
      %v763 = vld [vmem:[%s751 + $0x2c] sm:$0xf]
      %v764 = vld [vmem:[%s751 + $0x30] sm:$0xf]
      %v765 = vld [vmem:[%s751 + $0x34] sm:$0xf]
      %v766 = vld [vmem:[%s751 + $0x38] sm:$0xf]
      %v767 = vld [vmem:[%s751 + $0x3c] sm:$0xf]
      %v769 = vunpack.c.l.b16 %v750
      %v770 = vpack.c.b16 %v650, %v769
      %v771 = vrot.slane %v770, 3
      %v789 = vunpack.c.l.b16 %v752
      %v790 = vunpack.c.l.b16 %v753
      %v791 = vunpack.c.l.b16 %v754
      %v792 = vunpack.c.l.b16 %v755
      %v793 = vunpack.c.l.b16 %v756
      %v794 = vunpack.c.l.b16 %v757
      %v795 = vunpack.c.l.b16 %v758
      %v796 = vunpack.c.l.b16 %v759
      %v797 = vunpack.c.l.b16 %v760
      %v798 = vunpack.c.l.b16 %v761
      %v799 = vunpack.c.l.b16 %v762
      %v800 = vunpack.c.l.b16 %v763
      %v801 = vunpack.c.l.b16 %v764
      %v802 = vunpack.c.l.b16 %v765
      %v803 = vunpack.c.l.b16 %v766
      %v804 = vunpack.c.l.b16 %v767
      %v805 = vpack.c.b16 %v790, %v789
      %v806 = vpack.c.b16 %v792, %v791
      %v807 = vpack.c.b16 %v794, %v793
      %v808 = vpack.c.b16 %v796, %v795
      %v809 = vpack.c.b16 %v798, %v797
      %v810 = vpack.c.b16 %v800, %v799
      %v811 = vpack.c.b16 %v802, %v801
      %v812 = vpack.c.b16 %v804, %v803
      %821 = vmatprep.subr.bf16.mxu0 0
      %822 = vmatpush1.bf16.msra.mxu0 %v812
      %823 = vmatprep.subr.bf16.mxu0 0
      %824 = vmatpush1.bf16.msra.mxu0 %v811
      %825 = vmatprep.subr.bf16.mxu0 0
      %826 = vmatpush1.bf16.msra.mxu0 %v810
      %827 = vmatprep.subr.bf16.mxu0 0
      %828 = vmatpush1.bf16.msra.mxu0 %v809
      %829 = vmatprep.subr.bf16.mxu0 0
      %830 = vmatpush1.bf16.msra.mxu0 %v808
      %831 = vmatprep.subr.bf16.mxu0 0
      %832 = vmatpush1.bf16.msra.mxu0 %v807
      %833 = vmatprep.subr.bf16.mxu0 0
      %834 = vmatpush1.bf16.msra.mxu0 %v806
      %835 = vmatprep.subr.bf16.mxu0 0
      %836 = vmatpush1.bf16.msra.mxu0 %v805
      %837 = vmatprep.subr.bf16.mxu0 0
      %838 = vmatpush2.bf16.msra.mxu0 0
      %839 = vmatprep.subr.bf16.mxu0 0
      %840 = vmatpush2.bf16.msra.mxu0 0
      %841 = vmatprep.subr.bf16.mxu0 0
      %842 = vmatpush2.bf16.msra.mxu0 0
      %843 = vmatprep.subr.bf16.mxu0 0
      %844 = vmatpush2.bf16.msra.mxu0 0
      %845 = vmatprep.subr.bf16.mxu0 0
      %846 = vmatpush2.bf16.msra.mxu0 0
      %847 = vmatprep.subr.bf16.mxu0 0
      %848 = vmatpush2.bf16.msra.mxu0 0
      %849 = vmatprep.subr.bf16.mxu0 0
      %850 = vmatpush2.bf16.msra.mxu0 0
      %851 = vmatprep.subr.bf16.mxu0 0
      %852 = vmatpush2.bf16.msra.mxu0 0
      %853 = vmatprep.mubr.bf16.mxu0 0
      %854 = vmatmul.mubr.bf16.gmra.mxu0 %v771
      %v855 = vpop.f32.mrf.mxu0
      %v856 = vadd.f32 0.0, %v855
      %v857 = vpop.f32.mrf.mxu0
      %v858 = vpop.f32.mrf.mxu0
      %v859 = vpop.f32.mrf.mxu0
      %860 = vdwg.mxu0
      %v861 = vadd.f32 %v749, %v856
      %v862 = vld [vmem:[%s167 + $0x4] sm:$0xf]
      %s863 = scalar_lea.vmem %s171, 384
      %v864 = vld [vmem:[%s863] sm:$0xf]
      %v865 = vld [vmem:[%s863 + $0x4] sm:$0xf]
      %v866 = vld [vmem:[%s863 + $0x8] sm:$0xf]
      %v867 = vld [vmem:[%s863 + $0xc] sm:$0xf]
      %v868 = vld [vmem:[%s863 + $0x10] sm:$0xf]
      %v869 = vld [vmem:[%s863 + $0x14] sm:$0xf]
      %v870 = vld [vmem:[%s863 + $0x18] sm:$0xf]
      %v871 = vld [vmem:[%s863 + $0x1c] sm:$0xf]
      %v872 = vld [vmem:[%s863 + $0x20] sm:$0xf]
      %v873 = vld [vmem:[%s863 + $0x24] sm:$0xf]
      %v874 = vld [vmem:[%s863 + $0x28] sm:$0xf]
      %v875 = vld [vmem:[%s863 + $0x2c] sm:$0xf]
      %v876 = vld [vmem:[%s863 + $0x30] sm:$0xf]
      %v877 = vld [vmem:[%s863 + $0x34] sm:$0xf]
      %v878 = vld [vmem:[%s863 + $0x38] sm:$0xf]
      %v879 = vld [vmem:[%s863 + $0x3c] sm:$0xf]
      %v896 = vunpack.c.l.b16 %v864
      %v897 = vunpack.c.l.b16 %v865
      %v898 = vunpack.c.l.b16 %v866
      %v899 = vunpack.c.l.b16 %v867
      %v900 = vunpack.c.l.b16 %v868
      %v901 = vunpack.c.l.b16 %v869
      %v902 = vunpack.c.l.b16 %v870
      %v903 = vunpack.c.l.b16 %v871
      %v904 = vunpack.c.l.b16 %v872
      %v905 = vunpack.c.l.b16 %v873
      %v906 = vunpack.c.l.b16 %v874
      %v907 = vunpack.c.l.b16 %v875
      %v908 = vunpack.c.l.b16 %v876
      %v909 = vunpack.c.l.b16 %v877
      %v910 = vunpack.c.l.b16 %v878
      %v911 = vunpack.c.l.b16 %v879
      %v912 = vpack.c.b16 %v897, %v896
      %v913 = vpack.c.b16 %v899, %v898
      %v914 = vpack.c.b16 %v901, %v900
      %v915 = vpack.c.b16 %v903, %v902
      %v916 = vpack.c.b16 %v905, %v904
      %v917 = vpack.c.b16 %v907, %v906
      %v918 = vpack.c.b16 %v909, %v908
      %v919 = vpack.c.b16 %v911, %v910
      %928 = vmatprep.subr.bf16.mxu0 0
      %929 = vmatpush1.bf16.msra.mxu0 %v919
      %930 = vmatprep.subr.bf16.mxu0 0
      %931 = vmatpush1.bf16.msra.mxu0 %v918
      %932 = vmatprep.subr.bf16.mxu0 0
      %933 = vmatpush1.bf16.msra.mxu0 %v917
      %934 = vmatprep.subr.bf16.mxu0 0
      %935 = vmatpush1.bf16.msra.mxu0 %v916
      %936 = vmatprep.subr.bf16.mxu0 0
      %937 = vmatpush1.bf16.msra.mxu0 %v915
      %938 = vmatprep.subr.bf16.mxu0 0
      %939 = vmatpush1.bf16.msra.mxu0 %v914
      %940 = vmatprep.subr.bf16.mxu0 0
      %941 = vmatpush1.bf16.msra.mxu0 %v913
      %942 = vmatprep.subr.bf16.mxu0 0
      %943 = vmatpush1.bf16.msra.mxu0 %v912
      %944 = vmatprep.subr.bf16.mxu0 0
      %945 = vmatpush2.bf16.msra.mxu0 0
      %946 = vmatprep.subr.bf16.mxu0 0
      %947 = vmatpush2.bf16.msra.mxu0 0
      %948 = vmatprep.subr.bf16.mxu0 0
      %949 = vmatpush2.bf16.msra.mxu0 0
      %950 = vmatprep.subr.bf16.mxu0 0
      %951 = vmatpush2.bf16.msra.mxu0 0
      %952 = vmatprep.subr.bf16.mxu0 0
      %953 = vmatpush2.bf16.msra.mxu0 0
      %954 = vmatprep.subr.bf16.mxu0 0
      %955 = vmatpush2.bf16.msra.mxu0 0
      %956 = vmatprep.subr.bf16.mxu0 0
      %957 = vmatpush2.bf16.msra.mxu0 0
      %958 = vmatprep.subr.bf16.mxu0 0
      %959 = vmatpush2.bf16.msra.mxu0 0
      %960 = vmatprep.mubr.bf16.mxu0 0
      %961 = vmatmul.mubr.bf16.gmra.mxu0 %v862
      %v962 = vpop.f32.mrf.mxu0
      %v963 = vadd.f32 0.0, %v962
      %v964 = vpop.f32.mrf.mxu0
      %v965 = vpop.f32.mrf.mxu0
      %v966 = vpop.f32.mrf.mxu0
      %967 = vdwg.mxu0
      %v968 = vadd.f32 %v861, %v963
      %v969 = vld [vmem:[%s167 + $0x4] sm:$0xf]
      %v970 = vld [vmem:[%s167 + $0x8] sm:$0x1]
      %s971 = scalar_lea.vmem %s171, 448
      %v972 = vld [vmem:[%s971] sm:$0xf]
      %v973 = vld [vmem:[%s971 + $0x4] sm:$0xf]
      %v974 = vld [vmem:[%s971 + $0x8] sm:$0xf]
      %v975 = vld [vmem:[%s971 + $0xc] sm:$0xf]
      %v976 = vld [vmem:[%s971 + $0x10] sm:$0xf]
      %v977 = vld [vmem:[%s971 + $0x14] sm:$0xf]
      %v978 = vld [vmem:[%s971 + $0x18] sm:$0xf]
      %v979 = vld [vmem:[%s971 + $0x1c] sm:$0xf]
      %v980 = vld [vmem:[%s971 + $0x20] sm:$0xf]
      %v981 = vld [vmem:[%s971 + $0x24] sm:$0xf]
      %v982 = vld [vmem:[%s971 + $0x28] sm:$0xf]
      %v983 = vld [vmem:[%s971 + $0x2c] sm:$0xf]
      %v984 = vld [vmem:[%s971 + $0x30] sm:$0xf]
      %v985 = vld [vmem:[%s971 + $0x34] sm:$0xf]
      %v986 = vld [vmem:[%s971 + $0x38] sm:$0xf]
      %v987 = vld [vmem:[%s971 + $0x3c] sm:$0xf]
      %v990 = vunpack.c.l.b16 %v969
      %v991 = vunpack.c.l.b16 %v970
      %v992 = vpack.c.b16 %v991, %v990
      %v994 = vshrl.u32 %v992, 16
      %v996 = vshll.u32 %v992, 16
      %v998 = vrot.slane %v996, 1
      %v999 = vor.u32 %v994, %v998
      %v1017 = vunpack.c.l.b16 %v972
      %v1018 = vunpack.c.l.b16 %v973
      %v1019 = vunpack.c.l.b16 %v974
      %v1020 = vunpack.c.l.b16 %v975
      %v1021 = vunpack.c.l.b16 %v976
      %v1022 = vunpack.c.l.b16 %v977
      %v1023 = vunpack.c.l.b16 %v978
      %v1024 = vunpack.c.l.b16 %v979
      %v1025 = vunpack.c.l.b16 %v980
      %v1026 = vunpack.c.l.b16 %v981
      %v1027 = vunpack.c.l.b16 %v982
      %v1028 = vunpack.c.l.b16 %v983
      %v1029 = vunpack.c.l.b16 %v984
      %v1030 = vunpack.c.l.b16 %v985
      %v1031 = vunpack.c.l.b16 %v986
      %v1032 = vunpack.c.l.b16 %v987
      %v1033 = vpack.c.b16 %v1018, %v1017
      %v1034 = vpack.c.b16 %v1020, %v1019
      %v1035 = vpack.c.b16 %v1022, %v1021
      %v1036 = vpack.c.b16 %v1024, %v1023
      %v1037 = vpack.c.b16 %v1026, %v1025
      %v1038 = vpack.c.b16 %v1028, %v1027
      %v1039 = vpack.c.b16 %v1030, %v1029
      %v1040 = vpack.c.b16 %v1032, %v1031
      %1049 = vmatprep.subr.bf16.mxu0 0
      %1050 = vmatpush1.bf16.msra.mxu0 %v1040
      %1051 = vmatprep.subr.bf16.mxu0 0
      %1052 = vmatpush1.bf16.msra.mxu0 %v1039
      %1053 = vmatprep.subr.bf16.mxu0 0
      %1054 = vmatpush1.bf16.msra.mxu0 %v1038
      %1055 = vmatprep.subr.bf16.mxu0 0
      %1056 = vmatpush1.bf16.msra.mxu0 %v1037
      %1057 = vmatprep.subr.bf16.mxu0 0
      %1058 = vmatpush1.bf16.msra.mxu0 %v1036
      %1059 = vmatprep.subr.bf16.mxu0 0
      %1060 = vmatpush1.bf16.msra.mxu0 %v1035
      %1061 = vmatprep.subr.bf16.mxu0 0
      %1062 = vmatpush1.bf16.msra.mxu0 %v1034
      %1063 = vmatprep.subr.bf16.mxu0 0
      %1064 = vmatpush1.bf16.msra.mxu0 %v1033
      %1065 = vmatprep.subr.bf16.mxu0 0
      %1066 = vmatpush2.bf16.msra.mxu0 0
      %1067 = vmatprep.subr.bf16.mxu0 0
      %1068 = vmatpush2.bf16.msra.mxu0 0
      %1069 = vmatprep.subr.bf16.mxu0 0
      %1070 = vmatpush2.bf16.msra.mxu0 0
      %1071 = vmatprep.subr.bf16.mxu0 0
      %1072 = vmatpush2.bf16.msra.mxu0 0
      %1073 = vmatprep.subr.bf16.mxu0 0
      %1074 = vmatpush2.bf16.msra.mxu0 0
      %1075 = vmatprep.subr.bf16.mxu0 0
      %1076 = vmatpush2.bf16.msra.mxu0 0
      %1077 = vmatprep.subr.bf16.mxu0 0
      %1078 = vmatpush2.bf16.msra.mxu0 0
      %1079 = vmatprep.subr.bf16.mxu0 0
      %1080 = vmatpush2.bf16.msra.mxu0 0
      %1081 = vmatprep.mubr.bf16.mxu0 0
      %1082 = vmatmul.mubr.bf16.gmra.mxu0 %v999
      %v1083 = vpop.f32.mrf.mxu0
      %v1084 = vadd.f32 0.0, %v1083
      %v1085 = vpop.f32.mrf.mxu0
      %v1086 = vpop.f32.mrf.mxu0
      %v1087 = vpop.f32.mrf.mxu0
      %1088 = vdwg.mxu0
      %v1089 = vadd.f32 %v968, %v1084
      %v1090 = vld [vmem:[%s167 + $0x4] sm:$0xe]
      %s1091 = scalar_lea.vmem %s171, 512
      %v1092 = vld [vmem:[%s1091] sm:$0xf]
      %v1093 = vld [vmem:[%s1091 + $0x4] sm:$0xf]
      %v1094 = vld [vmem:[%s1091 + $0x8] sm:$0xf]
      %v1095 = vld [vmem:[%s1091 + $0xc] sm:$0xf]
      %v1096 = vld [vmem:[%s1091 + $0x10] sm:$0xf]
      %v1097 = vld [vmem:[%s1091 + $0x14] sm:$0xf]
      %v1098 = vld [vmem:[%s1091 + $0x18] sm:$0xf]
      %v1099 = vld [vmem:[%s1091 + $0x1c] sm:$0xf]
      %v1100 = vld [vmem:[%s1091 + $0x20] sm:$0xf]
      %v1101 = vld [vmem:[%s1091 + $0x24] sm:$0xf]
      %v1102 = vld [vmem:[%s1091 + $0x28] sm:$0xf]
      %v1103 = vld [vmem:[%s1091 + $0x2c] sm:$0xf]
      %v1104 = vld [vmem:[%s1091 + $0x30] sm:$0xf]
      %v1105 = vld [vmem:[%s1091 + $0x34] sm:$0xf]
      %v1106 = vld [vmem:[%s1091 + $0x38] sm:$0xf]
      %v1107 = vld [vmem:[%s1091 + $0x3c] sm:$0xf]
      %v1109 = vunpack.c.l.b16 %v1090
      %v1110 = vpack.c.b16 %v991, %v1109
      %v1111 = vrot.slane %v1110, 1
      %v1129 = vunpack.c.l.b16 %v1092
      %v1130 = vunpack.c.l.b16 %v1093
      %v1131 = vunpack.c.l.b16 %v1094
      %v1132 = vunpack.c.l.b16 %v1095
      %v1133 = vunpack.c.l.b16 %v1096
      %v1134 = vunpack.c.l.b16 %v1097
      %v1135 = vunpack.c.l.b16 %v1098
      %v1136 = vunpack.c.l.b16 %v1099
      %v1137 = vunpack.c.l.b16 %v1100
      %v1138 = vunpack.c.l.b16 %v1101
      %v1139 = vunpack.c.l.b16 %v1102
      %v1140 = vunpack.c.l.b16 %v1103
      %v1141 = vunpack.c.l.b16 %v1104
      %v1142 = vunpack.c.l.b16 %v1105
      %v1143 = vunpack.c.l.b16 %v1106
      %v1144 = vunpack.c.l.b16 %v1107
      %v1145 = vpack.c.b16 %v1130, %v1129
      %v1146 = vpack.c.b16 %v1132, %v1131
      %v1147 = vpack.c.b16 %v1134, %v1133
      %v1148 = vpack.c.b16 %v1136, %v1135
      %v1149 = vpack.c.b16 %v1138, %v1137
      %v1150 = vpack.c.b16 %v1140, %v1139
      %v1151 = vpack.c.b16 %v1142, %v1141
      %v1152 = vpack.c.b16 %v1144, %v1143
      %1161 = vmatprep.subr.bf16.mxu0 0
      %1162 = vmatpush1.bf16.msra.mxu0 %v1152
      %1163 = vmatprep.subr.bf16.mxu0 0
      %1164 = vmatpush1.bf16.msra.mxu0 %v1151
      %1165 = vmatprep.subr.bf16.mxu0 0
      %1166 = vmatpush1.bf16.msra.mxu0 %v1150
      %1167 = vmatprep.subr.bf16.mxu0 0
      %1168 = vmatpush1.bf16.msra.mxu0 %v1149
      %1169 = vmatprep.subr.bf16.mxu0 0
      %1170 = vmatpush1.bf16.msra.mxu0 %v1148
      %1171 = vmatprep.subr.bf16.mxu0 0
      %1172 = vmatpush1.bf16.msra.mxu0 %v1147
      %1173 = vmatprep.subr.bf16.mxu0 0
      %1174 = vmatpush1.bf16.msra.mxu0 %v1146
      %1175 = vmatprep.subr.bf16.mxu0 0
      %1176 = vmatpush1.bf16.msra.mxu0 %v1145
      %1177 = vmatprep.subr.bf16.mxu0 0
      %1178 = vmatpush2.bf16.msra.mxu0 0
      %1179 = vmatprep.subr.bf16.mxu0 0
      %1180 = vmatpush2.bf16.msra.mxu0 0
      %1181 = vmatprep.subr.bf16.mxu0 0
      %1182 = vmatpush2.bf16.msra.mxu0 0
      %1183 = vmatprep.subr.bf16.mxu0 0
      %1184 = vmatpush2.bf16.msra.mxu0 0
      %1185 = vmatprep.subr.bf16.mxu0 0
      %1186 = vmatpush2.bf16.msra.mxu0 0
      %1187 = vmatprep.subr.bf16.mxu0 0
      %1188 = vmatpush2.bf16.msra.mxu0 0
      %1189 = vmatprep.subr.bf16.mxu0 0
      %1190 = vmatpush2.bf16.msra.mxu0 0
      %1191 = vmatprep.subr.bf16.mxu0 0
      %1192 = vmatpush2.bf16.msra.mxu0 0
      %1193 = vmatprep.mubr.bf16.mxu0 0
      %1194 = vmatmul.mubr.bf16.gmra.mxu0 %v1111
      %v1195 = vpop.f32.mrf.mxu0
      %v1196 = vadd.f32 0.0, %v1195
      %v1197 = vpop.f32.mrf.mxu0
      %v1198 = vpop.f32.mrf.mxu0
      %v1199 = vpop.f32.mrf.mxu0
      %1200 = vdwg.mxu0
      %v1201 = vadd.f32 %v1089, %v1196
      %v1202 = vpack.c.bf16 %v1201, %v1201
      %1203 = vst [vmem:[%s178] sm:$0xf] %v1202
      %p1204 = scmp.lt.s32.totalorder %s17, 1
      %s1205 = scalar_select %p1204, %s17, 1
      %p1206 = scmp.lt.s32.totalorder %s18, 0
      %s1207 = scalar_select %p1206, %s18, 0
      %s1208 = sadd.s32 %s1207, %s1205
      %s1209 = smul.addr %s1208, 4
      %s1210 = scalar_lea.vmem %s2, %s1209
      // Predicated region
      $region29: #{densenet_forward.22} parent=27 // pred_check
        %p1211 = pneg %p97
      $region30: #{densenet_forward.22} parent=27 // pred_check_branch
        %1213 = sbr.rel (%p1211) target = $region32
      $region31: #{densenet_forward.22} parent=27 // pred_region
        _
      $region32: #{densenet_forward.22} parent=27 // pred_fallthru
        _
    $region28: #{densenet_forward.22} parent=5 // pred_fallthru
      _
    %p1214 = scmp.le.s32.totalorder 2, %s8
    // Predicated region
    $region33: #{densenet_forward.22} parent=5 // pred_check
      %p1215 = pneg %p1214
    $region34: #{densenet_forward.22} parent=5 // pred_check_branch
      %1217 = sbr.rel (%p1215) target = $region36
    $region35: #{densenet_forward.22} parent=5 // pred_region
      %s1218 = ssub.s32 %s8, 2
      // Predicated region
      $region37: #{densenet_forward.22} parent=35 // pred_check
        %p1219 = pneg %p103
      $region38: #{densenet_forward.22} parent=35 // pred_check_branch
        %1221 = sbr.rel (%p1219) target = $region40
      $region39: #{densenet_forward.22} parent=35 // pred_region
        %p1222 = scmp.lt.s32.totalorder %s19, 1
        %s1223 = scalar_select %p1222, %s19, 1
        %p1224 = scmp.lt.s32.totalorder %s20, 0
        %s1225 = scalar_select %p1224, %s20, 0
        %s1226 = sadd.s32 %s1225, %s1223
        %s1227 = smul.addr %s1226, 4
        %s1228 = scalar_lea.vmem %s2, %s1227
      $region40: #{densenet_forward.22} parent=35 // pred_fallthru
        _
    $region36: #{densenet_forward.22} parent=5 // pred_fallthru
      _
  $region6: #{densenet_forward.22} parent=0 // loop_footer
    %s12 = sadd.s32 1, %s8
  $region7: #{densenet_forward.22} parent=0 // loop_footer_branch
    %7 = sbr.rel target = $region3
  $region8: #{densenet_forward.22} parent=0 // loop_exit
    _

</llo_original>
